<compile_context>
chip_gen: v7x
topology: tpu7x:2x2x1
jax: 0.10.0
libtpu: 0.0.40
codegen_flags: <defaults>
</compile_context>

<pallas_src>
import jax
import jax.numpy as jnp
from jax.experimental import pallas as pl
from jax.experimental.pallas import tpu as pltpu


# ------------------------------ Pallas kernel ------------------------------ #
def _fused_dqn_kernel(p1_ref, w1_ref, b1_ref, w2_ref, b2_ref, w3_ref, b3_ref,
                      o_ref, h1_ref, h2_ref):
    """Fused conv1->conv2->conv3 (+bias+ReLU) for one batch element.

    p1_ref : (400, 256) conv1 im2col patches, rows parity-major:
             row = (ph*2+pw)*100 + hh*10 + wh, conv1 output (y1,x1)=(2hh+ph,2wh+pw)
    h1_ref : (100, 128) conv1 acts: row = hh*10+wh, col = (ph*2+pw)*32 + c   [scratch]
    h2_ref : (89, 64)   conv2 acts on a 10-wide grid (r = oy*10+ox)          [scratch]
    o_ref  : (1, 67, 32) conv3 acts on a 10-wide grid (r = ky*10+kx)
    """
    f32 = jnp.float32

    # ---- conv1 (8x8, stride 4) + ReLU: 4 parity matmuls, lane-concatenated --
    parts = []
    for p in range(4):
        parts.append(jnp.maximum(
            jnp.dot(p1_ref[p * 100:(p + 1) * 100, :], w1_ref[...],
                    preferred_element_type=f32) + b1_ref[...], 0.0))
    h1_ref[...] = jnp.concatenate(parts, axis=-1)          # (100, 128)

    # ---- conv2 (4x4, stride 2) + ReLU: 4 full-lane (K=128) matmuls ----------
    # Tap (ki,kj): parity (pi,pj)=(ki&1,kj&1), block (bi,bj)=(ki>>1,kj>>1).
    # For output r = oy*10+ox, all four parities of block (bi,bj) read h1 row
    # r + bi*10 + bj across the full 128 lanes -> one contiguous slice matmul.
    acc2 = jnp.zeros((89, 64), f32)
    for bi in range(2):
        for bj in range(2):
            start = bi * 10 + bj
            g = (bi * 2 + bj) * 128
            acc2 = acc2 + jnp.dot(h1_ref[start:start + 89, :],
                                  w2_ref[g:g + 128, :],
                                  preferred_element_type=f32)
    # rows r = oy*10 + ox are valid for oy,ox in [0,9); junk rows never read.
    h2_ref[...] = jnp.maximum(acc2 + b2_ref[...], 0.0)

    # ---- conv3 (3x3, stride 1) + ReLU: 9 shifted-slice matmuls --------------
    acc3 = jnp.zeros((67, 32), f32)
    for ki in range(3):
        for kj in range(3):
            off = ki * 10 + kj
            tap = (ki * 3 + kj) * 64
            acc3 = acc3 + jnp.dot(h2_ref[off:off + 67, :],
                                  w3_ref[tap:tap + 64, :],
                                  preferred_element_type=f32)
    # rows r = ky*10 + kx are valid for ky,kx in [0,7).
    o_ref[0, :, :] = jnp.maximum(acc3 + b3_ref[...], 0.0)


def _fused_pallas_call(p1, prepped, B):
    w1r, b1r = prepped["w1r"], prepped["b1r"]
    w2r, b2r = prepped["w2r"], prepped["b2r"]
    w3r, b3r = prepped["w3r"], prepped["b3r"]
    flops = 2 * B * (400 * 256 * 32 + 4 * 89 * 128 * 64 + 9 * 67 * 64 * 32)
    bytes_accessed = 4 * (p1.size + w1r.size + w2r.size + w3r.size
                          + b1r.size + b2r.size + b3r.size + B * 67 * 32)
    return pl.pallas_call(
        _fused_dqn_kernel,
        out_shape=jax.ShapeDtypeStruct((B, 67, 32), jnp.float32),
        grid=(B,),
        in_specs=[
            pl.BlockSpec((400, 256), lambda b: (b, 0)),   # conv1 patches (per batch)
            pl.BlockSpec((256, 32), lambda b: (0, 0)),    # w1  (K, Cout)
            pl.BlockSpec((1, 32), lambda b: (0, 0)),      # b1
            pl.BlockSpec((512, 64), lambda b: (0, 0)),    # w2  (4 blocks x 128, Cout)
            pl.BlockSpec((1, 64), lambda b: (0, 0)),      # b2
            pl.BlockSpec((576, 32), lambda b: (0, 0)),    # w3  taps stacked on K
            pl.BlockSpec((1, 32), lambda b: (0, 0)),      # b3
        ],
        out_specs=pl.BlockSpec((1, 67, 32), lambda b: (b, 0, 0)),
        scratch_shapes=[
            pltpu.VMEM((100, 128), jnp.float32),  # h1 (conv1 acts, parity-in-lanes)
            pltpu.VMEM((89, 64), jnp.float32),    # h2 (conv2 acts, 10-wide grid)
        ],
        compiler_params=pltpu.CompilerParams(
            dimension_semantics=("parallel",)),
        cost_estimate=pl.CostEstimate(
            flops=flops, transcendentals=0, bytes_accessed=bytes_accessed),
    )(p1, w1r, b1r, w2r, b2r, w3r, b3r)


# --------------------------- prologue / epilogue ---------------------------- #
def _conv1_patches(x):
    """im2col for conv1 (8x8, stride 4), rows in stride-parity order.

    Uses the 4x4-block trick (conv1's stride divides its kernel size): the
    receptive field of output (y1,x1) is the 2x2 neighbourhood of 4x4 input
    blocks, so im2col is a reshape + 4 shifted slices (not 64).

    Returns (B*400, 256): row  b*400 + ph*200 + pw*100 + hh*10 + wh  holds the
    window of conv1 output (y1,x1) = (2*hh+ph, 2*wh+pw), columns ordered
    (ki//4, kj//4, ki%4, kj%4, cin) to match w1r below.
    """
    B = x.shape[0]
    # (B, 21, 21, 64): 4x4 pixel blocks, inner order (ki%4, kj%4, cin).
    blk = x.reshape(B, 21, 4, 21, 4, 4).transpose(0, 1, 3, 2, 4, 5)
    blk = blk.reshape(B, 21, 21, 64)
    p = jnp.concatenate(
        [blk[:, :20, :20], blk[:, :20, 1:21], blk[:, 1:21, :20], blk[:, 1:21, 1:21]],
        axis=-1)                                            # (B, 20, 20, 256)
    # parity-split the 20x20 conv1 output grid: (B, ph, pw, hh, wh, K)
    p = p.reshape(B, 10, 2, 10, 2, 256).transpose(0, 2, 4, 1, 3, 5)
    return p.reshape(B * 400, 256)


def prepare_params(params):
    """One-time weight re-layout (call once, outside jit / the step loop)."""
    # w1: rows ordered (ki//4, kj//4, ki%4, kj%4, cin) to match _conv1_patches.
    w1r = (jnp.transpose(params["w1"], (2, 3, 1, 0))        # (8,8,4,32)
           .reshape(2, 4, 2, 4, 4, 32).transpose(0, 2, 1, 3, 4, 5)
           .reshape(256, 32))
    # w2: 4 blocks (bi,bj), each 128 rows ordered (pi, pj, cin) -> matches h1 lanes.
    w2r = (jnp.transpose(params["w2"], (2, 3, 1, 0))        # (4,4,32,64)
           .reshape(2, 2, 2, 2, 32, 64).transpose(0, 2, 1, 3, 4, 5)
           .reshape(512, 64))
    # w3: rows ordered (kh, kw, cin).
    w3r = jnp.transpose(params["w3"], (2, 3, 1, 0)).reshape(3 * 3 * 64, 32)
    return {
        "w1r": w1r, "b1r": params["b1"].reshape(1, 32),
        "w2r": w2r, "b2r": params["b2"].reshape(1, 64),
        "w3r": w3r, "b3r": params["b3"].reshape(1, 32),
    }


# ------------------------------ module forward ------------------------------ #
def deepmind_forward(prepped, x):
    """x: (B, 84, 84, 4) NHWC (or (84, 84, 4)).  Returns (B, 32*7*7)."""
    if x.ndim == 3:
        x = x[None]
    if x.shape[1:] != (84, 84, 4):
        raise ValueError(f"deepmind expects (B, 84, 84, 4) input, got {x.shape}")
    B = x.shape[0]
    p1 = _conv1_patches(x.astype(jnp.float32))
    out = _fused_pallas_call(p1, prepped, B)               # (B, 67, 32)
    # Extract the valid 7x7 window (rows r = ky*10 + kx, kx < 7) and flatten in
    # torch's NCHW order: x.reshape(-1, 32*7*7) on a (B, 32, 7, 7) tensor.
    nhwc = jnp.stack([out[:, ky * 10:ky * 10 + 7, :] for ky in range(7)], axis=1)
    return jnp.transpose(nhwc, (0, 3, 1, 2)).reshape(B, 32 * 7 * 7)


# ---------------------------- params / reference ---------------------------- #
def init_params(key):
    """Deterministic init mimicking PyTorch Conv2d default (uniform +-1/sqrt(fan_in))."""
    def conv_init(k, cout, cin, kh, kw):
        k1, k2 = jax.random.split(k)
        bound = 1.0 / jnp.sqrt(cin * kh * kw)
        w = jax.random.uniform(k1, (cout, cin, kh, kw), jnp.float32, -bound, bound)
        b = jax.random.uniform(k2, (cout,), jnp.float32, -bound, bound)
        return w, b

    k1, k2, k3 = jax.random.split(key, 3)
    w1, b1 = conv_init(k1, 32, 4, 8, 8)
    w2, b2 = conv_init(k2, 64, 32, 4, 4)
    w3, b3 = conv_init(k3, 32, 64, 3, 3)
    return {"w1": w1, "b1": b1, "w2": w2, "b2": b2, "w3": w3, "b3": b3}


def _reference_forward(params, x):
    """Pure-JAX (XLA conv) reference for correctness checking."""
    if x.ndim == 3:
        x = x[None]
    x = jnp.transpose(x, (0, 3, 1, 2))
    for w, b, s in [
        (params["w1"], params["b1"], 4),
        (params["w2"], params["b2"], 2),
        (params["w3"], params["b3"], 1),
    ]:
        x = jax.lax.conv_general_dilated(
            x, w, window_strides=(s, s), padding="VALID",
            dimension_numbers=("NCHW", "OIHW", "NCHW"),
        )
        x = jax.nn.relu(x + b.reshape(1, -1, 1, 1))
    return x.reshape(-1, 32 * 7 * 7)


# ----------------------------------- main ----------------------------------- #
if __name__ == "__main__":
    key = jax.random.PRNGKey(0)
    pkey, xkey = jax.random.split(key)

    params = init_params(pkey)
    prepped = prepare_params(params)        # one-time weight re-layout, outside jit

    # Batch of 2; spatial must be 84x84 with 4 channels (forced by 32*7*7 reshape).
    x = jax.random.uniform(xkey, (2, 84, 84, 4), jnp.float32)

    fwd = jax.jit(deepmind_forward)
    out = jax.block_until_ready(fwd(prepped, x))

    assert out.shape == (2, 32 * 7 * 7), out.shape

    ref = jax.block_until_ready(_reference_forward(params, x))
    assert jnp.allclose(out, ref, atol=1e-4, rtol=1e-4), (
        float(jnp.max(jnp.abs(out - ref)))
    )

    print("KERNEL_OK")
</pallas_src>

<mosaic_0001>
module attributes {stable_mosaic.version = 11 : i64} {
  func.func @_fused_dqn_kernel(%arg0: i32, %arg1: memref<400x256xf32, #tpu.memory_space<vmem>>, %arg2: memref<256x32xf32, #tpu.memory_space<vmem>>, %arg3: memref<1x32xf32, #tpu.memory_space<vmem>>, %arg4: memref<512x64xf32, #tpu.memory_space<vmem>>, %arg5: memref<1x64xf32, #tpu.memory_space<vmem>>, %arg6: memref<576x32xf32, #tpu.memory_space<vmem>>, %arg7: memref<1x32xf32, #tpu.memory_space<vmem>>, %arg8: memref<1x67x32xf32, #tpu.memory_space<vmem>>, %arg9: memref<100x128xf32, #tpu.memory_space<vmem>>, %arg10: memref<89x64xf32, #tpu.memory_space<vmem>>) attributes {dimension_semantics = [#tpu.dimension_semantics<parallel>], iteration_bounds = array<i64: 2>, scalar_prefetch = 0 : i64, scratch_operands = 2 : i64, tpu.core_type = #tpu.core_type<tc>, window_params = [{transform_indices = @transform_0, window_bounds = array<i64: 400, 256>}, {pipeline_mode = #tpu.pipeline_mode<synchronous>, transform_indices = @transform_1, window_bounds = array<i64: 256, 32>}, {pipeline_mode = #tpu.pipeline_mode<synchronous>, transform_indices = @transform_2, window_bounds = array<i64: 1, 32>}, {pipeline_mode = #tpu.pipeline_mode<synchronous>, transform_indices = @transform_3, window_bounds = array<i64: 512, 64>}, {pipeline_mode = #tpu.pipeline_mode<synchronous>, transform_indices = @transform_4, window_bounds = array<i64: 1, 64>}, {pipeline_mode = #tpu.pipeline_mode<synchronous>, transform_indices = @transform_5, window_bounds = array<i64: 576, 32>}, {pipeline_mode = #tpu.pipeline_mode<synchronous>, transform_indices = @transform_6, window_bounds = array<i64: 1, 32>}, {transform_indices = @transform_7, window_bounds = array<i64: 1, 67, 32>}]} {
    %c0 = arith.constant 0 : index
    %c0_0 = arith.constant 0 : index
    %0 = vector.load %arg1[%c0, %c0_0] : memref<400x256xf32, #tpu.memory_space<vmem>>, vector<100x256xf32>
    %c0_1 = arith.constant 0 : index
    %c0_2 = arith.constant 0 : index
    %1 = vector.load %arg2[%c0_1, %c0_2] : memref<256x32xf32, #tpu.memory_space<vmem>>, vector<256x32xf32>
    %cst = arith.constant dense<0.000000e+00> : vector<100x32xf32>
    %2 = tpu.matmul %0, %1, %cst {dimension_numbers = #tpu.dot_dimension_numbers<[1], [0], [0], [1], [0, 0, 1, 1], [], []>} : vector<100x256xf32>, vector<256x32xf32>, vector<100x32xf32> -> vector<100x32xf32>
    %c0_3 = arith.constant 0 : index
    %c0_4 = arith.constant 0 : index
    %3 = vector.load %arg3[%c0_3, %c0_4] : memref<1x32xf32, #tpu.memory_space<vmem>>, vector<1x32xf32>
    %4 = vector.broadcast %3 : vector<1x32xf32> to vector<100x32xf32>
    %5 = arith.addf %2, %4 : vector<100x32xf32>
    %cst_5 = arith.constant 0.000000e+00 : f32
    %6 = vector.broadcast %cst_5 : f32 to vector<100x32xf32>
    %7 = arith.maximumf %5, %6 : vector<100x32xf32>
    %c100 = arith.constant 100 : index
    %c0_6 = arith.constant 0 : index
    %8 = vector.load %arg1[%c100, %c0_6] : memref<400x256xf32, #tpu.memory_space<vmem>>, vector<100x256xf32>
    %c0_7 = arith.constant 0 : index
    %c0_8 = arith.constant 0 : index
    %9 = vector.load %arg2[%c0_7, %c0_8] : memref<256x32xf32, #tpu.memory_space<vmem>>, vector<256x32xf32>
    %cst_9 = arith.constant dense<0.000000e+00> : vector<100x32xf32>
    %10 = tpu.matmul %8, %9, %cst_9 {dimension_numbers = #tpu.dot_dimension_numbers<[1], [0], [0], [1], [0, 0, 1, 1], [], []>} : vector<100x256xf32>, vector<256x32xf32>, vector<100x32xf32> -> vector<100x32xf32>
    %c0_10 = arith.constant 0 : index
    %c0_11 = arith.constant 0 : index
    %11 = vector.load %arg3[%c0_10, %c0_11] : memref<1x32xf32, #tpu.memory_space<vmem>>, vector<1x32xf32>
    %12 = vector.broadcast %11 : vector<1x32xf32> to vector<100x32xf32>
    %13 = arith.addf %10, %12 : vector<100x32xf32>
    %cst_12 = arith.constant 0.000000e+00 : f32
    %14 = vector.broadcast %cst_12 : f32 to vector<100x32xf32>
    %15 = arith.maximumf %13, %14 : vector<100x32xf32>
    %c200 = arith.constant 200 : index
    %c0_13 = arith.constant 0 : index
    %16 = vector.load %arg1[%c200, %c0_13] : memref<400x256xf32, #tpu.memory_space<vmem>>, vector<100x256xf32>
    %c0_14 = arith.constant 0 : index
    %c0_15 = arith.constant 0 : index
    %17 = vector.load %arg2[%c0_14, %c0_15] : memref<256x32xf32, #tpu.memory_space<vmem>>, vector<256x32xf32>
    %cst_16 = arith.constant dense<0.000000e+00> : vector<100x32xf32>
    %18 = tpu.matmul %16, %17, %cst_16 {dimension_numbers = #tpu.dot_dimension_numbers<[1], [0], [0], [1], [0, 0, 1, 1], [], []>} : vector<100x256xf32>, vector<256x32xf32>, vector<100x32xf32> -> vector<100x32xf32>
    %c0_17 = arith.constant 0 : index
    %c0_18 = arith.constant 0 : index
    %19 = vector.load %arg3[%c0_17, %c0_18] : memref<1x32xf32, #tpu.memory_space<vmem>>, vector<1x32xf32>
    %20 = vector.broadcast %19 : vector<1x32xf32> to vector<100x32xf32>
    %21 = arith.addf %18, %20 : vector<100x32xf32>
    %cst_19 = arith.constant 0.000000e+00 : f32
    %22 = vector.broadcast %cst_19 : f32 to vector<100x32xf32>
    %23 = arith.maximumf %21, %22 : vector<100x32xf32>
    %c300 = arith.constant 300 : index
    %c0_20 = arith.constant 0 : index
    %24 = vector.load %arg1[%c300, %c0_20] : memref<400x256xf32, #tpu.memory_space<vmem>>, vector<100x256xf32>
    %c0_21 = arith.constant 0 : index
    %c0_22 = arith.constant 0 : index
    %25 = vector.load %arg2[%c0_21, %c0_22] : memref<256x32xf32, #tpu.memory_space<vmem>>, vector<256x32xf32>
    %cst_23 = arith.constant dense<0.000000e+00> : vector<100x32xf32>
    %26 = tpu.matmul %24, %25, %cst_23 {dimension_numbers = #tpu.dot_dimension_numbers<[1], [0], [0], [1], [0, 0, 1, 1], [], []>} : vector<100x256xf32>, vector<256x32xf32>, vector<100x32xf32> -> vector<100x32xf32>
    %c0_24 = arith.constant 0 : index
    %c0_25 = arith.constant 0 : index
    %27 = vector.load %arg3[%c0_24, %c0_25] : memref<1x32xf32, #tpu.memory_space<vmem>>, vector<1x32xf32>
    %28 = vector.broadcast %27 : vector<1x32xf32> to vector<100x32xf32>
    %29 = arith.addf %26, %28 : vector<100x32xf32>
    %cst_26 = arith.constant 0.000000e+00 : f32
    %30 = vector.broadcast %cst_26 : f32 to vector<100x32xf32>
    %31 = arith.maximumf %29, %30 : vector<100x32xf32>
    %32 = tpu.concatenate %7, %15, %23, %31 in 1 : vector<100x32xf32>, vector<100x32xf32>, vector<100x32xf32>, vector<100x32xf32> -> vector<100x128xf32>
    %c0_27 = arith.constant 0 : index
    %c0_28 = arith.constant 0 : index
    %33 = vector.load %arg9[%c0_27, %c0_28] : memref<100x128xf32, #tpu.memory_space<vmem>>, vector<100x128xf32>
    tpu.vector_store %arg9[%c0_27, %c0_28], %32 {strides = array<i32>} : memref<100x128xf32, #tpu.memory_space<vmem>>, vector<100x128xf32>,
    %cst_29 = arith.constant 0.000000e+00 : f32
    %34 = vector.broadcast %cst_29 : f32 to vector<89x64xf32>
    %c0_30 = arith.constant 0 : index
    %c0_31 = arith.constant 0 : index
    %35 = vector.load %arg9[%c0_30, %c0_31] : memref<100x128xf32, #tpu.memory_space<vmem>>, vector<89x128xf32>
    %c0_32 = arith.constant 0 : index
    %c0_33 = arith.constant 0 : index
    %36 = vector.load %arg4[%c0_32, %c0_33] : memref<512x64xf32, #tpu.memory_space<vmem>>, vector<128x64xf32>
    %cst_34 = arith.constant dense<0.000000e+00> : vector<89x64xf32>
    %37 = tpu.matmul %35, %36, %cst_34 {dimension_numbers = #tpu.dot_dimension_numbers<[1], [0], [0], [1], [0, 0, 1, 1], [], []>} : vector<89x128xf32>, vector<128x64xf32>, vector<89x64xf32> -> vector<89x64xf32>
    %38 = arith.addf %34, %37 : vector<89x64xf32>
    %c1 = arith.constant 1 : index
    %c0_35 = arith.constant 0 : index
    %39 = vector.load %arg9[%c1, %c0_35] : memref<100x128xf32, #tpu.memory_space<vmem>>, vector<89x128xf32>
    %c128 = arith.constant 128 : index
    %c0_36 = arith.constant 0 : index
    %40 = vector.load %arg4[%c128, %c0_36] : memref<512x64xf32, #tpu.memory_space<vmem>>, vector<128x64xf32>
    %cst_37 = arith.constant dense<0.000000e+00> : vector<89x64xf32>
    %41 = tpu.matmul %39, %40, %cst_37 {dimension_numbers = #tpu.dot_dimension_numbers<[1], [0], [0], [1], [0, 0, 1, 1], [], []>} : vector<89x128xf32>, vector<128x64xf32>, vector<89x64xf32> -> vector<89x64xf32>
    %42 = arith.addf %38, %41 : vector<89x64xf32>
    %c10 = arith.constant 10 : index
    %c0_38 = arith.constant 0 : index
    %43 = vector.load %arg9[%c10, %c0_38] : memref<100x128xf32, #tpu.memory_space<vmem>>, vector<89x128xf32>
    %c256 = arith.constant 256 : index
    %c0_39 = arith.constant 0 : index
    %44 = vector.load %arg4[%c256, %c0_39] : memref<512x64xf32, #tpu.memory_space<vmem>>, vector<128x64xf32>
    %cst_40 = arith.constant dense<0.000000e+00> : vector<89x64xf32>
    %45 = tpu.matmul %43, %44, %cst_40 {dimension_numbers = #tpu.dot_dimension_numbers<[1], [0], [0], [1], [0, 0, 1, 1], [], []>} : vector<89x128xf32>, vector<128x64xf32>, vector<89x64xf32> -> vector<89x64xf32>
    %46 = arith.addf %42, %45 : vector<89x64xf32>
    %c11 = arith.constant 11 : index
    %c0_41 = arith.constant 0 : index
    %47 = vector.load %arg9[%c11, %c0_41] : memref<100x128xf32, #tpu.memory_space<vmem>>, vector<89x128xf32>
    %c384 = arith.constant 384 : index
    %c0_42 = arith.constant 0 : index
    %48 = vector.load %arg4[%c384, %c0_42] : memref<512x64xf32, #tpu.memory_space<vmem>>, vector<128x64xf32>
    %cst_43 = arith.constant dense<0.000000e+00> : vector<89x64xf32>
    %49 = tpu.matmul %47, %48, %cst_43 {dimension_numbers = #tpu.dot_dimension_numbers<[1], [0], [0], [1], [0, 0, 1, 1], [], []>} : vector<89x128xf32>, vector<128x64xf32>, vector<89x64xf32> -> vector<89x64xf32>
    %50 = arith.addf %46, %49 : vector<89x64xf32>
    %c0_44 = arith.constant 0 : index
    %c0_45 = arith.constant 0 : index
    %51 = vector.load %arg5[%c0_44, %c0_45] : memref<1x64xf32, #tpu.memory_space<vmem>>, vector<1x64xf32>
    %52 = vector.broadcast %51 : vector<1x64xf32> to vector<89x64xf32>
    %53 = arith.addf %50, %52 : vector<89x64xf32>
    %cst_46 = arith.constant 0.000000e+00 : f32
    %54 = vector.broadcast %cst_46 : f32 to vector<89x64xf32>
    %55 = arith.maximumf %53, %54 : vector<89x64xf32>
    %c0_47 = arith.constant 0 : index
    %c0_48 = arith.constant 0 : index
    %56 = vector.load %arg10[%c0_47, %c0_48] : memref<89x64xf32, #tpu.memory_space<vmem>>, vector<89x64xf32>
    tpu.vector_store %arg10[%c0_47, %c0_48], %55 {strides = array<i32>} : memref<89x64xf32, #tpu.memory_space<vmem>>, vector<89x64xf32>,
    %cst_49 = arith.constant 0.000000e+00 : f32
    %57 = vector.broadcast %cst_49 : f32 to vector<67x32xf32>
    %c0_50 = arith.constant 0 : index
    %c0_51 = arith.constant 0 : index
    %58 = vector.load %arg10[%c0_50, %c0_51] : memref<89x64xf32, #tpu.memory_space<vmem>>, vector<67x64xf32>
    %c0_52 = arith.constant 0 : index
    %c0_53 = arith.constant 0 : index
    %59 = vector.load %arg6[%c0_52, %c0_53] : memref<576x32xf32, #tpu.memory_space<vmem>>, vector<64x32xf32>
    %cst_54 = arith.constant dense<0.000000e+00> : vector<67x32xf32>
    %60 = tpu.matmul %58, %59, %cst_54 {dimension_numbers = #tpu.dot_dimension_numbers<[1], [0], [0], [1], [0, 0, 1, 1], [], []>} : vector<67x64xf32>, vector<64x32xf32>, vector<67x32xf32> -> vector<67x32xf32>
    %61 = arith.addf %57, %60 : vector<67x32xf32>
    %c1_55 = arith.constant 1 : index
    %c0_56 = arith.constant 0 : index
    %62 = vector.load %arg10[%c1_55, %c0_56] : memref<89x64xf32, #tpu.memory_space<vmem>>, vector<67x64xf32>
    %c64 = arith.constant 64 : index
    %c0_57 = arith.constant 0 : index
    %63 = vector.load %arg6[%c64, %c0_57] : memref<576x32xf32, #tpu.memory_space<vmem>>, vector<64x32xf32>
    %cst_58 = arith.constant dense<0.000000e+00> : vector<67x32xf32>
    %64 = tpu.matmul %62, %63, %cst_58 {dimension_numbers = #tpu.dot_dimension_numbers<[1], [0], [0], [1], [0, 0, 1, 1], [], []>} : vector<67x64xf32>, vector<64x32xf32>, vector<67x32xf32> -> vector<67x32xf32>
    %65 = arith.addf %61, %64 : vector<67x32xf32>
    %c2 = arith.constant 2 : index
    %c0_59 = arith.constant 0 : index
    %66 = vector.load %arg10[%c2, %c0_59] : memref<89x64xf32, #tpu.memory_space<vmem>>, vector<67x64xf32>
    %c128_60 = arith.constant 128 : index
    %c0_61 = arith.constant 0 : index
    %67 = vector.load %arg6[%c128_60, %c0_61] : memref<576x32xf32, #tpu.memory_space<vmem>>, vector<64x32xf32>
    %cst_62 = arith.constant dense<0.000000e+00> : vector<67x32xf32>
    %68 = tpu.matmul %66, %67, %cst_62 {dimension_numbers = #tpu.dot_dimension_numbers<[1], [0], [0], [1], [0, 0, 1, 1], [], []>} : vector<67x64xf32>, vector<64x32xf32>, vector<67x32xf32> -> vector<67x32xf32>
    %69 = arith.addf %65, %68 : vector<67x32xf32>
    %c10_63 = arith.constant 10 : index
    %c0_64 = arith.constant 0 : index
    %70 = vector.load %arg10[%c10_63, %c0_64] : memref<89x64xf32, #tpu.memory_space<vmem>>, vector<67x64xf32>
    %c192 = arith.constant 192 : index
    %c0_65 = arith.constant 0 : index
    %71 = vector.load %arg6[%c192, %c0_65] : memref<576x32xf32, #tpu.memory_space<vmem>>, vector<64x32xf32>
    %cst_66 = arith.constant dense<0.000000e+00> : vector<67x32xf32>
    %72 = tpu.matmul %70, %71, %cst_66 {dimension_numbers = #tpu.dot_dimension_numbers<[1], [0], [0], [1], [0, 0, 1, 1], [], []>} : vector<67x64xf32>, vector<64x32xf32>, vector<67x32xf32> -> vector<67x32xf32>
    %73 = arith.addf %69, %72 : vector<67x32xf32>
    %c11_67 = arith.constant 11 : index
    %c0_68 = arith.constant 0 : index
    %74 = vector.load %arg10[%c11_67, %c0_68] : memref<89x64xf32, #tpu.memory_space<vmem>>, vector<67x64xf32>
    %c256_69 = arith.constant 256 : index
    %c0_70 = arith.constant 0 : index
    %75 = vector.load %arg6[%c256_69, %c0_70] : memref<576x32xf32, #tpu.memory_space<vmem>>, vector<64x32xf32>
    %cst_71 = arith.constant dense<0.000000e+00> : vector<67x32xf32>
    %76 = tpu.matmul %74, %75, %cst_71 {dimension_numbers = #tpu.dot_dimension_numbers<[1], [0], [0], [1], [0, 0, 1, 1], [], []>} : vector<67x64xf32>, vector<64x32xf32>, vector<67x32xf32> -> vector<67x32xf32>
    %77 = arith.addf %73, %76 : vector<67x32xf32>
    %c12 = arith.constant 12 : index
    %c0_72 = arith.constant 0 : index
    %78 = vector.load %arg10[%c12, %c0_72] : memref<89x64xf32, #tpu.memory_space<vmem>>, vector<67x64xf32>
    %c320 = arith.constant 320 : index
    %c0_73 = arith.constant 0 : index
    %79 = vector.load %arg6[%c320, %c0_73] : memref<576x32xf32, #tpu.memory_space<vmem>>, vector<64x32xf32>
    %cst_74 = arith.constant dense<0.000000e+00> : vector<67x32xf32>
    %80 = tpu.matmul %78, %79, %cst_74 {dimension_numbers = #tpu.dot_dimension_numbers<[1], [0], [0], [1], [0, 0, 1, 1], [], []>} : vector<67x64xf32>, vector<64x32xf32>, vector<67x32xf32> -> vector<67x32xf32>
    %81 = arith.addf %77, %80 : vector<67x32xf32>
    %c20 = arith.constant 20 : index
    %c0_75 = arith.constant 0 : index
    %82 = vector.load %arg10[%c20, %c0_75] : memref<89x64xf32, #tpu.memory_space<vmem>>, vector<67x64xf32>
    %c384_76 = arith.constant 384 : index
    %c0_77 = arith.constant 0 : index
    %83 = vector.load %arg6[%c384_76, %c0_77] : memref<576x32xf32, #tpu.memory_space<vmem>>, vector<64x32xf32>
    %cst_78 = arith.constant dense<0.000000e+00> : vector<67x32xf32>
    %84 = tpu.matmul %82, %83, %cst_78 {dimension_numbers = #tpu.dot_dimension_numbers<[1], [0], [0], [1], [0, 0, 1, 1], [], []>} : vector<67x64xf32>, vector<64x32xf32>, vector<67x32xf32> -> vector<67x32xf32>
    %85 = arith.addf %81, %84 : vector<67x32xf32>
    %c21 = arith.constant 21 : index
    %c0_79 = arith.constant 0 : index
    %86 = vector.load %arg10[%c21, %c0_79] : memref<89x64xf32, #tpu.memory_space<vmem>>, vector<67x64xf32>
    %c448 = arith.constant 448 : index
    %c0_80 = arith.constant 0 : index
    %87 = vector.load %arg6[%c448, %c0_80] : memref<576x32xf32, #tpu.memory_space<vmem>>, vector<64x32xf32>
    %cst_81 = arith.constant dense<0.000000e+00> : vector<67x32xf32>
    %88 = tpu.matmul %86, %87, %cst_81 {dimension_numbers = #tpu.dot_dimension_numbers<[1], [0], [0], [1], [0, 0, 1, 1], [], []>} : vector<67x64xf32>, vector<64x32xf32>, vector<67x32xf32> -> vector<67x32xf32>
    %89 = arith.addf %85, %88 : vector<67x32xf32>
    %c22 = arith.constant 22 : index
    %c0_82 = arith.constant 0 : index
    %90 = vector.load %arg10[%c22, %c0_82] : memref<89x64xf32, #tpu.memory_space<vmem>>, vector<67x64xf32>
    %c512 = arith.constant 512 : index
    %c0_83 = arith.constant 0 : index
    %91 = vector.load %arg6[%c512, %c0_83] : memref<576x32xf32, #tpu.memory_space<vmem>>, vector<64x32xf32>
    %cst_84 = arith.constant dense<0.000000e+00> : vector<67x32xf32>
    %92 = tpu.matmul %90, %91, %cst_84 {dimension_numbers = #tpu.dot_dimension_numbers<[1], [0], [0], [1], [0, 0, 1, 1], [], []>} : vector<67x64xf32>, vector<64x32xf32>, vector<67x32xf32> -> vector<67x32xf32>
    %93 = arith.addf %89, %92 : vector<67x32xf32>
    %c0_85 = arith.constant 0 : index
    %c0_86 = arith.constant 0 : index
    %94 = vector.load %arg7[%c0_85, %c0_86] : memref<1x32xf32, #tpu.memory_space<vmem>>, vector<1x32xf32>
    %95 = vector.broadcast %94 : vector<1x32xf32> to vector<67x32xf32>
    %96 = arith.addf %93, %95 : vector<67x32xf32>
    %cst_87 = arith.constant 0.000000e+00 : f32
    %97 = vector.broadcast %cst_87 : f32 to vector<67x32xf32>
    %98 = arith.maximumf %96, %97 : vector<67x32xf32>
    %c0_88 = arith.constant 0 : index
    %c0_89 = arith.constant 0 : index
    %c0_90 = arith.constant 0 : index
    %99 = vector.load %arg8[%c0_88, %c0_89, %c0_90] : memref<1x67x32xf32, #tpu.memory_space<vmem>>, vector<1x67x32xf32>
    %100 = vector.shape_cast %99 : vector<1x67x32xf32> to vector<67x32xf32>
    %101 = vector.shape_cast %98 : vector<67x32xf32> to vector<1x67x32xf32>
    tpu.vector_store %arg8[%c0_88, %c0_89, %c0_90], %101 {strides = array<i32>} : memref<1x67x32xf32, #tpu.memory_space<vmem>>, vector<1x67x32xf32>,
    return
  }
  func.func @transform_0(%arg0: i32) -> (i32, i32) {
    %c0_i32 = arith.constant 0 : i32
    %c0_i32_0 = arith.constant 0 : i32
    return %arg0, %c0_i32 : i32, i32
  }
  func.func @transform_1(%arg0: i32) -> (i32, i32) {
    %c0_i32 = arith.constant 0 : i32
    %c0_i32_0 = arith.constant 0 : i32
    %c0_i32_1 = arith.constant 0 : i32
    return %c0_i32, %c0_i32_0 : i32, i32
  }
  func.func @transform_2(%arg0: i32) -> (i32, i32) {
    %c0_i32 = arith.constant 0 : i32
    %c0_i32_0 = arith.constant 0 : i32
    %c0_i32_1 = arith.constant 0 : i32
    return %c0_i32, %c0_i32_0 : i32, i32
  }
  func.func @transform_3(%arg0: i32) -> (i32, i32) {
    %c0_i32 = arith.constant 0 : i32
    %c0_i32_0 = arith.constant 0 : i32
    %c0_i32_1 = arith.constant 0 : i32
    return %c0_i32, %c0_i32_0 : i32, i32
  }
  func.func @transform_4(%arg0: i32) -> (i32, i32) {
    %c0_i32 = arith.constant 0 : i32
    %c0_i32_0 = arith.constant 0 : i32
    %c0_i32_1 = arith.constant 0 : i32
    return %c0_i32, %c0_i32_0 : i32, i32
  }
  func.func @transform_5(%arg0: i32) -> (i32, i32) {
    %c0_i32 = arith.constant 0 : i32
    %c0_i32_0 = arith.constant 0 : i32
    %c0_i32_1 = arith.constant 0 : i32
    return %c0_i32, %c0_i32_0 : i32, i32
  }
  func.func @transform_6(%arg0: i32) -> (i32, i32) {
    %c0_i32 = arith.constant 0 : i32
    %c0_i32_0 = arith.constant 0 : i32
    %c0_i32_1 = arith.constant 0 : i32
    return %c0_i32, %c0_i32_0 : i32, i32
  }
  func.func @transform_7(%arg0: i32) -> (i32, i32, i32) {
    %c0_i32 = arith.constant 0 : i32
    %c0_i32_0 = arith.constant 0 : i32
    %c0_i32_1 = arith.constant 0 : i32
    return %arg0, %c0_i32, %c0_i32_0 : i32, i32, i32
  }
}

</mosaic_0001>

<llo_original>
// kernel: deepmind_forward.1
$region0: #{deepmind_forward.1}
  #allocation0 [shape = 'u32[]', space=smem, size = 0x4, offset = 0x4, fixed_abs, tag = 'smem constant byte address 0x4 - core index']
  #allocation1 [shape = 'u32[144,128]{1,0:T(1,128)}', space=vmem, size = 0x12000, scoped, tag = 'internal scratch']
  #allocation2 [shape = 'f32[100,128]{1,0:T(8,128)}', space=vmem, size = 0xd000, scoped, tag = 'scratch operand']
  #allocation3 [shape = 'f32[89,64]{1,0:T(8,128)}', space=vmem, size = 0xc000, scoped, tag = 'scratch operand']
  %s0 = inlined_call_operand.vmem [shape: f32[800,256], index: 0, kind: input, shape index: {}]
  %s1 = inlined_call_operand.vmem [shape: f32[256,32], index: 1, kind: input, shape index: {}]
  %s2 = inlined_call_operand.vmem [shape: f32[1,32], index: 2, kind: input, shape index: {}]
  %s3 = inlined_call_operand.vmem [shape: f32[512,64], index: 3, kind: input, shape index: {}]
  %s4 = inlined_call_operand.vmem [shape: f32[1,64], index: 4, kind: input, shape index: {}]
  %s5 = inlined_call_operand.vmem [shape: f32[576,32], index: 5, kind: input, shape index: {}]
  %s6 = inlined_call_operand.vmem [shape: f32[1,32], index: 6, kind: input, shape index: {}]
  %s7 = inlined_call_operand.vmem [shape: f32[2,67,32], index: 7, kind: output, shape index: {}]
  %s8 = sld [smem:[#allocation0]]
  $region61: #{deepmind_forward.1} parent=0
    _
  %s10 = ssub.s32 1, %s8
  %s11 = scalar_select 0, %s10, %s8
  loop: start=0, step=1, limit=4
  $region2: #{deepmind_forward.1} parent=0 // loop_pre_header
    _
  $region3: #{deepmind_forward.1} parent=0 // loop_header
    %s13 = sphi 0, %s17
    %p14 = scmp.ge.s32.totalorder %s13, 4
    %s23 = sphi 0, %s25
    %s26 = sphi 0, %s23
    %s27 = sphi 0, %s26
    %s43 = sphi 0, %s27
    %s47 = sphi 0, %s47
    %s49 = sphi 0, %s47
    %s50 = sphi 0, %s49
    %s64 = sphi 0, %s50
    %s68 = sphi 0, %s68
    %s70 = sphi 0, %s68
    %s71 = sphi 0, %s70
    %s85 = sphi 0, %s71
    %s89 = sphi 0, %s89
    %s91 = sphi 0, %s89
    %s92 = sphi 0, %s91
    %s106 = sphi 0, %s92
    %s110 = sphi 0, %s110
    %s112 = sphi 0, %s110
    %s113 = sphi 0, %s112
    %s127 = sphi 0, %s113
    %s131 = sphi 0, %s131
    %s133 = sphi 0, %s131
    %s134 = sphi 0, %s133
    %s148 = sphi 0, %s134
    %s152 = sphi 0, %s152
    %s154 = sphi 0, %s152
    %s155 = sphi 0, %s154
    %s169 = sphi 0, %s155
    %s175 = sphi 0, %s177
    %s178 = sphi 0, %s175
    %s179 = sphi 0, %s178
    %s195 = sphi 0, %s179
  $region4: #{deepmind_forward.1} parent=0 // loop_header_branch
    %16 = sbr.rel (%p14) target = $region8
  $region5: #{deepmind_forward.1} parent=0 // loop_body
    %s18 = ssub.s32 %s13, 1
    %s19 = ssub.s32 %s13, 2
    %s20 = sadd.s32 %s13, 1
    %s21 = ssub.s32 %s13, %s20
    %p22 = scmp.eq.s32.totalorder %s21, 0
    %s24 = sadd.s32 %s23, 1
    %s25 = scalar_select %p22, %s23, %s24
    %p28 = pneg %p22
    %p29 = scmp.eq.s32.totalorder %s13, 1
    %p30 = por %p28, %p29
    %p31 = scmp.ne.s32.totalorder %s23, %s26
    %p32 = scmp.eq.s32.totalorder %s13, 0
    %p33 = por %p31, %p32
    %p34 = scmp.ne.s32.totalorder %s23, %s26
    %p35 = scmp.eq.s32.totalorder %s18, 1
    %p36 = por %p34, %p35
    %p37 = scmp.ne.s32.totalorder %s26, %s27
    %p38 = scmp.eq.s32.totalorder %s18, 0
    %p39 = por %p37, %p38
    %p40 = scmp.ne.s32.totalorder %s26, %s27
    %p41 = scmp.eq.s32.totalorder %s19, 1
    %p42 = por %p40, %p41
    %p44 = scmp.ne.s32.totalorder %s27, %s43
    %p45 = scmp.eq.s32.totalorder %s19, 0
    %p46 = por %p44, %p45
    %s48 = sadd.s32 %s47, 1
    %p51 = scmp.eq.s32.totalorder %s13, 1
    %p52 = scmp.ne.s32.totalorder %s47, %s49
    %p53 = scmp.eq.s32.totalorder %s13, 0
    %p54 = por %p52, %p53
    %p55 = scmp.ne.s32.totalorder %s47, %s49
    %p56 = scmp.eq.s32.totalorder %s18, 1
    %p57 = por %p55, %p56
    %p58 = scmp.ne.s32.totalorder %s49, %s50
    %p59 = scmp.eq.s32.totalorder %s18, 0
    %p60 = por %p58, %p59
    %p61 = scmp.ne.s32.totalorder %s49, %s50
    %p62 = scmp.eq.s32.totalorder %s19, 1
    %p63 = por %p61, %p62
    %p65 = scmp.ne.s32.totalorder %s50, %s64
    %p66 = scmp.eq.s32.totalorder %s19, 0
    %p67 = por %p65, %p66
    %s69 = sadd.s32 %s68, 1
    %p72 = scmp.eq.s32.totalorder %s13, 1
    %p73 = scmp.ne.s32.totalorder %s68, %s70
    %p74 = scmp.eq.s32.totalorder %s13, 0
    %p75 = por %p73, %p74
    %p76 = scmp.ne.s32.totalorder %s68, %s70
    %p77 = scmp.eq.s32.totalorder %s18, 1
    %p78 = por %p76, %p77
    %p79 = scmp.ne.s32.totalorder %s70, %s71
    %p80 = scmp.eq.s32.totalorder %s18, 0
    %p81 = por %p79, %p80
    %p82 = scmp.ne.s32.totalorder %s70, %s71
    %p83 = scmp.eq.s32.totalorder %s19, 1
    %p84 = por %p82, %p83
    %p86 = scmp.ne.s32.totalorder %s71, %s85
    %p87 = scmp.eq.s32.totalorder %s19, 0
    %p88 = por %p86, %p87
    %s90 = sadd.s32 %s89, 1
    %p93 = scmp.eq.s32.totalorder %s13, 1
    %p94 = scmp.ne.s32.totalorder %s89, %s91
    %p95 = scmp.eq.s32.totalorder %s13, 0
    %p96 = por %p94, %p95
    %p97 = scmp.ne.s32.totalorder %s89, %s91
    %p98 = scmp.eq.s32.totalorder %s18, 1
    %p99 = por %p97, %p98
    %p100 = scmp.ne.s32.totalorder %s91, %s92
    %p101 = scmp.eq.s32.totalorder %s18, 0
    %p102 = por %p100, %p101
    %p103 = scmp.ne.s32.totalorder %s91, %s92
    %p104 = scmp.eq.s32.totalorder %s19, 1
    %p105 = por %p103, %p104
    %p107 = scmp.ne.s32.totalorder %s92, %s106
    %p108 = scmp.eq.s32.totalorder %s19, 0
    %p109 = por %p107, %p108
    %s111 = sadd.s32 %s110, 1
    %p114 = scmp.eq.s32.totalorder %s13, 1
    %p115 = scmp.ne.s32.totalorder %s110, %s112
    %p116 = scmp.eq.s32.totalorder %s13, 0
    %p117 = por %p115, %p116
    %p118 = scmp.ne.s32.totalorder %s110, %s112
    %p119 = scmp.eq.s32.totalorder %s18, 1
    %p120 = por %p118, %p119
    %p121 = scmp.ne.s32.totalorder %s112, %s113
    %p122 = scmp.eq.s32.totalorder %s18, 0
    %p123 = por %p121, %p122
    %p124 = scmp.ne.s32.totalorder %s112, %s113
    %p125 = scmp.eq.s32.totalorder %s19, 1
    %p126 = por %p124, %p125
    %p128 = scmp.ne.s32.totalorder %s113, %s127
    %p129 = scmp.eq.s32.totalorder %s19, 0
    %p130 = por %p128, %p129
    %s132 = sadd.s32 %s131, 1
    %p135 = scmp.eq.s32.totalorder %s13, 1
    %p136 = scmp.ne.s32.totalorder %s131, %s133
    %p137 = scmp.eq.s32.totalorder %s13, 0
    %p138 = por %p136, %p137
    %p139 = scmp.ne.s32.totalorder %s131, %s133
    %p140 = scmp.eq.s32.totalorder %s18, 1
    %p141 = por %p139, %p140
    %p142 = scmp.ne.s32.totalorder %s133, %s134
    %p143 = scmp.eq.s32.totalorder %s18, 0
    %p144 = por %p142, %p143
    %p145 = scmp.ne.s32.totalorder %s133, %s134
    %p146 = scmp.eq.s32.totalorder %s19, 1
    %p147 = por %p145, %p146
    %p149 = scmp.ne.s32.totalorder %s134, %s148
    %p150 = scmp.eq.s32.totalorder %s19, 0
    %p151 = por %p149, %p150
    %s153 = sadd.s32 %s152, 1
    %p156 = scmp.eq.s32.totalorder %s13, 1
    %p157 = scmp.ne.s32.totalorder %s152, %s154
    %p158 = scmp.eq.s32.totalorder %s13, 0
    %p159 = por %p157, %p158
    %p160 = scmp.ne.s32.totalorder %s152, %s154
    %p161 = scmp.eq.s32.totalorder %s18, 1
    %p162 = por %p160, %p161
    %p163 = scmp.ne.s32.totalorder %s154, %s155
    %p164 = scmp.eq.s32.totalorder %s18, 0
    %p165 = por %p163, %p164
    %p166 = scmp.ne.s32.totalorder %s154, %s155
    %p167 = scmp.eq.s32.totalorder %s19, 1
    %p168 = por %p166, %p167
    %p170 = scmp.ne.s32.totalorder %s155, %s169
    %p171 = scmp.eq.s32.totalorder %s19, 0
    %p172 = por %p170, %p171
    %s173 = ssub.s32 %s13, %s20
    %p174 = scmp.eq.s32.totalorder %s173, 0
    %s176 = sadd.s32 %s175, 1
    %s177 = scalar_select %p174, %s175, %s176
    %p180 = pneg %p174
    %p181 = scmp.eq.s32.totalorder %s13, 1
    %p182 = por %p180, %p181
    %p183 = scmp.ne.s32.totalorder %s175, %s178
    %p184 = scmp.eq.s32.totalorder %s13, 0
    %p185 = por %p183, %p184
    %p186 = scmp.ne.s32.totalorder %s175, %s178
    %p187 = scmp.eq.s32.totalorder %s18, 1
    %p188 = por %p186, %p187
    %p189 = scmp.ne.s32.totalorder %s178, %s179
    %p190 = scmp.eq.s32.totalorder %s18, 0
    %p191 = por %p189, %p190
    %p192 = scmp.ne.s32.totalorder %s178, %s179
    %p193 = scmp.eq.s32.totalorder %s19, 1
    %p194 = por %p192, %p193
    %p196 = scmp.ne.s32.totalorder %s179, %s195
    %p197 = scmp.eq.s32.totalorder %s19, 0
    %p198 = por %p196, %p197
    %p199 = scmp.le.s32.totalorder 1, %s13
    %p200 = scmp.lt.s32.totalorder %s13, 3
    %p201 = pnand %p199, %p200
    %p202 = pneg %p201
    // Predicated region
    $region9: #{deepmind_forward.1} parent=5 // pred_check
      _
    $region10: #{deepmind_forward.1} parent=5 // pred_check_branch
      %204 = sbr.rel (%p201) target = $region12
    $region11: #{deepmind_forward.1} parent=5 // pred_region
      %s205 = ssub.s32 %s13, 1
      // Predicated region
      $region13: #{deepmind_forward.1} parent=11 // pred_check
        %p206 = pneg %p60
      $region14: #{deepmind_forward.1} parent=11 // pred_check_branch
        %208 = sbr.rel (%p206) target = $region16
      $region15: #{deepmind_forward.1} parent=11 // pred_region
        _
      $region16: #{deepmind_forward.1} parent=11 // pred_fallthru
        _
      // Predicated region
      $region17: #{deepmind_forward.1} parent=11 // pred_check
        %p209 = pneg %p81
      $region18: #{deepmind_forward.1} parent=11 // pred_check_branch
        %211 = sbr.rel (%p209) target = $region20
      $region19: #{deepmind_forward.1} parent=11 // pred_region
        _
      $region20: #{deepmind_forward.1} parent=11 // pred_fallthru
        _
      // Predicated region
      $region21: #{deepmind_forward.1} parent=11 // pred_check
        %p212 = pneg %p102
      $region22: #{deepmind_forward.1} parent=11 // pred_check_branch
        %214 = sbr.rel (%p212) target = $region24
      $region23: #{deepmind_forward.1} parent=11 // pred_region
        _
      $region24: #{deepmind_forward.1} parent=11 // pred_fallthru
        _
      // Predicated region
      $region25: #{deepmind_forward.1} parent=11 // pred_check
        %p215 = pneg %p123
      $region26: #{deepmind_forward.1} parent=11 // pred_check_branch
        %217 = sbr.rel (%p215) target = $region28
      $region27: #{deepmind_forward.1} parent=11 // pred_region
        _
      $region28: #{deepmind_forward.1} parent=11 // pred_fallthru
        _
      // Predicated region
      $region29: #{deepmind_forward.1} parent=11 // pred_check
        %p218 = pneg %p144
      $region30: #{deepmind_forward.1} parent=11 // pred_check_branch
        %220 = sbr.rel (%p218) target = $region32
      $region31: #{deepmind_forward.1} parent=11 // pred_region
        _
      $region32: #{deepmind_forward.1} parent=11 // pred_fallthru
        _
      // Predicated region
      $region33: #{deepmind_forward.1} parent=11 // pred_check
        %p221 = pneg %p165
      $region34: #{deepmind_forward.1} parent=11 // pred_check_branch
        %223 = sbr.rel (%p221) target = $region36
      $region35: #{deepmind_forward.1} parent=11 // pred_region
        _
      $region36: #{deepmind_forward.1} parent=11 // pred_fallthru
        _
    $region12: #{deepmind_forward.1} parent=5 // pred_fallthru
      _
    %p224 = scmp.lt.s32.totalorder %s13, 2
    // Predicated region
    $region37: #{deepmind_forward.1} parent=5 // pred_check
      %p225 = pneg %p224
    $region38: #{deepmind_forward.1} parent=5 // pred_check_branch
      %227 = sbr.rel (%p225) target = $region40
    $region39: #{deepmind_forward.1} parent=5 // pred_region
      // Predicated region
      $region41: #{deepmind_forward.1} parent=39 // pred_check
        %p228 = pneg %p33
      $region42: #{deepmind_forward.1} parent=39 // pred_check_branch
        %230 = sbr.rel (%p228) target = $region44
      $region43: #{deepmind_forward.1} parent=39 // pred_region
        %s231 = smul.u32 50, %s13
        %p232 = scmp.lt.s32.totalorder %s231, 99
        %s233 = scalar_select %p232, %s231, 99
        %s234 = smul.addr %s233, 2
        %s235 = smul.addr %s234, 8
        %s236 = scalar_lea.vmem %s0, %s235
        %s237 = smul.u32 50, %s13
      $region44: #{deepmind_forward.1} parent=39 // pred_fallthru
        _
    $region40: #{deepmind_forward.1} parent=5 // pred_fallthru
      _
    %p238 = scmp.le.s32.totalorder 1, %s13
    %p239 = scmp.lt.s32.totalorder %s13, 3
    %p240 = pnand %p238, %p239
    %p241 = pneg %p240
    // Predicated region
    $region45: #{deepmind_forward.1} parent=5 // pred_check
      _
    $region46: #{deepmind_forward.1} parent=5 // pred_check_branch
      %243 = sbr.rel (%p240) target = $region48
    $region47: #{deepmind_forward.1} parent=5 // pred_region
      %s244 = ssub.s32 %s13, 1
      %s245 = smul.u32 50, %s18
      %p246 = scmp.lt.s32.totalorder %s245, 99
      %s247 = scalar_select %p246, %s245, 99
      %s248 = smul.addr %s247, 2
      %s249 = smul.addr %s248, 8
      %s250 = scalar_lea.vmem %s0, %s249
      %p251 = pneg %p39
      %p252 = pneg %p36
      %p253 = pneg %p60
      %p254 = pneg %p57
      %p255 = pneg %p81
      %p256 = pneg %p78
      %p257 = pneg %p102
      %p258 = pneg %p99
      %p259 = pneg %p123
      %p260 = pneg %p120
      %p261 = pneg %p144
      %p262 = pneg %p141
      %p263 = pneg %p165
      %p264 = pneg %p162
      %p265 = pneg %p191
      %p266 = pneg %p188
      %p267 = scmp.lt.s32.totalorder %s18, 1
      %s268 = scalar_select %p267, %s18, 1
      %s269 = smul.addr %s268, 9
      %s270 = smul.addr %s269, 8
      %s271 = scalar_lea.vmem %s7, %s270
      %s272 = smul.u32 50, %s18
      %p273 = scmp.lt.s32.totalorder %s272, 99
      %s274 = scalar_select %p273, %s272, 99
      %s275 = smul.addr %s274, 2
      %s276 = smul.addr %s275, 8
      %s277 = scalar_lea.vmem %s0, %s276
      %s278 = smul.u32 50, %s18
      %p279 = scmp.lt.s32.totalorder %s18, 1
      %s280 = scalar_select %p279, %s18, 1
      %s281 = smul.addr %s280, 9
      %s282 = smul.addr %s281, 8
      %s283 = scalar_lea.vmem %s7, %s282
      %v284 = vld [vmem:[%s277] sm:$0xff]
      %v285 = vld [vmem:[%s277 + $0x8] sm:$0xff]
      %v286 = vld [vmem:[%s277 + $0x10] sm:$0xff]
      %v287 = vld [vmem:[%s277 + $0x18] sm:$0xff]
      %v288 = vld [vmem:[%s277 + $0x20] sm:$0xff]
      %v289 = vld [vmem:[%s277 + $0x28] sm:$0xff]
      %v290 = vld [vmem:[%s277 + $0x30] sm:$0xff]
      %v291 = vld [vmem:[%s277 + $0x38] sm:$0xff]
      %v292 = vld [vmem:[%s277 + $0x40] sm:$0xff]
      %v293 = vld [vmem:[%s277 + $0x48] sm:$0xff]
      %v294 = vld [vmem:[%s277 + $0x50] sm:$0xff]
      %v295 = vld [vmem:[%s277 + $0x58] sm:$0xff]
      %v296 = vld [vmem:[%s277 + $0x60] sm:$0xff]
      %v297 = vld [vmem:[%s277 + $0x68] sm:$0xff]
      %v298 = vld [vmem:[%s277 + $0x70] sm:$0xff]
      %v299 = vld [vmem:[%s277 + $0x78] sm:$0xff]
      %v300 = vld [vmem:[%s277 + $0x80] sm:$0xff]
      %v301 = vld [vmem:[%s277 + $0x88] sm:$0xff]
      %v302 = vld [vmem:[%s277 + $0x90] sm:$0xff]
      %v303 = vld [vmem:[%s277 + $0x98] sm:$0xff]
      %v304 = vld [vmem:[%s277 + $0xa0] sm:$0xff]
      %v305 = vld [vmem:[%s277 + $0xa8] sm:$0xff]
      %v306 = vld [vmem:[%s277 + $0xb0] sm:$0xff]
      %v307 = vld [vmem:[%s277 + $0xb8] sm:$0xff]
      %v308 = vld [vmem:[%s277 + $0xc0] sm:$0xf]
      %v309 = vld [vmem:[%s277 + $0xc8] sm:$0xf]
      %v310 = vld [vmem:[%s1] sm:$0xff]
      %v311 = vld [vmem:[%s1 + $0x8] sm:$0xff]
      %v312 = vld [vmem:[%s1 + $0x10] sm:$0xff]
      %v313 = vld [vmem:[%s1 + $0x18] sm:$0xff]
      %v314 = vld [vmem:[%s1 + $0x20] sm:$0xff]
      %v315 = vld [vmem:[%s1 + $0x28] sm:$0xff]
      %v316 = vld [vmem:[%s1 + $0x30] sm:$0xff]
      %v317 = vld [vmem:[%s1 + $0x38] sm:$0xff]
      %v318 = vld [vmem:[%s1 + $0x40] sm:$0xff]
      %v319 = vld [vmem:[%s1 + $0x48] sm:$0xff]
      %v320 = vld [vmem:[%s1 + $0x50] sm:$0xff]
      %v321 = vld [vmem:[%s1 + $0x58] sm:$0xff]
      %v322 = vld [vmem:[%s1 + $0x60] sm:$0xff]
      %v323 = vld [vmem:[%s1 + $0x68] sm:$0xff]
      %v324 = vld [vmem:[%s1 + $0x70] sm:$0xff]
      %v325 = vld [vmem:[%s1 + $0x78] sm:$0xff]
      %v326 = vld [vmem:[%s1 + $0x80] sm:$0xff]
      %v327 = vld [vmem:[%s1 + $0x88] sm:$0xff]
      %v328 = vld [vmem:[%s1 + $0x90] sm:$0xff]
      %v329 = vld [vmem:[%s1 + $0x98] sm:$0xff]
      %v330 = vld [vmem:[%s1 + $0xa0] sm:$0xff]
      %v331 = vld [vmem:[%s1 + $0xa8] sm:$0xff]
      %v332 = vld [vmem:[%s1 + $0xb0] sm:$0xff]
      %v333 = vld [vmem:[%s1 + $0xb8] sm:$0xff]
      %v334 = vld [vmem:[%s1 + $0xc0] sm:$0xff]
      %v335 = vld [vmem:[%s1 + $0xc8] sm:$0xff]
      %v336 = vld [vmem:[%s1 + $0xd0] sm:$0xff]
      %v337 = vld [vmem:[%s1 + $0xd8] sm:$0xff]
      %v338 = vld [vmem:[%s1 + $0xe0] sm:$0xff]
      %v339 = vld [vmem:[%s1 + $0xe8] sm:$0xff]
      %v340 = vld [vmem:[%s1 + $0xf0] sm:$0xff]
      %v341 = vld [vmem:[%s1 + $0xf8] sm:$0xff]
      %v342 = vld [vmem:[%s2] sm:$0x1]
      %v344 = vlaneseq
      %v345 = vshrl.u32 %v344, 7
      %v346 = vsub.s32 0, %v345
      %v347 = vrot.slane %v342, %v346
      %349 = vmatprep.subr.mxu0 0.0
      %350 = vmatpush1.msra.mxu0 %v310
      %351 = vmatprep.subr.mxu0 0.0
      %352 = vmatpush1.msra.mxu0 %v311
      %353 = vmatprep.subr.mxu0 0.0
      %354 = vmatpush1.msra.mxu0 %v312
      %355 = vmatprep.subr.mxu0 0.0
      %356 = vmatpush1.msra.mxu0 %v313
      %357 = vmatprep.subr.mxu0 0.0
      %358 = vmatpush1.msra.mxu0 %v314
      %359 = vmatprep.subr.mxu0 0.0
      %360 = vmatpush1.msra.mxu0 %v315
      %361 = vmatprep.subr.mxu0 0.0
      %362 = vmatpush1.msra.mxu0 %v316
      %363 = vmatprep.subr.mxu0 0.0
      %364 = vmatpush1.msra.mxu0 %v317
      %365 = vmatprep.subr.mxu0 0.0
      %366 = vmatpush1.msra.mxu0 %v318
      %367 = vmatprep.subr.mxu0 0.0
      %368 = vmatpush1.msra.mxu0 %v319
      %369 = vmatprep.subr.mxu0 0.0
      %370 = vmatpush1.msra.mxu0 %v320
      %371 = vmatprep.subr.mxu0 0.0
      %372 = vmatpush1.msra.mxu0 %v321
      %373 = vmatprep.subr.mxu0 0.0
      %374 = vmatpush1.msra.mxu0 %v322
      %375 = vmatprep.subr.mxu0 0.0
      %376 = vmatpush1.msra.mxu0 %v323
      %377 = vmatprep.subr.mxu0 0.0
      %378 = vmatpush1.msra.mxu0 %v324
      %379 = vmatprep.subr.mxu0 0.0
      %380 = vmatpush1.msra.mxu0 %v325
      %381 = vmatprep.subr.mxu0 0.0
      %382 = vmatpush1.msra.mxu0 %v326
      %383 = vmatprep.subr.mxu0 0.0
      %384 = vmatpush1.msra.mxu0 %v327
      %385 = vmatprep.subr.mxu0 0.0
      %386 = vmatpush1.msra.mxu0 %v328
      %387 = vmatprep.subr.mxu0 0.0
      %388 = vmatpush1.msra.mxu0 %v329
      %389 = vmatprep.subr.mxu0 0.0
      %390 = vmatpush1.msra.mxu0 %v330
      %391 = vmatprep.subr.mxu0 0.0
      %392 = vmatpush1.msra.mxu0 %v331
      %393 = vmatprep.subr.mxu0 0.0
      %394 = vmatpush1.msra.mxu0 %v332
      %395 = vmatprep.subr.mxu0 0.0
      %396 = vmatpush1.msra.mxu0 %v333
      %397 = vmatprep.subr.mxu0 0.0
      %398 = vmatpush1.msra.mxu0 %v334
      %399 = vmatprep.subr.mxu0 0.0
      %400 = vmatpush1.msra.mxu0 %v335
      %401 = vmatprep.subr.mxu0 0.0
      %402 = vmatpush1.msra.mxu0 %v336
      %403 = vmatprep.subr.mxu0 0.0
      %404 = vmatpush1.msra.mxu0 %v337
      %405 = vmatprep.subr.mxu0 0.0
      %406 = vmatpush1.msra.mxu0 %v338
      %407 = vmatprep.subr.mxu0 0.0
      %408 = vmatpush1.msra.mxu0 %v339
      %409 = vmatprep.subr.mxu0 0.0
      %410 = vmatpush1.msra.mxu0 %v340
      %411 = vmatprep.subr.mxu0 0.0
      %412 = vmatpush1.msra.mxu0 %v341
      %413 = vmatprep.mubr.f32.mxu0 %v285
      %414 = vmatmul.mubr.f32.gmra.mrb[0].mxu0 %v284
      %v415 = vpop.f32.mrb[0].mxu0
      %v416 = vadd.f32 %v347, %v415
      %v417 = vpop.f32.mrb[0].mxu0
      %418 = vmatprep.mubr.f32.mxu0 %v287
      %419 = vmatmul.mubr.f32.gmra.mrb[0].mxu0 %v286
      %v420 = vpop.f32.mrb[0].mxu0
      %v421 = vadd.f32 %v347, %v420
      %v422 = vpop.f32.mrb[0].mxu0
      %423 = vmatprep.mubr.f32.mxu0 %v289
      %424 = vmatmul.mubr.f32.gmra.mrb[0].mxu0 %v288
      %v425 = vpop.f32.mrb[0].mxu0
      %v426 = vadd.f32 %v347, %v425
      %v427 = vpop.f32.mrb[0].mxu0
      %428 = vmatprep.mubr.f32.mxu0 %v291
      %429 = vmatmul.mubr.f32.gmra.mrb[0].mxu0 %v290
      %v430 = vpop.f32.mrb[0].mxu0
      %v431 = vadd.f32 %v347, %v430
      %v432 = vpop.f32.mrb[0].mxu0
      %433 = vmatprep.mubr.f32.mxu0 %v293
      %434 = vmatmul.mubr.f32.gmra.mrb[0].mxu0 %v292
      %v435 = vpop.f32.mrb[0].mxu0
      %v436 = vadd.f32 %v347, %v435
      %v437 = vpop.f32.mrb[0].mxu0
      %438 = vmatprep.mubr.f32.mxu0 %v295
      %439 = vmatmul.mubr.f32.gmra.mrb[0].mxu0 %v294
      %v440 = vpop.f32.mrb[0].mxu0
      %v441 = vadd.f32 %v347, %v440
      %v442 = vpop.f32.mrb[0].mxu0
      %443 = vmatprep.mubr.f32.mxu0 %v297
      %444 = vmatmul.mubr.f32.gmra.mrb[0].mxu0 %v296
      %v445 = vpop.f32.mrb[0].mxu0
      %v446 = vadd.f32 %v347, %v445
      %v447 = vpop.f32.mrb[0].mxu0
      %448 = vmatprep.mubr.f32.mxu0 %v299
      %449 = vmatmul.mubr.f32.gmra.mrb[0].mxu0 %v298
      %v450 = vpop.f32.mrb[0].mxu0
      %v451 = vadd.f32 %v347, %v450
      %v452 = vpop.f32.mrb[0].mxu0
      %453 = vmatprep.mubr.f32.mxu0 %v301
      %454 = vmatmul.mubr.f32.gmra.mrb[0].mxu0 %v300
      %v455 = vpop.f32.mrb[0].mxu0
      %v456 = vadd.f32 %v347, %v455
      %v457 = vpop.f32.mrb[0].mxu0
      %458 = vmatprep.mubr.f32.mxu0 %v303
      %459 = vmatmul.mubr.f32.gmra.mrb[0].mxu0 %v302
      %v460 = vpop.f32.mrb[0].mxu0
      %v461 = vadd.f32 %v347, %v460
      %v462 = vpop.f32.mrb[0].mxu0
      %463 = vmatprep.mubr.f32.mxu0 %v305
      %464 = vmatmul.mubr.f32.gmra.mrb[0].mxu0 %v304
      %v465 = vpop.f32.mrb[0].mxu0
      %v466 = vadd.f32 %v347, %v465
      %v467 = vpop.f32.mrb[0].mxu0
      %468 = vmatprep.mubr.f32.mxu0 %v307
      %469 = vmatmul.mubr.f32.gmra.mrb[0].mxu0 %v306
      %v470 = vpop.f32.mrb[0].mxu0
      %v471 = vadd.f32 %v347, %v470
      %v472 = vpop.f32.mrb[0].mxu0
      %473 = vmatprep.mubr.f32.mxu0 %v309
      %474 = vmatmul.mubr.f32.gmra.mrb[0].mxu0 %v308
      %v475 = vpop.f32.mrb[0].mxu0
      %v476 = vadd.f32 %v347, %v475
      %v477 = vpop.f32.mrb[0].mxu0
      %478 = vdwg.mxu0
      %v479 = vmax.f32 %v416, 0.0
      %v480 = vmax.f32 %v421, 0.0
      %v481 = vmax.f32 %v426, 0.0
      %v482 = vmax.f32 %v431, 0.0
      %v483 = vmax.f32 %v436, 0.0
      %v484 = vmax.f32 %v441, 0.0
      %v485 = vmax.f32 %v446, 0.0
      %v486 = vmax.f32 %v451, 0.0
      %v487 = vmax.f32 %v456, 0.0
      %v488 = vmax.f32 %v461, 0.0
      %v489 = vmax.f32 %v466, 0.0
      %v490 = vmax.f32 %v471, 0.0
      %v491 = vmax.f32 %v476, 0.0
      %v492 = vld [vmem:[%s277 + $0xc0] sm:$0xf0]
      %v493 = vld [vmem:[%s277 + $0xc8] sm:$0xf0]
      %v494 = vld [vmem:[%s277 + $0xd0] sm:$0xff]
      %v495 = vld [vmem:[%s277 + $0xd8] sm:$0xff]
      %v496 = vld [vmem:[%s277 + $0xe0] sm:$0xff]
      %v497 = vld [vmem:[%s277 + $0xe8] sm:$0xff]
      %v498 = vld [vmem:[%s277 + $0xf0] sm:$0xff]
      %v499 = vld [vmem:[%s277 + $0xf8] sm:$0xff]
      %v500 = vld [vmem:[%s277 + $0x100] sm:$0xff]
      %v501 = vld [vmem:[%s277 + $0x108] sm:$0xff]
      %v502 = vld [vmem:[%s277 + $0x110] sm:$0xff]
      %v503 = vld [vmem:[%s277 + $0x118] sm:$0xff]
      %v504 = vld [vmem:[%s277 + $0x120] sm:$0xff]
      %v505 = vld [vmem:[%s277 + $0x128] sm:$0xff]
      %v506 = vld [vmem:[%s277 + $0x130] sm:$0xff]
      %v507 = vld [vmem:[%s277 + $0x138] sm:$0xff]
      %v508 = vld [vmem:[%s277 + $0x140] sm:$0xff]
      %v509 = vld [vmem:[%s277 + $0x148] sm:$0xff]
      %v510 = vld [vmem:[%s277 + $0x150] sm:$0xff]
      %v511 = vld [vmem:[%s277 + $0x158] sm:$0xff]
      %v512 = vld [vmem:[%s277 + $0x160] sm:$0xff]
      %v513 = vld [vmem:[%s277 + $0x168] sm:$0xff]
      %v514 = vld [vmem:[%s277 + $0x170] sm:$0xff]
      %v515 = vld [vmem:[%s277 + $0x178] sm:$0xff]
      %v516 = vld [vmem:[%s277 + $0x180] sm:$0xff]
      %v517 = vld [vmem:[%s277 + $0x188] sm:$0xff]
      %vm544 = vcmask 1043456
      %v545 = vrot.slane %v492, 4
      %v546 = vrot.slane %v494, 4
      %v547 = vsel %vm544, %v545, %v546
      %v548 = vrot.slane %v493, 4
      %v549 = vrot.slane %v495, 4
      %v550 = vsel %vm544, %v548, %v549
      %v551 = vrot.slane %v496, 4
      %v552 = vsel %vm544, %v546, %v551
      %v553 = vrot.slane %v497, 4
      %v554 = vsel %vm544, %v549, %v553
      %v555 = vrot.slane %v498, 4
      %v556 = vsel %vm544, %v551, %v555
      %v557 = vrot.slane %v499, 4
      %v558 = vsel %vm544, %v553, %v557
      %v559 = vrot.slane %v500, 4
      %v560 = vsel %vm544, %v555, %v559
      %v561 = vrot.slane %v501, 4
      %v562 = vsel %vm544, %v557, %v561
      %v563 = vrot.slane %v502, 4
      %v564 = vsel %vm544, %v559, %v563
      %v565 = vrot.slane %v503, 4
      %v566 = vsel %vm544, %v561, %v565
      %v567 = vrot.slane %v504, 4
      %v568 = vsel %vm544, %v563, %v567
      %v569 = vrot.slane %v505, 4
      %v570 = vsel %vm544, %v565, %v569
      %v571 = vrot.slane %v506, 4
      %v572 = vsel %vm544, %v567, %v571
      %v573 = vrot.slane %v507, 4
      %v574 = vsel %vm544, %v569, %v573
      %v575 = vrot.slane %v508, 4
      %v576 = vsel %vm544, %v571, %v575
      %v577 = vrot.slane %v509, 4
      %v578 = vsel %vm544, %v573, %v577
      %v579 = vrot.slane %v510, 4
      %v580 = vsel %vm544, %v575, %v579
      %v581 = vrot.slane %v511, 4
      %v582 = vsel %vm544, %v577, %v581
      %v583 = vrot.slane %v512, 4
      %v584 = vsel %vm544, %v579, %v583
      %v585 = vrot.slane %v513, 4
      %v586 = vsel %vm544, %v581, %v585
      %v587 = vrot.slane %v514, 4
      %v588 = vsel %vm544, %v583, %v587
      %v589 = vrot.slane %v515, 4
      %v590 = vsel %vm544, %v585, %v589
      %v591 = vrot.slane %v516, 4
      %v592 = vsel %vm544, %v587, %v591
      %v593 = vrot.slane %v517, 4
      %v594 = vsel %vm544, %v589, %v593
      %621 = vmatprep.subr.mxu0 0.0
      %622 = vmatpush1.msra.mxu0 %v310
      %623 = vmatprep.subr.mxu0 0.0
      %624 = vmatpush1.msra.mxu0 %v311
      %625 = vmatprep.subr.mxu0 0.0
      %626 = vmatpush1.msra.mxu0 %v312
      %627 = vmatprep.subr.mxu0 0.0
      %628 = vmatpush1.msra.mxu0 %v313
      %629 = vmatprep.subr.mxu0 0.0
      %630 = vmatpush1.msra.mxu0 %v314
      %631 = vmatprep.subr.mxu0 0.0
      %632 = vmatpush1.msra.mxu0 %v315
      %633 = vmatprep.subr.mxu0 0.0
      %634 = vmatpush1.msra.mxu0 %v316
      %635 = vmatprep.subr.mxu0 0.0
      %636 = vmatpush1.msra.mxu0 %v317
      %637 = vmatprep.subr.mxu0 0.0
      %638 = vmatpush1.msra.mxu0 %v318
      %639 = vmatprep.subr.mxu0 0.0
      %640 = vmatpush1.msra.mxu0 %v319
      %641 = vmatprep.subr.mxu0 0.0
      %642 = vmatpush1.msra.mxu0 %v320
      %643 = vmatprep.subr.mxu0 0.0
      %644 = vmatpush1.msra.mxu0 %v321
      %645 = vmatprep.subr.mxu0 0.0
      %646 = vmatpush1.msra.mxu0 %v322
      %647 = vmatprep.subr.mxu0 0.0
      %648 = vmatpush1.msra.mxu0 %v323
      %649 = vmatprep.subr.mxu0 0.0
      %650 = vmatpush1.msra.mxu0 %v324
      %651 = vmatprep.subr.mxu0 0.0
      %652 = vmatpush1.msra.mxu0 %v325
      %653 = vmatprep.subr.mxu0 0.0
      %654 = vmatpush1.msra.mxu0 %v326
      %655 = vmatprep.subr.mxu0 0.0
      %656 = vmatpush1.msra.mxu0 %v327
      %657 = vmatprep.subr.mxu0 0.0
      %658 = vmatpush1.msra.mxu0 %v328
      %659 = vmatprep.subr.mxu0 0.0
      %660 = vmatpush1.msra.mxu0 %v329
      %661 = vmatprep.subr.mxu0 0.0
      %662 = vmatpush1.msra.mxu0 %v330
      %663 = vmatprep.subr.mxu0 0.0
      %664 = vmatpush1.msra.mxu0 %v331
      %665 = vmatprep.subr.mxu0 0.0
      %666 = vmatpush1.msra.mxu0 %v332
      %667 = vmatprep.subr.mxu0 0.0
      %668 = vmatpush1.msra.mxu0 %v333
      %669 = vmatprep.subr.mxu0 0.0
      %670 = vmatpush1.msra.mxu0 %v334
      %671 = vmatprep.subr.mxu0 0.0
      %672 = vmatpush1.msra.mxu0 %v335
      %673 = vmatprep.subr.mxu0 0.0
      %674 = vmatpush1.msra.mxu0 %v336
      %675 = vmatprep.subr.mxu0 0.0
      %676 = vmatpush1.msra.mxu0 %v337
      %677 = vmatprep.subr.mxu0 0.0
      %678 = vmatpush1.msra.mxu0 %v338
      %679 = vmatprep.subr.mxu0 0.0
      %680 = vmatpush1.msra.mxu0 %v339
      %681 = vmatprep.subr.mxu0 0.0
      %682 = vmatpush1.msra.mxu0 %v340
      %683 = vmatprep.subr.mxu0 0.0
      %684 = vmatpush1.msra.mxu0 %v341
      %685 = vmatprep.mubr.f32.mxu0 %v550
      %686 = vmatmul.mubr.f32.gmra.mrb[0].mxu0 %v547
      %v687 = vpop.f32.mrb[0].mxu0
      %v688 = vadd.f32 %v347, %v687
      %v689 = vpop.f32.mrb[0].mxu0
      %690 = vmatprep.mubr.f32.mxu0 %v554
      %691 = vmatmul.mubr.f32.gmra.mrb[0].mxu0 %v552
      %v692 = vpop.f32.mrb[0].mxu0
      %v693 = vadd.f32 %v347, %v692
      %v694 = vpop.f32.mrb[0].mxu0
      %695 = vmatprep.mubr.f32.mxu0 %v558
      %696 = vmatmul.mubr.f32.gmra.mrb[0].mxu0 %v556
      %v697 = vpop.f32.mrb[0].mxu0
      %v698 = vadd.f32 %v347, %v697
      %v699 = vpop.f32.mrb[0].mxu0
      %700 = vmatprep.mubr.f32.mxu0 %v562
      %701 = vmatmul.mubr.f32.gmra.mrb[0].mxu0 %v560
      %v702 = vpop.f32.mrb[0].mxu0
      %v703 = vadd.f32 %v347, %v702
      %v704 = vpop.f32.mrb[0].mxu0
      %705 = vmatprep.mubr.f32.mxu0 %v566
      %706 = vmatmul.mubr.f32.gmra.mrb[0].mxu0 %v564
      %v707 = vpop.f32.mrb[0].mxu0
      %v708 = vadd.f32 %v347, %v707
      %v709 = vpop.f32.mrb[0].mxu0
      %710 = vmatprep.mubr.f32.mxu0 %v570
      %711 = vmatmul.mubr.f32.gmra.mrb[0].mxu0 %v568
      %v712 = vpop.f32.mrb[0].mxu0
      %v713 = vadd.f32 %v347, %v712
      %v714 = vpop.f32.mrb[0].mxu0
      %715 = vmatprep.mubr.f32.mxu0 %v574
      %716 = vmatmul.mubr.f32.gmra.mrb[0].mxu0 %v572
      %v717 = vpop.f32.mrb[0].mxu0
      %v718 = vadd.f32 %v347, %v717
      %v719 = vpop.f32.mrb[0].mxu0
      %720 = vmatprep.mubr.f32.mxu0 %v578
      %721 = vmatmul.mubr.f32.gmra.mrb[0].mxu0 %v576
      %v722 = vpop.f32.mrb[0].mxu0
      %v723 = vadd.f32 %v347, %v722
      %v724 = vpop.f32.mrb[0].mxu0
      %725 = vmatprep.mubr.f32.mxu0 %v582
      %726 = vmatmul.mubr.f32.gmra.mrb[0].mxu0 %v580
      %v727 = vpop.f32.mrb[0].mxu0
      %v728 = vadd.f32 %v347, %v727
      %v729 = vpop.f32.mrb[0].mxu0
      %730 = vmatprep.mubr.f32.mxu0 %v586
      %731 = vmatmul.mubr.f32.gmra.mrb[0].mxu0 %v584
      %v732 = vpop.f32.mrb[0].mxu0
      %v733 = vadd.f32 %v347, %v732
      %v734 = vpop.f32.mrb[0].mxu0
      %735 = vmatprep.mubr.f32.mxu0 %v590
      %736 = vmatmul.mubr.f32.gmra.mrb[0].mxu0 %v588
      %v737 = vpop.f32.mrb[0].mxu0
      %v738 = vadd.f32 %v347, %v737
      %v739 = vpop.f32.mrb[0].mxu0
      %740 = vmatprep.mubr.f32.mxu0 %v594
      %741 = vmatmul.mubr.f32.gmra.mrb[0].mxu0 %v592
      %v742 = vpop.f32.mrb[0].mxu0
      %v743 = vadd.f32 %v347, %v742
      %v744 = vpop.f32.mrb[0].mxu0
      %745 = vmatprep.mubr.f32.mxu0 %v593
      %746 = vmatmul.mubr.f32.gmra.mrb[0].mxu0 %v591
      %v747 = vpop.f32.mrb[0].mxu0
      %v748 = vadd.f32 %v347, %v747
      %v749 = vpop.f32.mrb[0].mxu0
      %750 = vdwg.mxu0
      %v751 = vmax.f32 %v688, 0.0
      %v752 = vmax.f32 %v693, 0.0
      %v753 = vmax.f32 %v698, 0.0
      %v754 = vmax.f32 %v703, 0.0
      %v755 = vmax.f32 %v708, 0.0
      %v756 = vmax.f32 %v713, 0.0
      %v757 = vmax.f32 %v718, 0.0
      %v758 = vmax.f32 %v723, 0.0
      %v759 = vmax.f32 %v728, 0.0
      %v760 = vmax.f32 %v733, 0.0
      %v761 = vmax.f32 %v738, 0.0
      %v762 = vmax.f32 %v743, 0.0
      %v763 = vmax.f32 %v748, 0.0
      %v764 = vld [vmem:[%s277 + $0x190] sm:$0xff]
      %v765 = vld [vmem:[%s277 + $0x198] sm:$0xff]
      %v766 = vld [vmem:[%s277 + $0x1a0] sm:$0xff]
      %v767 = vld [vmem:[%s277 + $0x1a8] sm:$0xff]
      %v768 = vld [vmem:[%s277 + $0x1b0] sm:$0xff]
      %v769 = vld [vmem:[%s277 + $0x1b8] sm:$0xff]
      %v770 = vld [vmem:[%s277 + $0x1c0] sm:$0xff]
      %v771 = vld [vmem:[%s277 + $0x1c8] sm:$0xff]
      %v772 = vld [vmem:[%s277 + $0x1d0] sm:$0xff]
      %v773 = vld [vmem:[%s277 + $0x1d8] sm:$0xff]
      %v774 = vld [vmem:[%s277 + $0x1e0] sm:$0xff]
      %v775 = vld [vmem:[%s277 + $0x1e8] sm:$0xff]
      %v776 = vld [vmem:[%s277 + $0x1f0] sm:$0xff]
      %v777 = vld [vmem:[%s277 + $0x1f8] sm:$0xff]
      %v778 = vld [vmem:[%s277 + $0x200] sm:$0xff]
      %v779 = vld [vmem:[%s277 + $0x208] sm:$0xff]
      %v780 = vld [vmem:[%s277 + $0x210] sm:$0xff]
      %v781 = vld [vmem:[%s277 + $0x218] sm:$0xff]
      %v782 = vld [vmem:[%s277 + $0x220] sm:$0xff]
      %v783 = vld [vmem:[%s277 + $0x228] sm:$0xff]
      %v784 = vld [vmem:[%s277 + $0x230] sm:$0xff]
      %v785 = vld [vmem:[%s277 + $0x238] sm:$0xff]
      %v786 = vld [vmem:[%s277 + $0x240] sm:$0xff]
      %v787 = vld [vmem:[%s277 + $0x248] sm:$0xff]
      %v788 = vld [vmem:[%s277 + $0x250] sm:$0xf]
      %v789 = vld [vmem:[%s277 + $0x258] sm:$0xf]
      %790 = vmatprep.subr.mxu0 0.0
      %791 = vmatpush1.msra.mxu0 %v310
      %792 = vmatprep.subr.mxu0 0.0
      %793 = vmatpush1.msra.mxu0 %v311
      %794 = vmatprep.subr.mxu0 0.0
      %795 = vmatpush1.msra.mxu0 %v312
      %796 = vmatprep.subr.mxu0 0.0
      %797 = vmatpush1.msra.mxu0 %v313
      %798 = vmatprep.subr.mxu0 0.0
      %799 = vmatpush1.msra.mxu0 %v314
      %800 = vmatprep.subr.mxu0 0.0
      %801 = vmatpush1.msra.mxu0 %v315
      %802 = vmatprep.subr.mxu0 0.0
      %803 = vmatpush1.msra.mxu0 %v316
      %804 = vmatprep.subr.mxu0 0.0
      %805 = vmatpush1.msra.mxu0 %v317
      %806 = vmatprep.subr.mxu0 0.0
      %807 = vmatpush1.msra.mxu0 %v318
      %808 = vmatprep.subr.mxu0 0.0
      %809 = vmatpush1.msra.mxu0 %v319
      %810 = vmatprep.subr.mxu0 0.0
      %811 = vmatpush1.msra.mxu0 %v320
      %812 = vmatprep.subr.mxu0 0.0
      %813 = vmatpush1.msra.mxu0 %v321
      %814 = vmatprep.subr.mxu0 0.0
      %815 = vmatpush1.msra.mxu0 %v322
      %816 = vmatprep.subr.mxu0 0.0
      %817 = vmatpush1.msra.mxu0 %v323
      %818 = vmatprep.subr.mxu0 0.0
      %819 = vmatpush1.msra.mxu0 %v324
      %820 = vmatprep.subr.mxu0 0.0
      %821 = vmatpush1.msra.mxu0 %v325
      %822 = vmatprep.subr.mxu0 0.0
      %823 = vmatpush1.msra.mxu0 %v326
      %824 = vmatprep.subr.mxu0 0.0
      %825 = vmatpush1.msra.mxu0 %v327
      %826 = vmatprep.subr.mxu0 0.0
      %827 = vmatpush1.msra.mxu0 %v328
      %828 = vmatprep.subr.mxu0 0.0
      %829 = vmatpush1.msra.mxu0 %v329
      %830 = vmatprep.subr.mxu0 0.0
      %831 = vmatpush1.msra.mxu0 %v330
      %832 = vmatprep.subr.mxu0 0.0
      %833 = vmatpush1.msra.mxu0 %v331
      %834 = vmatprep.subr.mxu0 0.0
      %835 = vmatpush1.msra.mxu0 %v332
      %836 = vmatprep.subr.mxu0 0.0
      %837 = vmatpush1.msra.mxu0 %v333
      %838 = vmatprep.subr.mxu0 0.0
      %839 = vmatpush1.msra.mxu0 %v334
      %840 = vmatprep.subr.mxu0 0.0
      %841 = vmatpush1.msra.mxu0 %v335
      %842 = vmatprep.subr.mxu0 0.0
      %843 = vmatpush1.msra.mxu0 %v336
      %844 = vmatprep.subr.mxu0 0.0
      %845 = vmatpush1.msra.mxu0 %v337
      %846 = vmatprep.subr.mxu0 0.0
      %847 = vmatpush1.msra.mxu0 %v338
      %848 = vmatprep.subr.mxu0 0.0
      %849 = vmatpush1.msra.mxu0 %v339
      %850 = vmatprep.subr.mxu0 0.0
      %851 = vmatpush1.msra.mxu0 %v340
      %852 = vmatprep.subr.mxu0 0.0
      %853 = vmatpush1.msra.mxu0 %v341
      %854 = vmatprep.mubr.f32.mxu0 %v765
      %855 = vmatmul.mubr.f32.gmra.mrb[0].mxu0 %v764
      %v856 = vpop.f32.mrb[0].mxu0
      %v857 = vadd.f32 %v347, %v856
      %v858 = vpop.f32.mrb[0].mxu0
      %859 = vmatprep.mubr.f32.mxu0 %v767
      %860 = vmatmul.mubr.f32.gmra.mrb[0].mxu0 %v766
      %v861 = vpop.f32.mrb[0].mxu0
      %v862 = vadd.f32 %v347, %v861
      %v863 = vpop.f32.mrb[0].mxu0
      %864 = vmatprep.mubr.f32.mxu0 %v769
      %865 = vmatmul.mubr.f32.gmra.mrb[0].mxu0 %v768
      %v866 = vpop.f32.mrb[0].mxu0
      %v867 = vadd.f32 %v347, %v866
      %v868 = vpop.f32.mrb[0].mxu0
      %869 = vmatprep.mubr.f32.mxu0 %v771
      %870 = vmatmul.mubr.f32.gmra.mrb[0].mxu0 %v770
      %v871 = vpop.f32.mrb[0].mxu0
      %v872 = vadd.f32 %v347, %v871
      %v873 = vpop.f32.mrb[0].mxu0
      %874 = vmatprep.mubr.f32.mxu0 %v773
      %875 = vmatmul.mubr.f32.gmra.mrb[0].mxu0 %v772
      %v876 = vpop.f32.mrb[0].mxu0
      %v877 = vadd.f32 %v347, %v876
      %v878 = vpop.f32.mrb[0].mxu0
      %879 = vmatprep.mubr.f32.mxu0 %v775
      %880 = vmatmul.mubr.f32.gmra.mrb[0].mxu0 %v774
      %v881 = vpop.f32.mrb[0].mxu0
      %v882 = vadd.f32 %v347, %v881
      %v883 = vpop.f32.mrb[0].mxu0
      %884 = vmatprep.mubr.f32.mxu0 %v777
      %885 = vmatmul.mubr.f32.gmra.mrb[0].mxu0 %v776
      %v886 = vpop.f32.mrb[0].mxu0
      %v887 = vadd.f32 %v347, %v886
      %v888 = vpop.f32.mrb[0].mxu0
      %889 = vmatprep.mubr.f32.mxu0 %v779
      %890 = vmatmul.mubr.f32.gmra.mrb[0].mxu0 %v778
      %v891 = vpop.f32.mrb[0].mxu0
      %v892 = vadd.f32 %v347, %v891
      %v893 = vpop.f32.mrb[0].mxu0
      %894 = vmatprep.mubr.f32.mxu0 %v781
      %895 = vmatmul.mubr.f32.gmra.mrb[0].mxu0 %v780
      %v896 = vpop.f32.mrb[0].mxu0
      %v897 = vadd.f32 %v347, %v896
      %v898 = vpop.f32.mrb[0].mxu0
      %899 = vmatprep.mubr.f32.mxu0 %v783
      %900 = vmatmul.mubr.f32.gmra.mrb[0].mxu0 %v782
      %v901 = vpop.f32.mrb[0].mxu0
      %v902 = vadd.f32 %v347, %v901
      %v903 = vpop.f32.mrb[0].mxu0
      %904 = vmatprep.mubr.f32.mxu0 %v785
      %905 = vmatmul.mubr.f32.gmra.mrb[0].mxu0 %v784
      %v906 = vpop.f32.mrb[0].mxu0
      %v907 = vadd.f32 %v347, %v906
      %v908 = vpop.f32.mrb[0].mxu0
      %909 = vmatprep.mubr.f32.mxu0 %v787
      %910 = vmatmul.mubr.f32.gmra.mrb[0].mxu0 %v786
      %v911 = vpop.f32.mrb[0].mxu0
      %v912 = vadd.f32 %v347, %v911
      %v913 = vpop.f32.mrb[0].mxu0
      %914 = vmatprep.mubr.f32.mxu0 %v789
      %915 = vmatmul.mubr.f32.gmra.mrb[0].mxu0 %v788
      %v916 = vpop.f32.mrb[0].mxu0
      %v917 = vadd.f32 %v347, %v916
      %v918 = vpop.f32.mrb[0].mxu0
      %919 = vdwg.mxu0
      %v920 = vmax.f32 %v857, 0.0
      %v921 = vmax.f32 %v862, 0.0
      %v922 = vmax.f32 %v867, 0.0
      %v923 = vmax.f32 %v872, 0.0
      %v924 = vmax.f32 %v877, 0.0
      %v925 = vmax.f32 %v882, 0.0
      %v926 = vmax.f32 %v887, 0.0
      %v927 = vmax.f32 %v892, 0.0
      %v928 = vmax.f32 %v897, 0.0
      %v929 = vmax.f32 %v902, 0.0
      %v930 = vmax.f32 %v907, 0.0
      %v931 = vmax.f32 %v912, 0.0
      %v932 = vmax.f32 %v917, 0.0
      %v933 = vld [vmem:[%s277 + $0x250] sm:$0xf0]
      %v934 = vld [vmem:[%s277 + $0x258] sm:$0xf0]
      %v935 = vld [vmem:[%s277 + $0x260] sm:$0xff]
      %v936 = vld [vmem:[%s277 + $0x268] sm:$0xff]
      %v937 = vld [vmem:[%s277 + $0x270] sm:$0xff]
      %v938 = vld [vmem:[%s277 + $0x278] sm:$0xff]
      %v939 = vld [vmem:[%s277 + $0x280] sm:$0xff]
      %v940 = vld [vmem:[%s277 + $0x288] sm:$0xff]
      %v941 = vld [vmem:[%s277 + $0x290] sm:$0xff]
      %v942 = vld [vmem:[%s277 + $0x298] sm:$0xff]
      %v943 = vld [vmem:[%s277 + $0x2a0] sm:$0xff]
      %v944 = vld [vmem:[%s277 + $0x2a8] sm:$0xff]
      %v945 = vld [vmem:[%s277 + $0x2b0] sm:$0xff]
      %v946 = vld [vmem:[%s277 + $0x2b8] sm:$0xff]
      %v947 = vld [vmem:[%s277 + $0x2c0] sm:$0xff]
      %v948 = vld [vmem:[%s277 + $0x2c8] sm:$0xff]
      %v949 = vld [vmem:[%s277 + $0x2d0] sm:$0xff]
      %v950 = vld [vmem:[%s277 + $0x2d8] sm:$0xff]
      %v951 = vld [vmem:[%s277 + $0x2e0] sm:$0xff]
      %v952 = vld [vmem:[%s277 + $0x2e8] sm:$0xff]
      %v953 = vld [vmem:[%s277 + $0x2f0] sm:$0xff]
      %v954 = vld [vmem:[%s277 + $0x2f8] sm:$0xff]
      %v955 = vld [vmem:[%s277 + $0x300] sm:$0xff]
      %v956 = vld [vmem:[%s277 + $0x308] sm:$0xff]
      %v957 = vld [vmem:[%s277 + $0x310] sm:$0xff]
      %v958 = vld [vmem:[%s277 + $0x318] sm:$0xff]
      %v985 = vrot.slane %v933, 4
      %v986 = vrot.slane %v935, 4
      %v987 = vsel %vm544, %v985, %v986
      %v988 = vrot.slane %v934, 4
      %v989 = vrot.slane %v936, 4
      %v990 = vsel %vm544, %v988, %v989
      %v991 = vrot.slane %v937, 4
      %v992 = vsel %vm544, %v986, %v991
      %v993 = vrot.slane %v938, 4
      %v994 = vsel %vm544, %v989, %v993
      %v995 = vrot.slane %v939, 4
      %v996 = vsel %vm544, %v991, %v995
      %v997 = vrot.slane %v940, 4
      %v998 = vsel %vm544, %v993, %v997
      %v999 = vrot.slane %v941, 4
      %v1000 = vsel %vm544, %v995, %v999
      %v1001 = vrot.slane %v942, 4
      %v1002 = vsel %vm544, %v997, %v1001
      %v1003 = vrot.slane %v943, 4
      %v1004 = vsel %vm544, %v999, %v1003
      %v1005 = vrot.slane %v944, 4
      %v1006 = vsel %vm544, %v1001, %v1005
      %v1007 = vrot.slane %v945, 4
      %v1008 = vsel %vm544, %v1003, %v1007
      %v1009 = vrot.slane %v946, 4
      %v1010 = vsel %vm544, %v1005, %v1009
      %v1011 = vrot.slane %v947, 4
      %v1012 = vsel %vm544, %v1007, %v1011
      %v1013 = vrot.slane %v948, 4
      %v1014 = vsel %vm544, %v1009, %v1013
      %v1015 = vrot.slane %v949, 4
      %v1016 = vsel %vm544, %v1011, %v1015
      %v1017 = vrot.slane %v950, 4
      %v1018 = vsel %vm544, %v1013, %v1017
      %v1019 = vrot.slane %v951, 4
      %v1020 = vsel %vm544, %v1015, %v1019
      %v1021 = vrot.slane %v952, 4
      %v1022 = vsel %vm544, %v1017, %v1021
      %v1023 = vrot.slane %v953, 4
      %v1024 = vsel %vm544, %v1019, %v1023
      %v1025 = vrot.slane %v954, 4
      %v1026 = vsel %vm544, %v1021, %v1025
      %v1027 = vrot.slane %v955, 4
      %v1028 = vsel %vm544, %v1023, %v1027
      %v1029 = vrot.slane %v956, 4
      %v1030 = vsel %vm544, %v1025, %v1029
      %v1031 = vrot.slane %v957, 4
      %v1032 = vsel %vm544, %v1027, %v1031
      %v1033 = vrot.slane %v958, 4
      %v1034 = vsel %vm544, %v1029, %v1033
      %1061 = vmatprep.subr.mxu0 0.0
      %1062 = vmatpush1.msra.mxu0 %v310
      %1063 = vmatprep.subr.mxu0 0.0
      %1064 = vmatpush1.msra.mxu0 %v311
      %1065 = vmatprep.subr.mxu0 0.0
      %1066 = vmatpush1.msra.mxu0 %v312
      %1067 = vmatprep.subr.mxu0 0.0
      %1068 = vmatpush1.msra.mxu0 %v313
      %1069 = vmatprep.subr.mxu0 0.0
      %1070 = vmatpush1.msra.mxu0 %v314
      %1071 = vmatprep.subr.mxu0 0.0
      %1072 = vmatpush1.msra.mxu0 %v315
      %1073 = vmatprep.subr.mxu0 0.0
      %1074 = vmatpush1.msra.mxu0 %v316
      %1075 = vmatprep.subr.mxu0 0.0
      %1076 = vmatpush1.msra.mxu0 %v317
      %1077 = vmatprep.subr.mxu0 0.0
      %1078 = vmatpush1.msra.mxu0 %v318
      %1079 = vmatprep.subr.mxu0 0.0
      %1080 = vmatpush1.msra.mxu0 %v319
      %1081 = vmatprep.subr.mxu0 0.0
      %1082 = vmatpush1.msra.mxu0 %v320
      %1083 = vmatprep.subr.mxu0 0.0
      %1084 = vmatpush1.msra.mxu0 %v321
      %1085 = vmatprep.subr.mxu0 0.0
      %1086 = vmatpush1.msra.mxu0 %v322
      %1087 = vmatprep.subr.mxu0 0.0
      %1088 = vmatpush1.msra.mxu0 %v323
      %1089 = vmatprep.subr.mxu0 0.0
      %1090 = vmatpush1.msra.mxu0 %v324
      %1091 = vmatprep.subr.mxu0 0.0
      %1092 = vmatpush1.msra.mxu0 %v325
      %1093 = vmatprep.subr.mxu0 0.0
      %1094 = vmatpush1.msra.mxu0 %v326
      %1095 = vmatprep.subr.mxu0 0.0
      %1096 = vmatpush1.msra.mxu0 %v327
      %1097 = vmatprep.subr.mxu0 0.0
      %1098 = vmatpush1.msra.mxu0 %v328
      %1099 = vmatprep.subr.mxu0 0.0
      %1100 = vmatpush1.msra.mxu0 %v329
      %1101 = vmatprep.subr.mxu0 0.0
      %1102 = vmatpush1.msra.mxu0 %v330
      %1103 = vmatprep.subr.mxu0 0.0
      %1104 = vmatpush1.msra.mxu0 %v331
      %1105 = vmatprep.subr.mxu0 0.0
      %1106 = vmatpush1.msra.mxu0 %v332
      %1107 = vmatprep.subr.mxu0 0.0
      %1108 = vmatpush1.msra.mxu0 %v333
      %1109 = vmatprep.subr.mxu0 0.0
      %1110 = vmatpush1.msra.mxu0 %v334
      %1111 = vmatprep.subr.mxu0 0.0
      %1112 = vmatpush1.msra.mxu0 %v335
      %1113 = vmatprep.subr.mxu0 0.0
      %1114 = vmatpush1.msra.mxu0 %v336
      %1115 = vmatprep.subr.mxu0 0.0
      %1116 = vmatpush1.msra.mxu0 %v337
      %1117 = vmatprep.subr.mxu0 0.0
      %1118 = vmatpush1.msra.mxu0 %v338
      %1119 = vmatprep.subr.mxu0 0.0
      %1120 = vmatpush1.msra.mxu0 %v339
      %1121 = vmatprep.subr.mxu0 0.0
      %1122 = vmatpush1.msra.mxu0 %v340
      %1123 = vmatprep.subr.mxu0 0.0
      %1124 = vmatpush1.msra.mxu0 %v341
      %1125 = vmatprep.mubr.f32.mxu0 %v990
      %1126 = vmatmul.mubr.f32.gmra.mrb[0].mxu0 %v987
      %v1127 = vpop.f32.mrb[0].mxu0
      %v1128 = vadd.f32 %v347, %v1127
      %v1129 = vpop.f32.mrb[0].mxu0
      %1130 = vmatprep.mubr.f32.mxu0 %v994
      %1131 = vmatmul.mubr.f32.gmra.mrb[0].mxu0 %v992
      %v1132 = vpop.f32.mrb[0].mxu0
      %v1133 = vadd.f32 %v347, %v1132
      %v1134 = vpop.f32.mrb[0].mxu0
      %1135 = vmatprep.mubr.f32.mxu0 %v998
      %1136 = vmatmul.mubr.f32.gmra.mrb[0].mxu0 %v996
      %v1137 = vpop.f32.mrb[0].mxu0
      %v1138 = vadd.f32 %v347, %v1137
      %v1139 = vpop.f32.mrb[0].mxu0
      %1140 = vmatprep.mubr.f32.mxu0 %v1002
      %1141 = vmatmul.mubr.f32.gmra.mrb[0].mxu0 %v1000
      %v1142 = vpop.f32.mrb[0].mxu0
      %v1143 = vadd.f32 %v347, %v1142
      %v1144 = vpop.f32.mrb[0].mxu0
      %1145 = vmatprep.mubr.f32.mxu0 %v1006
      %1146 = vmatmul.mubr.f32.gmra.mrb[0].mxu0 %v1004
      %v1147 = vpop.f32.mrb[0].mxu0
      %v1148 = vadd.f32 %v347, %v1147
      %v1149 = vpop.f32.mrb[0].mxu0
      %1150 = vmatprep.mubr.f32.mxu0 %v1010
      %1151 = vmatmul.mubr.f32.gmra.mrb[0].mxu0 %v1008
      %v1152 = vpop.f32.mrb[0].mxu0
      %v1153 = vadd.f32 %v347, %v1152
      %v1154 = vpop.f32.mrb[0].mxu0
      %1155 = vmatprep.mubr.f32.mxu0 %v1014
      %1156 = vmatmul.mubr.f32.gmra.mrb[0].mxu0 %v1012
      %v1157 = vpop.f32.mrb[0].mxu0
      %v1158 = vadd.f32 %v347, %v1157
      %v1159 = vpop.f32.mrb[0].mxu0
      %1160 = vmatprep.mubr.f32.mxu0 %v1018
      %1161 = vmatmul.mubr.f32.gmra.mrb[0].mxu0 %v1016
      %v1162 = vpop.f32.mrb[0].mxu0
      %v1163 = vadd.f32 %v347, %v1162
      %v1164 = vpop.f32.mrb[0].mxu0
      %1165 = vmatprep.mubr.f32.mxu0 %v1022
      %1166 = vmatmul.mubr.f32.gmra.mrb[0].mxu0 %v1020
      %v1167 = vpop.f32.mrb[0].mxu0
      %v1168 = vadd.f32 %v347, %v1167
      %v1169 = vpop.f32.mrb[0].mxu0
      %1170 = vmatprep.mubr.f32.mxu0 %v1026
      %1171 = vmatmul.mubr.f32.gmra.mrb[0].mxu0 %v1024
      %v1172 = vpop.f32.mrb[0].mxu0
      %v1173 = vadd.f32 %v347, %v1172
      %v1174 = vpop.f32.mrb[0].mxu0
      %1175 = vmatprep.mubr.f32.mxu0 %v1030
      %1176 = vmatmul.mubr.f32.gmra.mrb[0].mxu0 %v1028
      %v1177 = vpop.f32.mrb[0].mxu0
      %v1178 = vadd.f32 %v347, %v1177
      %v1179 = vpop.f32.mrb[0].mxu0
      %1180 = vmatprep.mubr.f32.mxu0 %v1034
      %1181 = vmatmul.mubr.f32.gmra.mrb[0].mxu0 %v1032
      %v1182 = vpop.f32.mrb[0].mxu0
      %v1183 = vadd.f32 %v347, %v1182
      %v1184 = vpop.f32.mrb[0].mxu0
      %1185 = vmatprep.mubr.f32.mxu0 %v1033
      %1186 = vmatmul.mubr.f32.gmra.mrb[0].mxu0 %v1031
      %v1187 = vpop.f32.mrb[0].mxu0
      %v1188 = vadd.f32 %v347, %v1187
      %v1189 = vpop.f32.mrb[0].mxu0
      %1190 = vdwg.mxu0
      %v1191 = vmax.f32 %v1128, 0.0
      %v1192 = vmax.f32 %v1133, 0.0
      %v1193 = vmax.f32 %v1138, 0.0
      %v1194 = vmax.f32 %v1143, 0.0
      %v1195 = vmax.f32 %v1148, 0.0
      %v1196 = vmax.f32 %v1153, 0.0
      %v1197 = vmax.f32 %v1158, 0.0
      %v1198 = vmax.f32 %v1163, 0.0
      %v1199 = vmax.f32 %v1168, 0.0
      %v1200 = vmax.f32 %v1173, 0.0
      %v1201 = vmax.f32 %v1178, 0.0
      %v1202 = vmax.f32 %v1183, 0.0
      %v1203 = vmax.f32 %v1188, 0.0
      %1217 = vrot.lane.b32.xlu0 %v751, 32
      %v1218 = vpop.permute.xlu0 %1217
      %1219 = vrot.lane.b32.xlu0 %v752, 32
      %v1220 = vpop.permute.xlu0 %1219
      %1221 = vrot.lane.b32.xlu0 %v753, 32
      %v1222 = vpop.permute.xlu0 %1221
      %1223 = vrot.lane.b32.xlu0 %v754, 32
      %v1224 = vpop.permute.xlu0 %1223
      %1225 = vrot.lane.b32.xlu0 %v755, 32
      %v1226 = vpop.permute.xlu0 %1225
      %1227 = vrot.lane.b32.xlu0 %v756, 32
      %v1228 = vpop.permute.xlu0 %1227
      %1229 = vrot.lane.b32.xlu0 %v757, 32
      %v1230 = vpop.permute.xlu0 %1229
      %1231 = vrot.lane.b32.xlu0 %v758, 32
      %v1232 = vpop.permute.xlu0 %1231
      %1233 = vrot.lane.b32.xlu0 %v759, 32
      %v1234 = vpop.permute.xlu0 %1233
      %1235 = vrot.lane.b32.xlu0 %v760, 32
      %v1236 = vpop.permute.xlu0 %1235
      %1237 = vrot.lane.b32.xlu0 %v761, 32
      %v1238 = vpop.permute.xlu0 %1237
      %1239 = vrot.lane.b32.xlu0 %v762, 32
      %v1240 = vpop.permute.xlu0 %1239
      %1241 = vrot.lane.b32.xlu0 %v763, 32
      %v1242 = vpop.permute.xlu0 %1241
      %1269 = vrot.lane.b32.xlu0 %v920, 64
      %v1270 = vpop.permute.xlu0 %1269
      %1271 = vrot.lane.b32.xlu0 %v921, 64
      %v1272 = vpop.permute.xlu0 %1271
      %1273 = vrot.lane.b32.xlu0 %v922, 64
      %v1274 = vpop.permute.xlu0 %1273
      %1275 = vrot.lane.b32.xlu0 %v923, 64
      %v1276 = vpop.permute.xlu0 %1275
      %1277 = vrot.lane.b32.xlu0 %v924, 64
      %v1278 = vpop.permute.xlu0 %1277
      %1279 = vrot.lane.b32.xlu0 %v925, 64
      %v1280 = vpop.permute.xlu0 %1279
      %1281 = vrot.lane.b32.xlu0 %v926, 64
      %v1282 = vpop.permute.xlu0 %1281
      %1283 = vrot.lane.b32.xlu0 %v927, 64
      %v1284 = vpop.permute.xlu0 %1283
      %1285 = vrot.lane.b32.xlu0 %v928, 64
      %v1286 = vpop.permute.xlu0 %1285
      %1287 = vrot.lane.b32.xlu0 %v929, 64
      %v1288 = vpop.permute.xlu0 %1287
      %1289 = vrot.lane.b32.xlu0 %v930, 64
      %v1290 = vpop.permute.xlu0 %1289
      %1291 = vrot.lane.b32.xlu0 %v931, 64
      %v1292 = vpop.permute.xlu0 %1291
      %1293 = vrot.lane.b32.xlu0 %v932, 64
      %v1294 = vpop.permute.xlu0 %1293
      %1321 = vrot.lane.b32.xlu0 %v1191, 96
      %v1322 = vpop.permute.xlu0 %1321
      %1323 = vrot.lane.b32.xlu0 %v1192, 96
      %v1324 = vpop.permute.xlu0 %1323
      %1325 = vrot.lane.b32.xlu0 %v1193, 96
      %v1326 = vpop.permute.xlu0 %1325
      %1327 = vrot.lane.b32.xlu0 %v1194, 96
      %v1328 = vpop.permute.xlu0 %1327
      %1329 = vrot.lane.b32.xlu0 %v1195, 96
      %v1330 = vpop.permute.xlu0 %1329
      %1331 = vrot.lane.b32.xlu0 %v1196, 96
      %v1332 = vpop.permute.xlu0 %1331
      %1333 = vrot.lane.b32.xlu0 %v1197, 96
      %v1334 = vpop.permute.xlu0 %1333
      %1335 = vrot.lane.b32.xlu0 %v1198, 96
      %v1336 = vpop.permute.xlu0 %1335
      %1337 = vrot.lane.b32.xlu0 %v1199, 96
      %v1338 = vpop.permute.xlu0 %1337
      %1339 = vrot.lane.b32.xlu0 %v1200, 96
      %v1340 = vpop.permute.xlu0 %1339
      %1341 = vrot.lane.b32.xlu0 %v1201, 96
      %v1342 = vpop.permute.xlu0 %1341
      %1343 = vrot.lane.b32.xlu0 %v1202, 96
      %v1344 = vpop.permute.xlu0 %1343
      %1345 = vrot.lane.b32.xlu0 %v1203, 96
      %v1346 = vpop.permute.xlu0 %1345
      %vm1360 = vcmask 261120
      %v1361 = vsel %vm1360, %v479, %v1218
      %v1362 = vsel %vm1360, %v480, %v1220
      %v1363 = vsel %vm1360, %v481, %v1222
      %v1364 = vsel %vm1360, %v482, %v1224
      %v1365 = vsel %vm1360, %v483, %v1226
      %v1366 = vsel %vm1360, %v484, %v1228
      %v1367 = vsel %vm1360, %v485, %v1230
      %v1368 = vsel %vm1360, %v486, %v1232
      %v1369 = vsel %vm1360, %v487, %v1234
      %v1370 = vsel %vm1360, %v488, %v1236
      %v1371 = vsel %vm1360, %v489, %v1238
      %v1372 = vsel %vm1360, %v490, %v1240
      %v1373 = vsel %vm1360, %v491, %v1242
      %vm1374 = vcmask 523264
      %v1375 = vsel %vm1374, %v1361, %v1270
      %v1376 = vsel %vm1374, %v1362, %v1272
      %v1377 = vsel %vm1374, %v1363, %v1274
      %v1378 = vsel %vm1374, %v1364, %v1276
      %v1379 = vsel %vm1374, %v1365, %v1278
      %v1380 = vsel %vm1374, %v1366, %v1280
      %v1381 = vsel %vm1374, %v1367, %v1282
      %v1382 = vsel %vm1374, %v1368, %v1284
      %v1383 = vsel %vm1374, %v1369, %v1286
      %v1384 = vsel %vm1374, %v1370, %v1288
      %v1385 = vsel %vm1374, %v1371, %v1290
      %v1386 = vsel %vm1374, %v1372, %v1292
      %v1387 = vsel %vm1374, %v1373, %v1294
      %vm1388 = vcmask 785408
      %v1389 = vsel %vm1388, %v1375, %v1322
      %v1390 = vsel %vm1388, %v1376, %v1324
      %v1391 = vsel %vm1388, %v1377, %v1326
      %v1392 = vsel %vm1388, %v1378, %v1328
      %v1393 = vsel %vm1388, %v1379, %v1330
      %v1394 = vsel %vm1388, %v1380, %v1332
      %v1395 = vsel %vm1388, %v1381, %v1334
      %v1396 = vsel %vm1388, %v1382, %v1336
      %v1397 = vsel %vm1388, %v1383, %v1338
      %v1398 = vsel %vm1388, %v1384, %v1340
      %v1399 = vsel %vm1388, %v1385, %v1342
      %v1400 = vsel %vm1388, %v1386, %v1344
      %v1401 = vsel %vm1388, %v1387, %v1346
      %1402 = vst [vmem:[#allocation2] sm:$0xff] %v1389
      %1403 = vst [vmem:[#allocation2 + $0x8] sm:$0xff] %v1390
      %1404 = vst [vmem:[#allocation2 + $0x10] sm:$0xff] %v1391
      %1405 = vst [vmem:[#allocation2 + $0x18] sm:$0xff] %v1392
      %1406 = vst [vmem:[#allocation2 + $0x20] sm:$0xff] %v1393
      %1407 = vst [vmem:[#allocation2 + $0x28] sm:$0xff] %v1394
      %1408 = vst [vmem:[#allocation2 + $0x30] sm:$0xff] %v1395
      %1409 = vst [vmem:[#allocation2 + $0x38] sm:$0xff] %v1396
      %1410 = vst [vmem:[#allocation2 + $0x40] sm:$0xff] %v1397
      %1411 = vst [vmem:[#allocation2 + $0x48] sm:$0xff] %v1398
      %1412 = vst [vmem:[#allocation2 + $0x50] sm:$0xff] %v1399
      %1413 = vst [vmem:[#allocation2 + $0x58] sm:$0xff] %v1400
      %1414 = vst [vmem:[#allocation2 + $0x60] sm:$0xf] %v1401
      %v1415 = vld [vmem:[#allocation2] sm:$0xff]
      %v1416 = vld [vmem:[#allocation2 + $0x8] sm:$0xff]
      %v1417 = vld [vmem:[#allocation2 + $0x10] sm:$0xff]
      %v1418 = vld [vmem:[#allocation2 + $0x18] sm:$0xff]
      %v1419 = vld [vmem:[#allocation2 + $0x20] sm:$0xff]
      %v1420 = vld [vmem:[#allocation2 + $0x28] sm:$0xff]
      %v1421 = vld [vmem:[#allocation2 + $0x30] sm:$0xff]
      %v1422 = vld [vmem:[#allocation2 + $0x38] sm:$0xff]
      %v1423 = vld [vmem:[#allocation2 + $0x40] sm:$0xff]
      %v1424 = vld [vmem:[#allocation2 + $0x48] sm:$0xff]
      %v1425 = vld [vmem:[#allocation2 + $0x50] sm:$0xff]
      %v1426 = vld [vmem:[#allocation2 + $0x58] sm:$0x1]
      %v1427 = vld [vmem:[%s3] sm:$0xff]
      %v1428 = vld [vmem:[%s3 + $0x8] sm:$0xff]
      %v1429 = vld [vmem:[%s3 + $0x10] sm:$0xff]
      %v1430 = vld [vmem:[%s3 + $0x18] sm:$0xff]
      %v1431 = vld [vmem:[%s3 + $0x20] sm:$0xff]
      %v1432 = vld [vmem:[%s3 + $0x28] sm:$0xff]
      %v1433 = vld [vmem:[%s3 + $0x30] sm:$0xff]
      %v1434 = vld [vmem:[%s3 + $0x38] sm:$0xff]
      %v1435 = vld [vmem:[%s3 + $0x40] sm:$0xff]
      %v1436 = vld [vmem:[%s3 + $0x48] sm:$0xff]
      %v1437 = vld [vmem:[%s3 + $0x50] sm:$0xff]
      %v1438 = vld [vmem:[%s3 + $0x58] sm:$0xff]
      %v1439 = vld [vmem:[%s3 + $0x60] sm:$0xff]
      %v1440 = vld [vmem:[%s3 + $0x68] sm:$0xff]
      %v1441 = vld [vmem:[%s3 + $0x70] sm:$0xff]
      %v1442 = vld [vmem:[%s3 + $0x78] sm:$0xff]
      %v1443 = vld [vmem:[#allocation2 + $0x1] sm:$0xff]
      %v1444 = vld [vmem:[#allocation2 + $0x9] sm:$0xff]
      %v1445 = vld [vmem:[#allocation2 + $0x11] sm:$0xff]
      %v1446 = vld [vmem:[#allocation2 + $0x19] sm:$0xff]
      %v1447 = vld [vmem:[#allocation2 + $0x21] sm:$0xff]
      %v1448 = vld [vmem:[#allocation2 + $0x29] sm:$0xff]
      %v1449 = vld [vmem:[#allocation2 + $0x31] sm:$0xff]
      %v1450 = vld [vmem:[#allocation2 + $0x39] sm:$0xff]
      %v1451 = vld [vmem:[#allocation2 + $0x41] sm:$0xff]
      %v1452 = vld [vmem:[#allocation2 + $0x49] sm:$0xff]
      %v1453 = vld [vmem:[#allocation2 + $0x51] sm:$0xff]
      %v1454 = vld [vmem:[#allocation2 + $0x59] sm:$0x1]
      %v1455 = vld [vmem:[%s3 + $0x80] sm:$0xff]
      %v1456 = vld [vmem:[%s3 + $0x88] sm:$0xff]
      %v1457 = vld [vmem:[%s3 + $0x90] sm:$0xff]
      %v1458 = vld [vmem:[%s3 + $0x98] sm:$0xff]
      %v1459 = vld [vmem:[%s3 + $0xa0] sm:$0xff]
      %v1460 = vld [vmem:[%s3 + $0xa8] sm:$0xff]
      %v1461 = vld [vmem:[%s3 + $0xb0] sm:$0xff]
      %v1462 = vld [vmem:[%s3 + $0xb8] sm:$0xff]
      %v1463 = vld [vmem:[%s3 + $0xc0] sm:$0xff]
      %v1464 = vld [vmem:[%s3 + $0xc8] sm:$0xff]
      %v1465 = vld [vmem:[%s3 + $0xd0] sm:$0xff]
      %v1466 = vld [vmem:[%s3 + $0xd8] sm:$0xff]
      %v1467 = vld [vmem:[%s3 + $0xe0] sm:$0xff]
      %v1468 = vld [vmem:[%s3 + $0xe8] sm:$0xff]
      %v1469 = vld [vmem:[%s3 + $0xf0] sm:$0xff]
      %v1470 = vld [vmem:[%s3 + $0xf8] sm:$0xff]
      %1471 = vmatprep.subr.mxu0 0.0
      %1472 = vmatpush1.msra.mxu0 %v1455
      %1473 = vmatprep.subr.mxu0 0.0
      %1474 = vmatpush1.msra.mxu0 %v1456
      %1475 = vmatprep.subr.mxu0 0.0
      %1476 = vmatpush1.msra.mxu0 %v1457
      %1477 = vmatprep.subr.mxu0 0.0
      %1478 = vmatpush1.msra.mxu0 %v1458
      %1479 = vmatprep.subr.mxu0 0.0
      %1480 = vmatpush1.msra.mxu0 %v1459
      %1481 = vmatprep.subr.mxu0 0.0
      %1482 = vmatpush1.msra.mxu0 %v1460
      %1483 = vmatprep.subr.mxu0 0.0
      %1484 = vmatpush1.msra.mxu0 %v1461
      %1485 = vmatprep.subr.mxu0 0.0
      %1486 = vmatpush1.msra.mxu0 %v1462
      %1487 = vmatprep.subr.mxu0 0.0
      %1488 = vmatpush1.msra.mxu0 %v1463
      %1489 = vmatprep.subr.mxu0 0.0
      %1490 = vmatpush1.msra.mxu0 %v1464
      %1491 = vmatprep.subr.mxu0 0.0
      %1492 = vmatpush1.msra.mxu0 %v1465
      %1493 = vmatprep.subr.mxu0 0.0
      %1494 = vmatpush1.msra.mxu0 %v1466
      %1495 = vmatprep.subr.mxu0 0.0
      %1496 = vmatpush1.msra.mxu0 %v1467
      %1497 = vmatprep.subr.mxu0 0.0
      %1498 = vmatpush1.msra.mxu0 %v1468
      %1499 = vmatprep.subr.mxu0 0.0
      %1500 = vmatpush1.msra.mxu0 %v1469
      %1501 = vmatprep.subr.mxu0 0.0
      %1502 = vmatpush1.msra.mxu0 %v1470
      %1503 = vmatprep.subr.mxu0 0.0
      %1504 = vmatpush1.msra.mxu0 0.0
      %1505 = vmatprep.subr.mxu0 0.0
      %1506 = vmatpush1.msra.mxu0 0.0
      %1507 = vmatprep.subr.mxu0 0.0
      %1508 = vmatpush1.msra.mxu0 0.0
      %1509 = vmatprep.subr.mxu0 0.0
      %1510 = vmatpush1.msra.mxu0 0.0
      %1511 = vmatprep.subr.mxu0 0.0
      %1512 = vmatpush1.msra.mxu0 0.0
      %1513 = vmatprep.subr.mxu0 0.0
      %1514 = vmatpush1.msra.mxu0 0.0
      %1515 = vmatprep.subr.mxu0 0.0
      %1516 = vmatpush1.msra.mxu0 0.0
      %1517 = vmatprep.subr.mxu0 0.0
      %1518 = vmatpush1.msra.mxu0 0.0
      %1519 = vmatprep.subr.mxu0 0.0
      %1520 = vmatpush1.msra.mxu0 0.0
      %1521 = vmatprep.subr.mxu0 0.0
      %1522 = vmatpush1.msra.mxu0 0.0
      %1523 = vmatprep.subr.mxu0 0.0
      %1524 = vmatpush1.msra.mxu0 0.0
      %1525 = vmatprep.subr.mxu0 0.0
      %1526 = vmatpush1.msra.mxu0 0.0
      %1527 = vmatprep.subr.mxu0 0.0
      %1528 = vmatpush1.msra.mxu0 0.0
      %1529 = vmatprep.subr.mxu0 0.0
      %1530 = vmatpush1.msra.mxu0 0.0
      %1531 = vmatprep.subr.mxu0 0.0
      %1532 = vmatpush1.msra.mxu0 0.0
      %1533 = vmatprep.subr.mxu0 0.0
      %1534 = vmatpush1.msra.mxu0 0.0
      %1535 = vmatprep.mubr.f32.mxu0 0.0
      %1536 = vmatmul.mubr.f32.gmra.mrb[0].mxu0 %v1443
      %v1537 = vpop.f32.mrb[0].mxu0
      %v1538 = vadd.f32 0.0, %v1537
      %v1539 = vpop.f32.mrb[0].mxu0
      %1540 = vmatprep.mubr.f32.mxu0 0.0
      %1541 = vmatmul.mubr.f32.gmra.mrb[0].mxu0 %v1444
      %v1542 = vpop.f32.mrb[0].mxu0
      %v1543 = vadd.f32 0.0, %v1542
      %v1544 = vpop.f32.mrb[0].mxu0
      %1545 = vmatprep.mubr.f32.mxu0 0.0
      %1546 = vmatmul.mubr.f32.gmra.mrb[0].mxu0 %v1445
      %v1547 = vpop.f32.mrb[0].mxu0
      %v1548 = vadd.f32 0.0, %v1547
      %v1549 = vpop.f32.mrb[0].mxu0
      %1550 = vmatprep.mubr.f32.mxu0 0.0
      %1551 = vmatmul.mubr.f32.gmra.mrb[0].mxu0 %v1446
      %v1552 = vpop.f32.mrb[0].mxu0
      %v1553 = vadd.f32 0.0, %v1552
      %v1554 = vpop.f32.mrb[0].mxu0
      %1555 = vmatprep.mubr.f32.mxu0 0.0
      %1556 = vmatmul.mubr.f32.gmra.mrb[0].mxu0 %v1447
      %v1557 = vpop.f32.mrb[0].mxu0
      %v1558 = vadd.f32 0.0, %v1557
      %v1559 = vpop.f32.mrb[0].mxu0
      %1560 = vmatprep.mubr.f32.mxu0 0.0
      %1561 = vmatmul.mubr.f32.gmra.mrb[0].mxu0 %v1448
      %v1562 = vpop.f32.mrb[0].mxu0
      %v1563 = vadd.f32 0.0, %v1562
      %v1564 = vpop.f32.mrb[0].mxu0
      %1565 = vmatprep.mubr.f32.mxu0 0.0
      %1566 = vmatmul.mubr.f32.gmra.mrb[0].mxu0 %v1449
      %v1567 = vpop.f32.mrb[0].mxu0
      %v1568 = vadd.f32 0.0, %v1567
      %v1569 = vpop.f32.mrb[0].mxu0
      %1570 = vmatprep.mubr.f32.mxu0 0.0
      %1571 = vmatmul.mubr.f32.gmra.mrb[0].mxu0 %v1450
      %v1572 = vpop.f32.mrb[0].mxu0
      %v1573 = vadd.f32 0.0, %v1572
      %v1574 = vpop.f32.mrb[0].mxu0
      %1575 = vmatprep.mubr.f32.mxu0 0.0
      %1576 = vmatmul.mubr.f32.gmra.mrb[0].mxu0 %v1451
      %v1577 = vpop.f32.mrb[0].mxu0
      %v1578 = vadd.f32 0.0, %v1577
      %v1579 = vpop.f32.mrb[0].mxu0
      %1580 = vmatprep.mubr.f32.mxu0 0.0
      %1581 = vmatmul.mubr.f32.gmra.mrb[0].mxu0 %v1452
      %v1582 = vpop.f32.mrb[0].mxu0
      %v1583 = vadd.f32 0.0, %v1582
      %v1584 = vpop.f32.mrb[0].mxu0
      %1585 = vmatprep.mubr.f32.mxu0 0.0
      %1586 = vmatmul.mubr.f32.gmra.mrb[0].mxu0 %v1453
      %v1587 = vpop.f32.mrb[0].mxu0
      %v1588 = vadd.f32 0.0, %v1587
      %v1589 = vpop.f32.mrb[0].mxu0
      %1590 = vmatprep.mubr.f32.mxu0 0.0
      %1591 = vmatmul.mubr.f32.gmra.mrb[0].mxu0 %v1454
      %v1592 = vpop.f32.mrb[0].mxu0
      %v1593 = vadd.f32 0.0, %v1592
      %v1594 = vpop.f32.mrb[0].mxu0
      %1595 = vdwg.mxu0
      %1596 = vmatprep.subr.mxu0 0.0
      %1597 = vmatpush1.msra.mxu0 %v1427
      %1598 = vmatprep.subr.mxu0 0.0
      %1599 = vmatpush1.msra.mxu0 %v1428
      %1600 = vmatprep.subr.mxu0 0.0
      %1601 = vmatpush1.msra.mxu0 %v1429
      %1602 = vmatprep.subr.mxu0 0.0
      %1603 = vmatpush1.msra.mxu0 %v1430
      %1604 = vmatprep.subr.mxu0 0.0
      %1605 = vmatpush1.msra.mxu0 %v1431
      %1606 = vmatprep.subr.mxu0 0.0
      %1607 = vmatpush1.msra.mxu0 %v1432
      %1608 = vmatprep.subr.mxu0 0.0
      %1609 = vmatpush1.msra.mxu0 %v1433
      %1610 = vmatprep.subr.mxu0 0.0
      %1611 = vmatpush1.msra.mxu0 %v1434
      %1612 = vmatprep.subr.mxu0 0.0
      %1613 = vmatpush1.msra.mxu0 %v1435
      %1614 = vmatprep.subr.mxu0 0.0
      %1615 = vmatpush1.msra.mxu0 %v1436
      %1616 = vmatprep.subr.mxu0 0.0
      %1617 = vmatpush1.msra.mxu0 %v1437
      %1618 = vmatprep.subr.mxu0 0.0
      %1619 = vmatpush1.msra.mxu0 %v1438
      %1620 = vmatprep.subr.mxu0 0.0
      %1621 = vmatpush1.msra.mxu0 %v1439
      %1622 = vmatprep.subr.mxu0 0.0
      %1623 = vmatpush1.msra.mxu0 %v1440
      %1624 = vmatprep.subr.mxu0 0.0
      %1625 = vmatpush1.msra.mxu0 %v1441
      %1626 = vmatprep.subr.mxu0 0.0
      %1627 = vmatpush1.msra.mxu0 %v1442
      %1628 = vmatprep.subr.mxu0 0.0
      %1629 = vmatpush1.msra.mxu0 0.0
      %1630 = vmatprep.subr.mxu0 0.0
      %1631 = vmatpush1.msra.mxu0 0.0
      %1632 = vmatprep.subr.mxu0 0.0
      %1633 = vmatpush1.msra.mxu0 0.0
      %1634 = vmatprep.subr.mxu0 0.0
      %1635 = vmatpush1.msra.mxu0 0.0
      %1636 = vmatprep.subr.mxu0 0.0
      %1637 = vmatpush1.msra.mxu0 0.0
      %1638 = vmatprep.subr.mxu0 0.0
      %1639 = vmatpush1.msra.mxu0 0.0
      %1640 = vmatprep.subr.mxu0 0.0
      %1641 = vmatpush1.msra.mxu0 0.0
      %1642 = vmatprep.subr.mxu0 0.0
      %1643 = vmatpush1.msra.mxu0 0.0
      %1644 = vmatprep.subr.mxu0 0.0
      %1645 = vmatpush1.msra.mxu0 0.0
      %1646 = vmatprep.subr.mxu0 0.0
      %1647 = vmatpush1.msra.mxu0 0.0
      %1648 = vmatprep.subr.mxu0 0.0
      %1649 = vmatpush1.msra.mxu0 0.0
      %1650 = vmatprep.subr.mxu0 0.0
      %1651 = vmatpush1.msra.mxu0 0.0
      %1652 = vmatprep.subr.mxu0 0.0
      %1653 = vmatpush1.msra.mxu0 0.0
      %1654 = vmatprep.subr.mxu0 0.0
      %1655 = vmatpush1.msra.mxu0 0.0
      %1656 = vmatprep.subr.mxu0 0.0
      %1657 = vmatpush1.msra.mxu0 0.0
      %1658 = vmatprep.subr.mxu0 0.0
      %1659 = vmatpush1.msra.mxu0 0.0
      %1660 = vmatprep.mubr.f32.mxu0 0.0
      %1661 = vmatmul.mubr.f32.gmra.mrb[0].mxu0 %v1415
      %v1662 = vpop.f32.mrb[0].mxu0
      %v1663 = vadd.f32 %v1538, %v1662
      %v1664 = vpop.f32.mrb[0].mxu0
      %1665 = vmatprep.mubr.f32.mxu0 0.0
      %1666 = vmatmul.mubr.f32.gmra.mrb[0].mxu0 %v1416
      %v1667 = vpop.f32.mrb[0].mxu0
      %v1668 = vadd.f32 %v1543, %v1667
      %v1669 = vpop.f32.mrb[0].mxu0
      %1670 = vmatprep.mubr.f32.mxu0 0.0
      %1671 = vmatmul.mubr.f32.gmra.mrb[0].mxu0 %v1417
      %v1672 = vpop.f32.mrb[0].mxu0
      %v1673 = vadd.f32 %v1548, %v1672
      %v1674 = vpop.f32.mrb[0].mxu0
      %1675 = vmatprep.mubr.f32.mxu0 0.0
      %1676 = vmatmul.mubr.f32.gmra.mrb[0].mxu0 %v1418
      %v1677 = vpop.f32.mrb[0].mxu0
      %v1678 = vadd.f32 %v1553, %v1677
      %v1679 = vpop.f32.mrb[0].mxu0
      %1680 = vmatprep.mubr.f32.mxu0 0.0
      %1681 = vmatmul.mubr.f32.gmra.mrb[0].mxu0 %v1419
      %v1682 = vpop.f32.mrb[0].mxu0
      %v1683 = vadd.f32 %v1558, %v1682
      %v1684 = vpop.f32.mrb[0].mxu0
      %1685 = vmatprep.mubr.f32.mxu0 0.0
      %1686 = vmatmul.mubr.f32.gmra.mrb[0].mxu0 %v1420
      %v1687 = vpop.f32.mrb[0].mxu0
      %v1688 = vadd.f32 %v1563, %v1687
      %v1689 = vpop.f32.mrb[0].mxu0
      %1690 = vmatprep.mubr.f32.mxu0 0.0
      %1691 = vmatmul.mubr.f32.gmra.mrb[0].mxu0 %v1421
      %v1692 = vpop.f32.mrb[0].mxu0
      %v1693 = vadd.f32 %v1568, %v1692
      %v1694 = vpop.f32.mrb[0].mxu0
      %1695 = vmatprep.mubr.f32.mxu0 0.0
      %1696 = vmatmul.mubr.f32.gmra.mrb[0].mxu0 %v1422
      %v1697 = vpop.f32.mrb[0].mxu0
      %v1698 = vadd.f32 %v1573, %v1697
      %v1699 = vpop.f32.mrb[0].mxu0
      %1700 = vmatprep.mubr.f32.mxu0 0.0
      %1701 = vmatmul.mubr.f32.gmra.mrb[0].mxu0 %v1423
      %v1702 = vpop.f32.mrb[0].mxu0
      %v1703 = vadd.f32 %v1578, %v1702
      %v1704 = vpop.f32.mrb[0].mxu0
      %1705 = vmatprep.mubr.f32.mxu0 0.0
      %1706 = vmatmul.mubr.f32.gmra.mrb[0].mxu0 %v1424
      %v1707 = vpop.f32.mrb[0].mxu0
      %v1708 = vadd.f32 %v1583, %v1707
      %v1709 = vpop.f32.mrb[0].mxu0
      %1710 = vmatprep.mubr.f32.mxu0 0.0
      %1711 = vmatmul.mubr.f32.gmra.mrb[0].mxu0 %v1425
      %v1712 = vpop.f32.mrb[0].mxu0
      %v1713 = vadd.f32 %v1588, %v1712
      %v1714 = vpop.f32.mrb[0].mxu0
      %1715 = vmatprep.mubr.f32.mxu0 0.0
      %1716 = vmatmul.mubr.f32.gmra.mrb[0].mxu0 %v1426
      %v1717 = vpop.f32.mrb[0].mxu0
      %v1718 = vadd.f32 %v1593, %v1717
      %v1719 = vpop.f32.mrb[0].mxu0
      %1720 = vdwg.mxu0
      %v1721 = vld [vmem:[#allocation2 + $0xa] sm:$0xff]
      %v1722 = vld [vmem:[#allocation2 + $0x12] sm:$0xff]
      %v1723 = vld [vmem:[#allocation2 + $0x1a] sm:$0xff]
      %v1724 = vld [vmem:[#allocation2 + $0x22] sm:$0xff]
      %v1725 = vld [vmem:[#allocation2 + $0x2a] sm:$0xff]
      %v1726 = vld [vmem:[#allocation2 + $0x32] sm:$0xff]
      %v1727 = vld [vmem:[#allocation2 + $0x3a] sm:$0xff]
      %v1728 = vld [vmem:[#allocation2 + $0x42] sm:$0xff]
      %v1729 = vld [vmem:[#allocation2 + $0x4a] sm:$0xff]
      %v1730 = vld [vmem:[#allocation2 + $0x52] sm:$0xff]
      %v1731 = vld [vmem:[#allocation2 + $0x5a] sm:$0xff]
      %v1732 = vld [vmem:[#allocation2 + $0x62] sm:$0x1]
      %v1733 = vld [vmem:[%s3 + $0x100] sm:$0xff]
      %v1734 = vld [vmem:[%s3 + $0x108] sm:$0xff]
      %v1735 = vld [vmem:[%s3 + $0x110] sm:$0xff]
      %v1736 = vld [vmem:[%s3 + $0x118] sm:$0xff]
      %v1737 = vld [vmem:[%s3 + $0x120] sm:$0xff]
      %v1738 = vld [vmem:[%s3 + $0x128] sm:$0xff]
      %v1739 = vld [vmem:[%s3 + $0x130] sm:$0xff]
      %v1740 = vld [vmem:[%s3 + $0x138] sm:$0xff]
      %v1741 = vld [vmem:[%s3 + $0x140] sm:$0xff]
      %v1742 = vld [vmem:[%s3 + $0x148] sm:$0xff]
      %v1743 = vld [vmem:[%s3 + $0x150] sm:$0xff]
      %v1744 = vld [vmem:[%s3 + $0x158] sm:$0xff]
      %v1745 = vld [vmem:[%s3 + $0x160] sm:$0xff]
      %v1746 = vld [vmem:[%s3 + $0x168] sm:$0xff]
      %v1747 = vld [vmem:[%s3 + $0x170] sm:$0xff]
      %v1748 = vld [vmem:[%s3 + $0x178] sm:$0xff]
      %1749 = vmatprep.subr.mxu0 0.0
      %1750 = vmatpush1.msra.mxu0 %v1733
      %1751 = vmatprep.subr.mxu0 0.0
      %1752 = vmatpush1.msra.mxu0 %v1734
      %1753 = vmatprep.subr.mxu0 0.0
      %1754 = vmatpush1.msra.mxu0 %v1735
      %1755 = vmatprep.subr.mxu0 0.0
      %1756 = vmatpush1.msra.mxu0 %v1736
      %1757 = vmatprep.subr.mxu0 0.0
      %1758 = vmatpush1.msra.mxu0 %v1737
      %1759 = vmatprep.subr.mxu0 0.0
      %1760 = vmatpush1.msra.mxu0 %v1738
      %1761 = vmatprep.subr.mxu0 0.0
      %1762 = vmatpush1.msra.mxu0 %v1739
      %1763 = vmatprep.subr.mxu0 0.0
      %1764 = vmatpush1.msra.mxu0 %v1740
      %1765 = vmatprep.subr.mxu0 0.0
      %1766 = vmatpush1.msra.mxu0 %v1741
      %1767 = vmatprep.subr.mxu0 0.0
      %1768 = vmatpush1.msra.mxu0 %v1742
      %1769 = vmatprep.subr.mxu0 0.0
      %1770 = vmatpush1.msra.mxu0 %v1743
      %1771 = vmatprep.subr.mxu0 0.0
      %1772 = vmatpush1.msra.mxu0 %v1744
      %1773 = vmatprep.subr.mxu0 0.0
      %1774 = vmatpush1.msra.mxu0 %v1745
      %1775 = vmatprep.subr.mxu0 0.0
      %1776 = vmatpush1.msra.mxu0 %v1746
      %1777 = vmatprep.subr.mxu0 0.0
      %1778 = vmatpush1.msra.mxu0 %v1747
      %1779 = vmatprep.subr.mxu0 0.0
      %1780 = vmatpush1.msra.mxu0 %v1748
      %1781 = vmatprep.subr.mxu0 0.0
      %1782 = vmatpush1.msra.mxu0 0.0
      %1783 = vmatprep.subr.mxu0 0.0
      %1784 = vmatpush1.msra.mxu0 0.0
      %1785 = vmatprep.subr.mxu0 0.0
      %1786 = vmatpush1.msra.mxu0 0.0
      %1787 = vmatprep.subr.mxu0 0.0
      %1788 = vmatpush1.msra.mxu0 0.0
      %1789 = vmatprep.subr.mxu0 0.0
      %1790 = vmatpush1.msra.mxu0 0.0
      %1791 = vmatprep.subr.mxu0 0.0
      %1792 = vmatpush1.msra.mxu0 0.0
      %1793 = vmatprep.subr.mxu0 0.0
      %1794 = vmatpush1.msra.mxu0 0.0
      %1795 = vmatprep.subr.mxu0 0.0
      %1796 = vmatpush1.msra.mxu0 0.0
      %1797 = vmatprep.subr.mxu0 0.0
      %1798 = vmatpush1.msra.mxu0 0.0
      %1799 = vmatprep.subr.mxu0 0.0
      %1800 = vmatpush1.msra.mxu0 0.0
      %1801 = vmatprep.subr.mxu0 0.0
      %1802 = vmatpush1.msra.mxu0 0.0
      %1803 = vmatprep.subr.mxu0 0.0
      %1804 = vmatpush1.msra.mxu0 0.0
      %1805 = vmatprep.subr.mxu0 0.0
      %1806 = vmatpush1.msra.mxu0 0.0
      %1807 = vmatprep.subr.mxu0 0.0
      %1808 = vmatpush1.msra.mxu0 0.0
      %1809 = vmatprep.subr.mxu0 0.0
      %1810 = vmatpush1.msra.mxu0 0.0
      %1811 = vmatprep.subr.mxu0 0.0
      %1812 = vmatpush1.msra.mxu0 0.0
      %1813 = vmatprep.mubr.f32.mxu0 0.0
      %1814 = vmatmul.mubr.f32.gmra.mrb[0].mxu0 %v1721
      %v1815 = vpop.f32.mrb[0].mxu0
      %v1816 = vadd.f32 0.0, %v1815
      %v1817 = vpop.f32.mrb[0].mxu0
      %1818 = vmatprep.mubr.f32.mxu0 0.0
      %1819 = vmatmul.mubr.f32.gmra.mrb[0].mxu0 %v1722
      %v1820 = vpop.f32.mrb[0].mxu0
      %v1821 = vadd.f32 0.0, %v1820
      %v1822 = vpop.f32.mrb[0].mxu0
      %1823 = vmatprep.mubr.f32.mxu0 0.0
      %1824 = vmatmul.mubr.f32.gmra.mrb[0].mxu0 %v1723
      %v1825 = vpop.f32.mrb[0].mxu0
      %v1826 = vadd.f32 0.0, %v1825
      %v1827 = vpop.f32.mrb[0].mxu0
      %1828 = vmatprep.mubr.f32.mxu0 0.0
      %1829 = vmatmul.mubr.f32.gmra.mrb[0].mxu0 %v1724
      %v1830 = vpop.f32.mrb[0].mxu0
      %v1831 = vadd.f32 0.0, %v1830
      %v1832 = vpop.f32.mrb[0].mxu0
      %1833 = vmatprep.mubr.f32.mxu0 0.0
      %1834 = vmatmul.mubr.f32.gmra.mrb[0].mxu0 %v1725
      %v1835 = vpop.f32.mrb[0].mxu0
      %v1836 = vadd.f32 0.0, %v1835
      %v1837 = vpop.f32.mrb[0].mxu0
      %1838 = vmatprep.mubr.f32.mxu0 0.0
      %1839 = vmatmul.mubr.f32.gmra.mrb[0].mxu0 %v1726
      %v1840 = vpop.f32.mrb[0].mxu0
      %v1841 = vadd.f32 0.0, %v1840
      %v1842 = vpop.f32.mrb[0].mxu0
      %1843 = vmatprep.mubr.f32.mxu0 0.0
      %1844 = vmatmul.mubr.f32.gmra.mrb[0].mxu0 %v1727
      %v1845 = vpop.f32.mrb[0].mxu0
      %v1846 = vadd.f32 0.0, %v1845
      %v1847 = vpop.f32.mrb[0].mxu0
      %1848 = vmatprep.mubr.f32.mxu0 0.0
      %1849 = vmatmul.mubr.f32.gmra.mrb[0].mxu0 %v1728
      %v1850 = vpop.f32.mrb[0].mxu0
      %v1851 = vadd.f32 0.0, %v1850
      %v1852 = vpop.f32.mrb[0].mxu0
      %1853 = vmatprep.mubr.f32.mxu0 0.0
      %1854 = vmatmul.mubr.f32.gmra.mrb[0].mxu0 %v1729
      %v1855 = vpop.f32.mrb[0].mxu0
      %v1856 = vadd.f32 0.0, %v1855
      %v1857 = vpop.f32.mrb[0].mxu0
      %1858 = vmatprep.mubr.f32.mxu0 0.0
      %1859 = vmatmul.mubr.f32.gmra.mrb[0].mxu0 %v1730
      %v1860 = vpop.f32.mrb[0].mxu0
      %v1861 = vadd.f32 0.0, %v1860
      %v1862 = vpop.f32.mrb[0].mxu0
      %1863 = vmatprep.mubr.f32.mxu0 0.0
      %1864 = vmatmul.mubr.f32.gmra.mrb[0].mxu0 %v1731
      %v1865 = vpop.f32.mrb[0].mxu0
      %v1866 = vadd.f32 0.0, %v1865
      %v1867 = vpop.f32.mrb[0].mxu0
      %1868 = vmatprep.mubr.f32.mxu0 0.0
      %1869 = vmatmul.mubr.f32.gmra.mrb[0].mxu0 %v1732
      %v1870 = vpop.f32.mrb[0].mxu0
      %v1871 = vadd.f32 0.0, %v1870
      %v1872 = vpop.f32.mrb[0].mxu0
      %1873 = vdwg.mxu0
      %v1874 = vadd.f32 %v1663, %v1816
      %v1875 = vadd.f32 %v1668, %v1821
      %v1876 = vadd.f32 %v1673, %v1826
      %v1877 = vadd.f32 %v1678, %v1831
      %v1878 = vadd.f32 %v1683, %v1836
      %v1879 = vadd.f32 %v1688, %v1841
      %v1880 = vadd.f32 %v1693, %v1846
      %v1881 = vadd.f32 %v1698, %v1851
      %v1882 = vadd.f32 %v1703, %v1856
      %v1883 = vadd.f32 %v1708, %v1861
      %v1884 = vadd.f32 %v1713, %v1866
      %v1885 = vadd.f32 %v1718, %v1871
      %v1886 = vld [vmem:[#allocation2 + $0xb] sm:$0xff]
      %v1887 = vld [vmem:[#allocation2 + $0x13] sm:$0xff]
      %v1888 = vld [vmem:[#allocation2 + $0x1b] sm:$0xff]
      %v1889 = vld [vmem:[#allocation2 + $0x23] sm:$0xff]
      %v1890 = vld [vmem:[#allocation2 + $0x2b] sm:$0xff]
      %v1891 = vld [vmem:[#allocation2 + $0x33] sm:$0xff]
      %v1892 = vld [vmem:[#allocation2 + $0x3b] sm:$0xff]
      %v1893 = vld [vmem:[#allocation2 + $0x43] sm:$0xff]
      %v1894 = vld [vmem:[#allocation2 + $0x4b] sm:$0xff]
      %v1895 = vld [vmem:[#allocation2 + $0x53] sm:$0xff]
      %v1896 = vld [vmem:[#allocation2 + $0x5b] sm:$0xff]
      %v1897 = vld [vmem:[#allocation2 + $0x63] sm:$0x1]
      %v1898 = vld [vmem:[%s3 + $0x180] sm:$0xff]
      %v1899 = vld [vmem:[%s3 + $0x188] sm:$0xff]
      %v1900 = vld [vmem:[%s3 + $0x190] sm:$0xff]
      %v1901 = vld [vmem:[%s3 + $0x198] sm:$0xff]
      %v1902 = vld [vmem:[%s3 + $0x1a0] sm:$0xff]
      %v1903 = vld [vmem:[%s3 + $0x1a8] sm:$0xff]
      %v1904 = vld [vmem:[%s3 + $0x1b0] sm:$0xff]
      %v1905 = vld [vmem:[%s3 + $0x1b8] sm:$0xff]
      %v1906 = vld [vmem:[%s3 + $0x1c0] sm:$0xff]
      %v1907 = vld [vmem:[%s3 + $0x1c8] sm:$0xff]
      %v1908 = vld [vmem:[%s3 + $0x1d0] sm:$0xff]
      %v1909 = vld [vmem:[%s3 + $0x1d8] sm:$0xff]
      %v1910 = vld [vmem:[%s3 + $0x1e0] sm:$0xff]
      %v1911 = vld [vmem:[%s3 + $0x1e8] sm:$0xff]
      %v1912 = vld [vmem:[%s3 + $0x1f0] sm:$0xff]
      %v1913 = vld [vmem:[%s3 + $0x1f8] sm:$0xff]
      %1914 = vmatprep.subr.mxu0 0.0
      %1915 = vmatpush1.msra.mxu0 %v1898
      %1916 = vmatprep.subr.mxu0 0.0
      %1917 = vmatpush1.msra.mxu0 %v1899
      %1918 = vmatprep.subr.mxu0 0.0
      %1919 = vmatpush1.msra.mxu0 %v1900
      %1920 = vmatprep.subr.mxu0 0.0
      %1921 = vmatpush1.msra.mxu0 %v1901
      %1922 = vmatprep.subr.mxu0 0.0
      %1923 = vmatpush1.msra.mxu0 %v1902
      %1924 = vmatprep.subr.mxu0 0.0
      %1925 = vmatpush1.msra.mxu0 %v1903
      %1926 = vmatprep.subr.mxu0 0.0
      %1927 = vmatpush1.msra.mxu0 %v1904
      %1928 = vmatprep.subr.mxu0 0.0
      %1929 = vmatpush1.msra.mxu0 %v1905
      %1930 = vmatprep.subr.mxu0 0.0
      %1931 = vmatpush1.msra.mxu0 %v1906
      %1932 = vmatprep.subr.mxu0 0.0
      %1933 = vmatpush1.msra.mxu0 %v1907
      %1934 = vmatprep.subr.mxu0 0.0
      %1935 = vmatpush1.msra.mxu0 %v1908
      %1936 = vmatprep.subr.mxu0 0.0
      %1937 = vmatpush1.msra.mxu0 %v1909
      %1938 = vmatprep.subr.mxu0 0.0
      %1939 = vmatpush1.msra.mxu0 %v1910
      %1940 = vmatprep.subr.mxu0 0.0
      %1941 = vmatpush1.msra.mxu0 %v1911
      %1942 = vmatprep.subr.mxu0 0.0
      %1943 = vmatpush1.msra.mxu0 %v1912
      %1944 = vmatprep.subr.mxu0 0.0
      %1945 = vmatpush1.msra.mxu0 %v1913
      %1946 = vmatprep.subr.mxu0 0.0
      %1947 = vmatpush1.msra.mxu0 0.0
      %1948 = vmatprep.subr.mxu0 0.0
      %1949 = vmatpush1.msra.mxu0 0.0
      %1950 = vmatprep.subr.mxu0 0.0
      %1951 = vmatpush1.msra.mxu0 0.0
      %1952 = vmatprep.subr.mxu0 0.0
      %1953 = vmatpush1.msra.mxu0 0.0
      %1954 = vmatprep.subr.mxu0 0.0
      %1955 = vmatpush1.msra.mxu0 0.0
      %1956 = vmatprep.subr.mxu0 0.0
      %1957 = vmatpush1.msra.mxu0 0.0
      %1958 = vmatprep.subr.mxu0 0.0
      %1959 = vmatpush1.msra.mxu0 0.0
      %1960 = vmatprep.subr.mxu0 0.0
      %1961 = vmatpush1.msra.mxu0 0.0
      %1962 = vmatprep.subr.mxu0 0.0
      %1963 = vmatpush1.msra.mxu0 0.0
      %1964 = vmatprep.subr.mxu0 0.0
      %1965 = vmatpush1.msra.mxu0 0.0
      %1966 = vmatprep.subr.mxu0 0.0
      %1967 = vmatpush1.msra.mxu0 0.0
      %1968 = vmatprep.subr.mxu0 0.0
      %1969 = vmatpush1.msra.mxu0 0.0
      %1970 = vmatprep.subr.mxu0 0.0
      %1971 = vmatpush1.msra.mxu0 0.0
      %1972 = vmatprep.subr.mxu0 0.0
      %1973 = vmatpush1.msra.mxu0 0.0
      %1974 = vmatprep.subr.mxu0 0.0
      %1975 = vmatpush1.msra.mxu0 0.0
      %1976 = vmatprep.subr.mxu0 0.0
      %1977 = vmatpush1.msra.mxu0 0.0
      %1978 = vmatprep.mubr.f32.mxu0 0.0
      %1979 = vmatmul.mubr.f32.gmra.mrb[0].mxu0 %v1886
      %v1980 = vpop.f32.mrb[0].mxu0
      %v1981 = vadd.f32 0.0, %v1980
      %v1982 = vpop.f32.mrb[0].mxu0
      %1983 = vmatprep.mubr.f32.mxu0 0.0
      %1984 = vmatmul.mubr.f32.gmra.mrb[0].mxu0 %v1887
      %v1985 = vpop.f32.mrb[0].mxu0
      %v1986 = vadd.f32 0.0, %v1985
      %v1987 = vpop.f32.mrb[0].mxu0
      %1988 = vmatprep.mubr.f32.mxu0 0.0
      %1989 = vmatmul.mubr.f32.gmra.mrb[0].mxu0 %v1888
      %v1990 = vpop.f32.mrb[0].mxu0
      %v1991 = vadd.f32 0.0, %v1990
      %v1992 = vpop.f32.mrb[0].mxu0
      %1993 = vmatprep.mubr.f32.mxu0 0.0
      %1994 = vmatmul.mubr.f32.gmra.mrb[0].mxu0 %v1889
      %v1995 = vpop.f32.mrb[0].mxu0
      %v1996 = vadd.f32 0.0, %v1995
      %v1997 = vpop.f32.mrb[0].mxu0
      %1998 = vmatprep.mubr.f32.mxu0 0.0
      %1999 = vmatmul.mubr.f32.gmra.mrb[0].mxu0 %v1890
      %v2000 = vpop.f32.mrb[0].mxu0
      %v2001 = vadd.f32 0.0, %v2000
      %v2002 = vpop.f32.mrb[0].mxu0
      %2003 = vmatprep.mubr.f32.mxu0 0.0
      %2004 = vmatmul.mubr.f32.gmra.mrb[0].mxu0 %v1891
      %v2005 = vpop.f32.mrb[0].mxu0
      %v2006 = vadd.f32 0.0, %v2005
      %v2007 = vpop.f32.mrb[0].mxu0
      %2008 = vmatprep.mubr.f32.mxu0 0.0
      %2009 = vmatmul.mubr.f32.gmra.mrb[0].mxu0 %v1892
      %v2010 = vpop.f32.mrb[0].mxu0
      %v2011 = vadd.f32 0.0, %v2010
      %v2012 = vpop.f32.mrb[0].mxu0
      %2013 = vmatprep.mubr.f32.mxu0 0.0
      %2014 = vmatmul.mubr.f32.gmra.mrb[0].mxu0 %v1893
      %v2015 = vpop.f32.mrb[0].mxu0
      %v2016 = vadd.f32 0.0, %v2015
      %v2017 = vpop.f32.mrb[0].mxu0
      %2018 = vmatprep.mubr.f32.mxu0 0.0
      %2019 = vmatmul.mubr.f32.gmra.mrb[0].mxu0 %v1894
      %v2020 = vpop.f32.mrb[0].mxu0
      %v2021 = vadd.f32 0.0, %v2020
      %v2022 = vpop.f32.mrb[0].mxu0
      %2023 = vmatprep.mubr.f32.mxu0 0.0
      %2024 = vmatmul.mubr.f32.gmra.mrb[0].mxu0 %v1895
      %v2025 = vpop.f32.mrb[0].mxu0
      %v2026 = vadd.f32 0.0, %v2025
      %v2027 = vpop.f32.mrb[0].mxu0
      %2028 = vmatprep.mubr.f32.mxu0 0.0
      %2029 = vmatmul.mubr.f32.gmra.mrb[0].mxu0 %v1896
      %v2030 = vpop.f32.mrb[0].mxu0
      %v2031 = vadd.f32 0.0, %v2030
      %v2032 = vpop.f32.mrb[0].mxu0
      %2033 = vmatprep.mubr.f32.mxu0 0.0
      %2034 = vmatmul.mubr.f32.gmra.mrb[0].mxu0 %v1897
      %v2035 = vpop.f32.mrb[0].mxu0
      %v2036 = vadd.f32 0.0, %v2035
      %v2037 = vpop.f32.mrb[0].mxu0
      %2038 = vdwg.mxu0
      %v2039 = vadd.f32 %v1874, %v1981
      %v2040 = vadd.f32 %v1875, %v1986
      %v2041 = vadd.f32 %v1876, %v1991
      %v2042 = vadd.f32 %v1877, %v1996
      %v2043 = vadd.f32 %v1878, %v2001
      %v2044 = vadd.f32 %v1879, %v2006
      %v2045 = vadd.f32 %v1880, %v2011
      %v2046 = vadd.f32 %v1881, %v2016
      %v2047 = vadd.f32 %v1882, %v2021
      %v2048 = vadd.f32 %v1883, %v2026
      %v2049 = vadd.f32 %v1884, %v2031
      %v2050 = vadd.f32 %v1885, %v2036
      %v2051 = vld [vmem:[%s4] sm:$0x1]
      %v2053 = vlaneseq
      %v2054 = vshrl.u32 %v2053, 7
      %v2055 = vsub.s32 0, %v2054
      %v2056 = vrot.slane %v2051, %v2055
      %v2058 = vadd.f32 %v2039, %v2056
      %v2059 = vadd.f32 %v2040, %v2056
      %v2060 = vadd.f32 %v2041, %v2056
      %v2061 = vadd.f32 %v2042, %v2056
      %v2062 = vadd.f32 %v2043, %v2056
      %v2063 = vadd.f32 %v2044, %v2056
      %v2064 = vadd.f32 %v2045, %v2056
      %v2065 = vadd.f32 %v2046, %v2056
      %v2066 = vadd.f32 %v2047, %v2056
      %v2067 = vadd.f32 %v2048, %v2056
      %v2068 = vadd.f32 %v2049, %v2056
      %v2069 = vadd.f32 %v2050, %v2056
      %v2070 = vmax.f32 %v2058, 0.0
      %v2071 = vmax.f32 %v2059, 0.0
      %v2072 = vmax.f32 %v2060, 0.0
      %v2073 = vmax.f32 %v2061, 0.0
      %v2074 = vmax.f32 %v2062, 0.0
      %v2075 = vmax.f32 %v2063, 0.0
      %v2076 = vmax.f32 %v2064, 0.0
      %v2077 = vmax.f32 %v2065, 0.0
      %v2078 = vmax.f32 %v2066, 0.0
      %v2079 = vmax.f32 %v2067, 0.0
      %v2080 = vmax.f32 %v2068, 0.0
      %v2081 = vmax.f32 %v2069, 0.0
      %2082 = vst.msk [vmem:[#allocation3] sm:$0xff] %vm1374, %v2070
      %2083 = vst.msk [vmem:[#allocation3 + $0x8] sm:$0xff] %vm1374, %v2071
      %2084 = vst.msk [vmem:[#allocation3 + $0x10] sm:$0xff] %vm1374, %v2072
      %2085 = vst.msk [vmem:[#allocation3 + $0x18] sm:$0xff] %vm1374, %v2073
      %2086 = vst.msk [vmem:[#allocation3 + $0x20] sm:$0xff] %vm1374, %v2074
      %2087 = vst.msk [vmem:[#allocation3 + $0x28] sm:$0xff] %vm1374, %v2075
      %2088 = vst.msk [vmem:[#allocation3 + $0x30] sm:$0xff] %vm1374, %v2076
      %2089 = vst.msk [vmem:[#allocation3 + $0x38] sm:$0xff] %vm1374, %v2077
      %2090 = vst.msk [vmem:[#allocation3 + $0x40] sm:$0xff] %vm1374, %v2078
      %2091 = vst.msk [vmem:[#allocation3 + $0x48] sm:$0xff] %vm1374, %v2079
      %2092 = vst.msk [vmem:[#allocation3 + $0x50] sm:$0xff] %vm1374, %v2080
      %vm2093 = vcmask 516096
      %2094 = vst.msk [vmem:[#allocation3 + $0x58] sm:$0x1] %vm2093, %v2081
      %v2095 = vld [vmem:[#allocation3] sm:$0xff]
      %v2096 = vld [vmem:[#allocation3 + $0x8] sm:$0xff]
      %v2097 = vld [vmem:[#allocation3 + $0x10] sm:$0xff]
      %v2098 = vld [vmem:[#allocation3 + $0x18] sm:$0xff]
      %v2099 = vld [vmem:[#allocation3 + $0x20] sm:$0xff]
      %v2100 = vld [vmem:[#allocation3 + $0x28] sm:$0xff]
      %v2101 = vld [vmem:[#allocation3 + $0x30] sm:$0xff]
      %v2102 = vld [vmem:[#allocation3 + $0x38] sm:$0xff]
      %v2103 = vld [vmem:[#allocation3 + $0x40] sm:$0x7]
      %v2104 = vld [vmem:[%s5] sm:$0xff]
      %v2105 = vld [vmem:[%s5 + $0x8] sm:$0xff]
      %v2106 = vld [vmem:[%s5 + $0x10] sm:$0xff]
      %v2107 = vld [vmem:[%s5 + $0x18] sm:$0xff]
      %v2108 = vld [vmem:[%s5 + $0x20] sm:$0xff]
      %v2109 = vld [vmem:[%s5 + $0x28] sm:$0xff]
      %v2110 = vld [vmem:[%s5 + $0x30] sm:$0xff]
      %v2111 = vld [vmem:[%s5 + $0x38] sm:$0xff]
      %v2112 = vld [vmem:[#allocation3 + $0x1] sm:$0xff]
      %v2113 = vld [vmem:[#allocation3 + $0x9] sm:$0xff]
      %v2114 = vld [vmem:[#allocation3 + $0x11] sm:$0xff]
      %v2115 = vld [vmem:[#allocation3 + $0x19] sm:$0xff]
      %v2116 = vld [vmem:[#allocation3 + $0x21] sm:$0xff]
      %v2117 = vld [vmem:[#allocation3 + $0x29] sm:$0xff]
      %v2118 = vld [vmem:[#allocation3 + $0x31] sm:$0xff]
      %v2119 = vld [vmem:[#allocation3 + $0x39] sm:$0xff]
      %v2120 = vld [vmem:[#allocation3 + $0x41] sm:$0x7]
      %v2121 = vld [vmem:[%s5 + $0x40] sm:$0xff]
      %v2122 = vld [vmem:[%s5 + $0x48] sm:$0xff]
      %v2123 = vld [vmem:[%s5 + $0x50] sm:$0xff]
      %v2124 = vld [vmem:[%s5 + $0x58] sm:$0xff]
      %v2125 = vld [vmem:[%s5 + $0x60] sm:$0xff]
      %v2126 = vld [vmem:[%s5 + $0x68] sm:$0xff]
      %v2127 = vld [vmem:[%s5 + $0x70] sm:$0xff]
      %v2128 = vld [vmem:[%s5 + $0x78] sm:$0xff]
      %v2130 = vsel %vm1374, %v2112, 0
      %v2133 = vsel %vm1374, %v2113, 0
      %v2136 = vsel %vm1374, %v2114, 0
      %v2139 = vsel %vm1374, %v2115, 0
      %v2142 = vsel %vm1374, %v2116, 0
      %v2145 = vsel %vm1374, %v2117, 0
      %v2148 = vsel %vm1374, %v2118, 0
      %v2151 = vsel %vm1374, %v2119, 0
      %v2154 = vsel %vm1374, %v2120, 0
      %2156 = vmatprep.subr.mxu0 0.0
      %2157 = vmatpush1.msra.mxu0 %v2121
      %2158 = vmatprep.subr.mxu0 0.0
      %2159 = vmatpush1.msra.mxu0 %v2122
      %2160 = vmatprep.subr.mxu0 0.0
      %2161 = vmatpush1.msra.mxu0 %v2123
      %2162 = vmatprep.subr.mxu0 0.0
      %2163 = vmatpush1.msra.mxu0 %v2124
      %2164 = vmatprep.subr.mxu0 0.0
      %2165 = vmatpush1.msra.mxu0 %v2125
      %2166 = vmatprep.subr.mxu0 0.0
      %2167 = vmatpush1.msra.mxu0 %v2126
      %2168 = vmatprep.subr.mxu0 0.0
      %2169 = vmatpush1.msra.mxu0 %v2127
      %2170 = vmatprep.subr.mxu0 0.0
      %2171 = vmatpush1.msra.mxu0 %v2128
      %2172 = vmatprep.subr.mxu0 0.0
      %2173 = vmatpush1.msra.mxu0 0.0
      %2174 = vmatprep.subr.mxu0 0.0
      %2175 = vmatpush1.msra.mxu0 0.0
      %2176 = vmatprep.subr.mxu0 0.0
      %2177 = vmatpush1.msra.mxu0 0.0
      %2178 = vmatprep.subr.mxu0 0.0
      %2179 = vmatpush1.msra.mxu0 0.0
      %2180 = vmatprep.subr.mxu0 0.0
      %2181 = vmatpush1.msra.mxu0 0.0
      %2182 = vmatprep.subr.mxu0 0.0
      %2183 = vmatpush1.msra.mxu0 0.0
      %2184 = vmatprep.subr.mxu0 0.0
      %2185 = vmatpush1.msra.mxu0 0.0
      %2186 = vmatprep.subr.mxu0 0.0
      %2187 = vmatpush1.msra.mxu0 0.0
      %2188 = vmatprep.subr.mxu0 0.0
      %2189 = vmatpush1.msra.mxu0 0.0
      %2190 = vmatprep.subr.mxu0 0.0
      %2191 = vmatpush1.msra.mxu0 0.0
      %2192 = vmatprep.subr.mxu0 0.0
      %2193 = vmatpush1.msra.mxu0 0.0
      %2194 = vmatprep.subr.mxu0 0.0
      %2195 = vmatpush1.msra.mxu0 0.0
      %2196 = vmatprep.subr.mxu0 0.0
      %2197 = vmatpush1.msra.mxu0 0.0
      %2198 = vmatprep.subr.mxu0 0.0
      %2199 = vmatpush1.msra.mxu0 0.0
      %2200 = vmatprep.subr.mxu0 0.0
      %2201 = vmatpush1.msra.mxu0 0.0
      %2202 = vmatprep.subr.mxu0 0.0
      %2203 = vmatpush1.msra.mxu0 0.0
      %2204 = vmatprep.subr.mxu0 0.0
      %2205 = vmatpush1.msra.mxu0 0.0
      %2206 = vmatprep.subr.mxu0 0.0
      %2207 = vmatpush1.msra.mxu0 0.0
      %2208 = vmatprep.subr.mxu0 0.0
      %2209 = vmatpush1.msra.mxu0 0.0
      %2210 = vmatprep.subr.mxu0 0.0
      %2211 = vmatpush1.msra.mxu0 0.0
      %2212 = vmatprep.subr.mxu0 0.0
      %2213 = vmatpush1.msra.mxu0 0.0
      %2214 = vmatprep.subr.mxu0 0.0
      %2215 = vmatpush1.msra.mxu0 0.0
      %2216 = vmatprep.subr.mxu0 0.0
      %2217 = vmatpush1.msra.mxu0 0.0
      %2218 = vmatprep.subr.mxu0 0.0
      %2219 = vmatpush1.msra.mxu0 0.0
      %2220 = vmatprep.mubr.f32.mxu0 0.0
      %2221 = vmatmul.mubr.f32.gmra.mrb[0].mxu0 %v2130
      %v2222 = vpop.f32.mrb[0].mxu0
      %v2223 = vadd.f32 0.0, %v2222
      %v2224 = vpop.f32.mrb[0].mxu0
      %2225 = vmatprep.mubr.f32.mxu0 0.0
      %2226 = vmatmul.mubr.f32.gmra.mrb[0].mxu0 %v2133
      %v2227 = vpop.f32.mrb[0].mxu0
      %v2228 = vadd.f32 0.0, %v2227
      %v2229 = vpop.f32.mrb[0].mxu0
      %2230 = vmatprep.mubr.f32.mxu0 0.0
      %2231 = vmatmul.mubr.f32.gmra.mrb[0].mxu0 %v2136
      %v2232 = vpop.f32.mrb[0].mxu0
      %v2233 = vadd.f32 0.0, %v2232
      %v2234 = vpop.f32.mrb[0].mxu0
      %2235 = vmatprep.mubr.f32.mxu0 0.0
      %2236 = vmatmul.mubr.f32.gmra.mrb[0].mxu0 %v2139
      %v2237 = vpop.f32.mrb[0].mxu0
      %v2238 = vadd.f32 0.0, %v2237
      %v2239 = vpop.f32.mrb[0].mxu0
      %2240 = vmatprep.mubr.f32.mxu0 0.0
      %2241 = vmatmul.mubr.f32.gmra.mrb[0].mxu0 %v2142
      %v2242 = vpop.f32.mrb[0].mxu0
      %v2243 = vadd.f32 0.0, %v2242
      %v2244 = vpop.f32.mrb[0].mxu0
      %2245 = vmatprep.mubr.f32.mxu0 0.0
      %2246 = vmatmul.mubr.f32.gmra.mrb[0].mxu0 %v2145
      %v2247 = vpop.f32.mrb[0].mxu0
      %v2248 = vadd.f32 0.0, %v2247
      %v2249 = vpop.f32.mrb[0].mxu0
      %2250 = vmatprep.mubr.f32.mxu0 0.0
      %2251 = vmatmul.mubr.f32.gmra.mrb[0].mxu0 %v2148
      %v2252 = vpop.f32.mrb[0].mxu0
      %v2253 = vadd.f32 0.0, %v2252
      %v2254 = vpop.f32.mrb[0].mxu0
      %2255 = vmatprep.mubr.f32.mxu0 0.0
      %2256 = vmatmul.mubr.f32.gmra.mrb[0].mxu0 %v2151
      %v2257 = vpop.f32.mrb[0].mxu0
      %v2258 = vadd.f32 0.0, %v2257
      %v2259 = vpop.f32.mrb[0].mxu0
      %2260 = vmatprep.mubr.f32.mxu0 0.0
      %2261 = vmatmul.mubr.f32.gmra.mrb[0].mxu0 %v2154
      %v2262 = vpop.f32.mrb[0].mxu0
      %v2263 = vadd.f32 0.0, %v2262
      %v2264 = vpop.f32.mrb[0].mxu0
      %2265 = vdwg.mxu0
      %v2267 = vsel %vm1374, %v2095, 0
      %v2270 = vsel %vm1374, %v2096, 0
      %v2273 = vsel %vm1374, %v2097, 0
      %v2276 = vsel %vm1374, %v2098, 0
      %v2279 = vsel %vm1374, %v2099, 0
      %v2282 = vsel %vm1374, %v2100, 0
      %v2285 = vsel %vm1374, %v2101, 0
      %v2288 = vsel %vm1374, %v2102, 0
      %v2291 = vsel %vm1374, %v2103, 0
      %2293 = vmatprep.subr.mxu0 0.0
      %2294 = vmatpush1.msra.mxu0 %v2104
      %2295 = vmatprep.subr.mxu0 0.0
      %2296 = vmatpush1.msra.mxu0 %v2105
      %2297 = vmatprep.subr.mxu0 0.0
      %2298 = vmatpush1.msra.mxu0 %v2106
      %2299 = vmatprep.subr.mxu0 0.0
      %2300 = vmatpush1.msra.mxu0 %v2107
      %2301 = vmatprep.subr.mxu0 0.0
      %2302 = vmatpush1.msra.mxu0 %v2108
      %2303 = vmatprep.subr.mxu0 0.0
      %2304 = vmatpush1.msra.mxu0 %v2109
      %2305 = vmatprep.subr.mxu0 0.0
      %2306 = vmatpush1.msra.mxu0 %v2110
      %2307 = vmatprep.subr.mxu0 0.0
      %2308 = vmatpush1.msra.mxu0 %v2111
      %2309 = vmatprep.subr.mxu0 0.0
      %2310 = vmatpush1.msra.mxu0 0.0
      %2311 = vmatprep.subr.mxu0 0.0
      %2312 = vmatpush1.msra.mxu0 0.0
      %2313 = vmatprep.subr.mxu0 0.0
      %2314 = vmatpush1.msra.mxu0 0.0
      %2315 = vmatprep.subr.mxu0 0.0
      %2316 = vmatpush1.msra.mxu0 0.0
      %2317 = vmatprep.subr.mxu0 0.0
      %2318 = vmatpush1.msra.mxu0 0.0
      %2319 = vmatprep.subr.mxu0 0.0
      %2320 = vmatpush1.msra.mxu0 0.0
      %2321 = vmatprep.subr.mxu0 0.0
      %2322 = vmatpush1.msra.mxu0 0.0
      %2323 = vmatprep.subr.mxu0 0.0
      %2324 = vmatpush1.msra.mxu0 0.0
      %2325 = vmatprep.subr.mxu0 0.0
      %2326 = vmatpush1.msra.mxu0 0.0
      %2327 = vmatprep.subr.mxu0 0.0
      %2328 = vmatpush1.msra.mxu0 0.0
      %2329 = vmatprep.subr.mxu0 0.0
      %2330 = vmatpush1.msra.mxu0 0.0
      %2331 = vmatprep.subr.mxu0 0.0
      %2332 = vmatpush1.msra.mxu0 0.0
      %2333 = vmatprep.subr.mxu0 0.0
      %2334 = vmatpush1.msra.mxu0 0.0
      %2335 = vmatprep.subr.mxu0 0.0
      %2336 = vmatpush1.msra.mxu0 0.0
      %2337 = vmatprep.subr.mxu0 0.0
      %2338 = vmatpush1.msra.mxu0 0.0
      %2339 = vmatprep.subr.mxu0 0.0
      %2340 = vmatpush1.msra.mxu0 0.0
      %2341 = vmatprep.subr.mxu0 0.0
      %2342 = vmatpush1.msra.mxu0 0.0
      %2343 = vmatprep.subr.mxu0 0.0
      %2344 = vmatpush1.msra.mxu0 0.0
      %2345 = vmatprep.subr.mxu0 0.0
      %2346 = vmatpush1.msra.mxu0 0.0
      %2347 = vmatprep.subr.mxu0 0.0
      %2348 = vmatpush1.msra.mxu0 0.0
      %2349 = vmatprep.subr.mxu0 0.0
      %2350 = vmatpush1.msra.mxu0 0.0
      %2351 = vmatprep.subr.mxu0 0.0
      %2352 = vmatpush1.msra.mxu0 0.0
      %2353 = vmatprep.subr.mxu0 0.0
      %2354 = vmatpush1.msra.mxu0 0.0
      %2355 = vmatprep.subr.mxu0 0.0
      %2356 = vmatpush1.msra.mxu0 0.0
      %2357 = vmatprep.mubr.f32.mxu0 0.0
      %2358 = vmatmul.mubr.f32.gmra.mrb[0].mxu0 %v2267
      %v2359 = vpop.f32.mrb[0].mxu0
      %v2360 = vadd.f32 %v2223, %v2359
      %v2361 = vpop.f32.mrb[0].mxu0
      %2362 = vmatprep.mubr.f32.mxu0 0.0
      %2363 = vmatmul.mubr.f32.gmra.mrb[0].mxu0 %v2270
      %v2364 = vpop.f32.mrb[0].mxu0
      %v2365 = vadd.f32 %v2228, %v2364
      %v2366 = vpop.f32.mrb[0].mxu0
      %2367 = vmatprep.mubr.f32.mxu0 0.0
      %2368 = vmatmul.mubr.f32.gmra.mrb[0].mxu0 %v2273
      %v2369 = vpop.f32.mrb[0].mxu0
      %v2370 = vadd.f32 %v2233, %v2369
      %v2371 = vpop.f32.mrb[0].mxu0
      %2372 = vmatprep.mubr.f32.mxu0 0.0
      %2373 = vmatmul.mubr.f32.gmra.mrb[0].mxu0 %v2276
      %v2374 = vpop.f32.mrb[0].mxu0
      %v2375 = vadd.f32 %v2238, %v2374
      %v2376 = vpop.f32.mrb[0].mxu0
      %2377 = vmatprep.mubr.f32.mxu0 0.0
      %2378 = vmatmul.mubr.f32.gmra.mrb[0].mxu0 %v2279
      %v2379 = vpop.f32.mrb[0].mxu0
      %v2380 = vadd.f32 %v2243, %v2379
      %v2381 = vpop.f32.mrb[0].mxu0
      %2382 = vmatprep.mubr.f32.mxu0 0.0
      %2383 = vmatmul.mubr.f32.gmra.mrb[0].mxu0 %v2282
      %v2384 = vpop.f32.mrb[0].mxu0
      %v2385 = vadd.f32 %v2248, %v2384
      %v2386 = vpop.f32.mrb[0].mxu0
      %2387 = vmatprep.mubr.f32.mxu0 0.0
      %2388 = vmatmul.mubr.f32.gmra.mrb[0].mxu0 %v2285
      %v2389 = vpop.f32.mrb[0].mxu0
      %v2390 = vadd.f32 %v2253, %v2389
      %v2391 = vpop.f32.mrb[0].mxu0
      %2392 = vmatprep.mubr.f32.mxu0 0.0
      %2393 = vmatmul.mubr.f32.gmra.mrb[0].mxu0 %v2288
      %v2394 = vpop.f32.mrb[0].mxu0
      %v2395 = vadd.f32 %v2258, %v2394
      %v2396 = vpop.f32.mrb[0].mxu0
      %2397 = vmatprep.mubr.f32.mxu0 0.0
      %2398 = vmatmul.mubr.f32.gmra.mrb[0].mxu0 %v2291
      %v2399 = vpop.f32.mrb[0].mxu0
      %v2400 = vadd.f32 %v2263, %v2399
      %v2401 = vpop.f32.mrb[0].mxu0
      %2402 = vdwg.mxu0
      %v2403 = vld [vmem:[#allocation3 + $0x2] sm:$0xff]
      %v2404 = vld [vmem:[#allocation3 + $0xa] sm:$0xff]
      %v2405 = vld [vmem:[#allocation3 + $0x12] sm:$0xff]
      %v2406 = vld [vmem:[#allocation3 + $0x1a] sm:$0xff]
      %v2407 = vld [vmem:[#allocation3 + $0x22] sm:$0xff]
      %v2408 = vld [vmem:[#allocation3 + $0x2a] sm:$0xff]
      %v2409 = vld [vmem:[#allocation3 + $0x32] sm:$0xff]
      %v2410 = vld [vmem:[#allocation3 + $0x3a] sm:$0xff]
      %v2411 = vld [vmem:[#allocation3 + $0x42] sm:$0x7]
      %v2412 = vld [vmem:[%s5 + $0x80] sm:$0xff]
      %v2413 = vld [vmem:[%s5 + $0x88] sm:$0xff]
      %v2414 = vld [vmem:[%s5 + $0x90] sm:$0xff]
      %v2415 = vld [vmem:[%s5 + $0x98] sm:$0xff]
      %v2416 = vld [vmem:[%s5 + $0xa0] sm:$0xff]
      %v2417 = vld [vmem:[%s5 + $0xa8] sm:$0xff]
      %v2418 = vld [vmem:[%s5 + $0xb0] sm:$0xff]
      %v2419 = vld [vmem:[%s5 + $0xb8] sm:$0xff]
      %v2421 = vsel %vm1374, %v2403, 0
      %v2424 = vsel %vm1374, %v2404, 0
      %v2427 = vsel %vm1374, %v2405, 0
      %v2430 = vsel %vm1374, %v2406, 0
      %v2433 = vsel %vm1374, %v2407, 0
      %v2436 = vsel %vm1374, %v2408, 0
      %v2439 = vsel %vm1374, %v2409, 0
      %v2442 = vsel %vm1374, %v2410, 0
      %v2445 = vsel %vm1374, %v2411, 0
      %2447 = vmatprep.subr.mxu0 0.0
      %2448 = vmatpush1.msra.mxu0 %v2412
      %2449 = vmatprep.subr.mxu0 0.0
      %2450 = vmatpush1.msra.mxu0 %v2413
      %2451 = vmatprep.subr.mxu0 0.0
      %2452 = vmatpush1.msra.mxu0 %v2414
      %2453 = vmatprep.subr.mxu0 0.0
      %2454 = vmatpush1.msra.mxu0 %v2415
      %2455 = vmatprep.subr.mxu0 0.0
      %2456 = vmatpush1.msra.mxu0 %v2416
      %2457 = vmatprep.subr.mxu0 0.0
      %2458 = vmatpush1.msra.mxu0 %v2417
      %2459 = vmatprep.subr.mxu0 0.0
      %2460 = vmatpush1.msra.mxu0 %v2418
      %2461 = vmatprep.subr.mxu0 0.0
      %2462 = vmatpush1.msra.mxu0 %v2419
      %2463 = vmatprep.subr.mxu0 0.0
      %2464 = vmatpush1.msra.mxu0 0.0
      %2465 = vmatprep.subr.mxu0 0.0
      %2466 = vmatpush1.msra.mxu0 0.0
      %2467 = vmatprep.subr.mxu0 0.0
      %2468 = vmatpush1.msra.mxu0 0.0
      %2469 = vmatprep.subr.mxu0 0.0
      %2470 = vmatpush1.msra.mxu0 0.0
      %2471 = vmatprep.subr.mxu0 0.0
      %2472 = vmatpush1.msra.mxu0 0.0
      %2473 = vmatprep.subr.mxu0 0.0
      %2474 = vmatpush1.msra.mxu0 0.0
      %2475 = vmatprep.subr.mxu0 0.0
      %2476 = vmatpush1.msra.mxu0 0.0
      %2477 = vmatprep.subr.mxu0 0.0
      %2478 = vmatpush1.msra.mxu0 0.0
      %2479 = vmatprep.subr.mxu0 0.0
      %2480 = vmatpush1.msra.mxu0 0.0
      %2481 = vmatprep.subr.mxu0 0.0
      %2482 = vmatpush1.msra.mxu0 0.0
      %2483 = vmatprep.subr.mxu0 0.0
      %2484 = vmatpush1.msra.mxu0 0.0
      %2485 = vmatprep.subr.mxu0 0.0
      %2486 = vmatpush1.msra.mxu0 0.0
      %2487 = vmatprep.subr.mxu0 0.0
      %2488 = vmatpush1.msra.mxu0 0.0
      %2489 = vmatprep.subr.mxu0 0.0
      %2490 = vmatpush1.msra.mxu0 0.0
      %2491 = vmatprep.subr.mxu0 0.0
      %2492 = vmatpush1.msra.mxu0 0.0
      %2493 = vmatprep.subr.mxu0 0.0
      %2494 = vmatpush1.msra.mxu0 0.0
      %2495 = vmatprep.subr.mxu0 0.0
      %2496 = vmatpush1.msra.mxu0 0.0
      %2497 = vmatprep.subr.mxu0 0.0
      %2498 = vmatpush1.msra.mxu0 0.0
      %2499 = vmatprep.subr.mxu0 0.0
      %2500 = vmatpush1.msra.mxu0 0.0
      %2501 = vmatprep.subr.mxu0 0.0
      %2502 = vmatpush1.msra.mxu0 0.0
      %2503 = vmatprep.subr.mxu0 0.0
      %2504 = vmatpush1.msra.mxu0 0.0
      %2505 = vmatprep.subr.mxu0 0.0
      %2506 = vmatpush1.msra.mxu0 0.0
      %2507 = vmatprep.subr.mxu0 0.0
      %2508 = vmatpush1.msra.mxu0 0.0
      %2509 = vmatprep.subr.mxu0 0.0
      %2510 = vmatpush1.msra.mxu0 0.0
      %2511 = vmatprep.mubr.f32.mxu0 0.0
      %2512 = vmatmul.mubr.f32.gmra.mrb[0].mxu0 %v2421
      %v2513 = vpop.f32.mrb[0].mxu0
      %v2514 = vadd.f32 0.0, %v2513
      %v2515 = vpop.f32.mrb[0].mxu0
      %2516 = vmatprep.mubr.f32.mxu0 0.0
      %2517 = vmatmul.mubr.f32.gmra.mrb[0].mxu0 %v2424
      %v2518 = vpop.f32.mrb[0].mxu0
      %v2519 = vadd.f32 0.0, %v2518
      %v2520 = vpop.f32.mrb[0].mxu0
      %2521 = vmatprep.mubr.f32.mxu0 0.0
      %2522 = vmatmul.mubr.f32.gmra.mrb[0].mxu0 %v2427
      %v2523 = vpop.f32.mrb[0].mxu0
      %v2524 = vadd.f32 0.0, %v2523
      %v2525 = vpop.f32.mrb[0].mxu0
      %2526 = vmatprep.mubr.f32.mxu0 0.0
      %2527 = vmatmul.mubr.f32.gmra.mrb[0].mxu0 %v2430
      %v2528 = vpop.f32.mrb[0].mxu0
      %v2529 = vadd.f32 0.0, %v2528
      %v2530 = vpop.f32.mrb[0].mxu0
      %2531 = vmatprep.mubr.f32.mxu0 0.0
      %2532 = vmatmul.mubr.f32.gmra.mrb[0].mxu0 %v2433
      %v2533 = vpop.f32.mrb[0].mxu0
      %v2534 = vadd.f32 0.0, %v2533
      %v2535 = vpop.f32.mrb[0].mxu0
      %2536 = vmatprep.mubr.f32.mxu0 0.0
      %2537 = vmatmul.mubr.f32.gmra.mrb[0].mxu0 %v2436
      %v2538 = vpop.f32.mrb[0].mxu0
      %v2539 = vadd.f32 0.0, %v2538
      %v2540 = vpop.f32.mrb[0].mxu0
      %2541 = vmatprep.mubr.f32.mxu0 0.0
      %2542 = vmatmul.mubr.f32.gmra.mrb[0].mxu0 %v2439
      %v2543 = vpop.f32.mrb[0].mxu0
      %v2544 = vadd.f32 0.0, %v2543
      %v2545 = vpop.f32.mrb[0].mxu0
      %2546 = vmatprep.mubr.f32.mxu0 0.0
      %2547 = vmatmul.mubr.f32.gmra.mrb[0].mxu0 %v2442
      %v2548 = vpop.f32.mrb[0].mxu0
      %v2549 = vadd.f32 0.0, %v2548
      %v2550 = vpop.f32.mrb[0].mxu0
      %2551 = vmatprep.mubr.f32.mxu0 0.0
      %2552 = vmatmul.mubr.f32.gmra.mrb[0].mxu0 %v2445
      %v2553 = vpop.f32.mrb[0].mxu0
      %v2554 = vadd.f32 0.0, %v2553
      %v2555 = vpop.f32.mrb[0].mxu0
      %2556 = vdwg.mxu0
      %v2557 = vadd.f32 %v2360, %v2514
      %v2558 = vadd.f32 %v2365, %v2519
      %v2559 = vadd.f32 %v2370, %v2524
      %v2560 = vadd.f32 %v2375, %v2529
      %v2561 = vadd.f32 %v2380, %v2534
      %v2562 = vadd.f32 %v2385, %v2539
      %v2563 = vadd.f32 %v2390, %v2544
      %v2564 = vadd.f32 %v2395, %v2549
      %v2565 = vadd.f32 %v2400, %v2554
      %v2566 = vld [vmem:[#allocation3 + $0xa] sm:$0xff]
      %v2567 = vld [vmem:[#allocation3 + $0x12] sm:$0xff]
      %v2568 = vld [vmem:[#allocation3 + $0x1a] sm:$0xff]
      %v2569 = vld [vmem:[#allocation3 + $0x22] sm:$0xff]
      %v2570 = vld [vmem:[#allocation3 + $0x2a] sm:$0xff]
      %v2571 = vld [vmem:[#allocation3 + $0x32] sm:$0xff]
      %v2572 = vld [vmem:[#allocation3 + $0x3a] sm:$0xff]
      %v2573 = vld [vmem:[#allocation3 + $0x42] sm:$0xff]
      %v2574 = vld [vmem:[#allocation3 + $0x4a] sm:$0x7]
      %v2575 = vld [vmem:[%s5 + $0xc0] sm:$0xff]
      %v2576 = vld [vmem:[%s5 + $0xc8] sm:$0xff]
      %v2577 = vld [vmem:[%s5 + $0xd0] sm:$0xff]
      %v2578 = vld [vmem:[%s5 + $0xd8] sm:$0xff]
      %v2579 = vld [vmem:[%s5 + $0xe0] sm:$0xff]
      %v2580 = vld [vmem:[%s5 + $0xe8] sm:$0xff]
      %v2581 = vld [vmem:[%s5 + $0xf0] sm:$0xff]
      %v2582 = vld [vmem:[%s5 + $0xf8] sm:$0xff]
      %v2584 = vsel %vm1374, %v2566, 0
      %v2587 = vsel %vm1374, %v2567, 0
      %v2590 = vsel %vm1374, %v2568, 0
      %v2593 = vsel %vm1374, %v2569, 0
      %v2596 = vsel %vm1374, %v2570, 0
      %v2599 = vsel %vm1374, %v2571, 0
      %v2602 = vsel %vm1374, %v2572, 0
      %v2605 = vsel %vm1374, %v2573, 0
      %v2608 = vsel %vm1374, %v2574, 0
      %2610 = vmatprep.subr.mxu0 0.0
      %2611 = vmatpush1.msra.mxu0 %v2575
      %2612 = vmatprep.subr.mxu0 0.0
      %2613 = vmatpush1.msra.mxu0 %v2576
      %2614 = vmatprep.subr.mxu0 0.0
      %2615 = vmatpush1.msra.mxu0 %v2577
      %2616 = vmatprep.subr.mxu0 0.0
      %2617 = vmatpush1.msra.mxu0 %v2578
      %2618 = vmatprep.subr.mxu0 0.0
      %2619 = vmatpush1.msra.mxu0 %v2579
      %2620 = vmatprep.subr.mxu0 0.0
      %2621 = vmatpush1.msra.mxu0 %v2580
      %2622 = vmatprep.subr.mxu0 0.0
      %2623 = vmatpush1.msra.mxu0 %v2581
      %2624 = vmatprep.subr.mxu0 0.0
      %2625 = vmatpush1.msra.mxu0 %v2582
      %2626 = vmatprep.subr.mxu0 0.0
      %2627 = vmatpush1.msra.mxu0 0.0
      %2628 = vmatprep.subr.mxu0 0.0
      %2629 = vmatpush1.msra.mxu0 0.0
      %2630 = vmatprep.subr.mxu0 0.0
      %2631 = vmatpush1.msra.mxu0 0.0
      %2632 = vmatprep.subr.mxu0 0.0
      %2633 = vmatpush1.msra.mxu0 0.0
      %2634 = vmatprep.subr.mxu0 0.0
      %2635 = vmatpush1.msra.mxu0 0.0
      %2636 = vmatprep.subr.mxu0 0.0
      %2637 = vmatpush1.msra.mxu0 0.0
      %2638 = vmatprep.subr.mxu0 0.0
      %2639 = vmatpush1.msra.mxu0 0.0
      %2640 = vmatprep.subr.mxu0 0.0
      %2641 = vmatpush1.msra.mxu0 0.0
      %2642 = vmatprep.subr.mxu0 0.0
      %2643 = vmatpush1.msra.mxu0 0.0
      %2644 = vmatprep.subr.mxu0 0.0
      %2645 = vmatpush1.msra.mxu0 0.0
      %2646 = vmatprep.subr.mxu0 0.0
      %2647 = vmatpush1.msra.mxu0 0.0
      %2648 = vmatprep.subr.mxu0 0.0
      %2649 = vmatpush1.msra.mxu0 0.0
      %2650 = vmatprep.subr.mxu0 0.0
      %2651 = vmatpush1.msra.mxu0 0.0
      %2652 = vmatprep.subr.mxu0 0.0
      %2653 = vmatpush1.msra.mxu0 0.0
      %2654 = vmatprep.subr.mxu0 0.0
      %2655 = vmatpush1.msra.mxu0 0.0
      %2656 = vmatprep.subr.mxu0 0.0
      %2657 = vmatpush1.msra.mxu0 0.0
      %2658 = vmatprep.subr.mxu0 0.0
      %2659 = vmatpush1.msra.mxu0 0.0
      %2660 = vmatprep.subr.mxu0 0.0
      %2661 = vmatpush1.msra.mxu0 0.0
      %2662 = vmatprep.subr.mxu0 0.0
      %2663 = vmatpush1.msra.mxu0 0.0
      %2664 = vmatprep.subr.mxu0 0.0
      %2665 = vmatpush1.msra.mxu0 0.0
      %2666 = vmatprep.subr.mxu0 0.0
      %2667 = vmatpush1.msra.mxu0 0.0
      %2668 = vmatprep.subr.mxu0 0.0
      %2669 = vmatpush1.msra.mxu0 0.0
      %2670 = vmatprep.subr.mxu0 0.0
      %2671 = vmatpush1.msra.mxu0 0.0
      %2672 = vmatprep.subr.mxu0 0.0
      %2673 = vmatpush1.msra.mxu0 0.0
      %2674 = vmatprep.mubr.f32.mxu0 0.0
      %2675 = vmatmul.mubr.f32.gmra.mrb[0].mxu0 %v2584
      %v2676 = vpop.f32.mrb[0].mxu0
      %v2677 = vadd.f32 0.0, %v2676
      %v2678 = vpop.f32.mrb[0].mxu0
      %2679 = vmatprep.mubr.f32.mxu0 0.0
      %2680 = vmatmul.mubr.f32.gmra.mrb[0].mxu0 %v2587
      %v2681 = vpop.f32.mrb[0].mxu0
      %v2682 = vadd.f32 0.0, %v2681
      %v2683 = vpop.f32.mrb[0].mxu0
      %2684 = vmatprep.mubr.f32.mxu0 0.0
      %2685 = vmatmul.mubr.f32.gmra.mrb[0].mxu0 %v2590
      %v2686 = vpop.f32.mrb[0].mxu0
      %v2687 = vadd.f32 0.0, %v2686
      %v2688 = vpop.f32.mrb[0].mxu0
      %2689 = vmatprep.mubr.f32.mxu0 0.0
      %2690 = vmatmul.mubr.f32.gmra.mrb[0].mxu0 %v2593
      %v2691 = vpop.f32.mrb[0].mxu0
      %v2692 = vadd.f32 0.0, %v2691
      %v2693 = vpop.f32.mrb[0].mxu0
      %2694 = vmatprep.mubr.f32.mxu0 0.0
      %2695 = vmatmul.mubr.f32.gmra.mrb[0].mxu0 %v2596
      %v2696 = vpop.f32.mrb[0].mxu0
      %v2697 = vadd.f32 0.0, %v2696
      %v2698 = vpop.f32.mrb[0].mxu0
      %2699 = vmatprep.mubr.f32.mxu0 0.0
      %2700 = vmatmul.mubr.f32.gmra.mrb[0].mxu0 %v2599
      %v2701 = vpop.f32.mrb[0].mxu0
      %v2702 = vadd.f32 0.0, %v2701
      %v2703 = vpop.f32.mrb[0].mxu0
      %2704 = vmatprep.mubr.f32.mxu0 0.0
      %2705 = vmatmul.mubr.f32.gmra.mrb[0].mxu0 %v2602
      %v2706 = vpop.f32.mrb[0].mxu0
      %v2707 = vadd.f32 0.0, %v2706
      %v2708 = vpop.f32.mrb[0].mxu0
      %2709 = vmatprep.mubr.f32.mxu0 0.0
      %2710 = vmatmul.mubr.f32.gmra.mrb[0].mxu0 %v2605
      %v2711 = vpop.f32.mrb[0].mxu0
      %v2712 = vadd.f32 0.0, %v2711
      %v2713 = vpop.f32.mrb[0].mxu0
      %2714 = vmatprep.mubr.f32.mxu0 0.0
      %2715 = vmatmul.mubr.f32.gmra.mrb[0].mxu0 %v2608
      %v2716 = vpop.f32.mrb[0].mxu0
      %v2717 = vadd.f32 0.0, %v2716
      %v2718 = vpop.f32.mrb[0].mxu0
      %2719 = vdwg.mxu0
      %v2720 = vadd.f32 %v2557, %v2677
      %v2721 = vadd.f32 %v2558, %v2682
      %v2722 = vadd.f32 %v2559, %v2687
      %v2723 = vadd.f32 %v2560, %v2692
      %v2724 = vadd.f32 %v2561, %v2697
      %v2725 = vadd.f32 %v2562, %v2702
      %v2726 = vadd.f32 %v2563, %v2707
      %v2727 = vadd.f32 %v2564, %v2712
      %v2728 = vadd.f32 %v2565, %v2717
      %v2729 = vld [vmem:[#allocation3 + $0xb] sm:$0xff]
      %v2730 = vld [vmem:[#allocation3 + $0x13] sm:$0xff]
      %v2731 = vld [vmem:[#allocation3 + $0x1b] sm:$0xff]
      %v2732 = vld [vmem:[#allocation3 + $0x23] sm:$0xff]
      %v2733 = vld [vmem:[#allocation3 + $0x2b] sm:$0xff]
      %v2734 = vld [vmem:[#allocation3 + $0x33] sm:$0xff]
      %v2735 = vld [vmem:[#allocation3 + $0x3b] sm:$0xff]
      %v2736 = vld [vmem:[#allocation3 + $0x43] sm:$0xff]
      %v2737 = vld [vmem:[#allocation3 + $0x4b] sm:$0x7]
      %v2738 = vld [vmem:[%s5 + $0x100] sm:$0xff]
      %v2739 = vld [vmem:[%s5 + $0x108] sm:$0xff]
      %v2740 = vld [vmem:[%s5 + $0x110] sm:$0xff]
      %v2741 = vld [vmem:[%s5 + $0x118] sm:$0xff]
      %v2742 = vld [vmem:[%s5 + $0x120] sm:$0xff]
      %v2743 = vld [vmem:[%s5 + $0x128] sm:$0xff]
      %v2744 = vld [vmem:[%s5 + $0x130] sm:$0xff]
      %v2745 = vld [vmem:[%s5 + $0x138] sm:$0xff]
      %v2747 = vsel %vm1374, %v2729, 0
      %v2750 = vsel %vm1374, %v2730, 0
      %v2753 = vsel %vm1374, %v2731, 0
      %v2756 = vsel %vm1374, %v2732, 0
      %v2759 = vsel %vm1374, %v2733, 0
      %v2762 = vsel %vm1374, %v2734, 0
      %v2765 = vsel %vm1374, %v2735, 0
      %v2768 = vsel %vm1374, %v2736, 0
      %v2771 = vsel %vm1374, %v2737, 0
      %2773 = vmatprep.subr.mxu0 0.0
      %2774 = vmatpush1.msra.mxu0 %v2738
      %2775 = vmatprep.subr.mxu0 0.0
      %2776 = vmatpush1.msra.mxu0 %v2739
      %2777 = vmatprep.subr.mxu0 0.0
      %2778 = vmatpush1.msra.mxu0 %v2740
      %2779 = vmatprep.subr.mxu0 0.0
      %2780 = vmatpush1.msra.mxu0 %v2741
      %2781 = vmatprep.subr.mxu0 0.0
      %2782 = vmatpush1.msra.mxu0 %v2742
      %2783 = vmatprep.subr.mxu0 0.0
      %2784 = vmatpush1.msra.mxu0 %v2743
      %2785 = vmatprep.subr.mxu0 0.0
      %2786 = vmatpush1.msra.mxu0 %v2744
      %2787 = vmatprep.subr.mxu0 0.0
      %2788 = vmatpush1.msra.mxu0 %v2745
      %2789 = vmatprep.subr.mxu0 0.0
      %2790 = vmatpush1.msra.mxu0 0.0
      %2791 = vmatprep.subr.mxu0 0.0
      %2792 = vmatpush1.msra.mxu0 0.0
      %2793 = vmatprep.subr.mxu0 0.0
      %2794 = vmatpush1.msra.mxu0 0.0
      %2795 = vmatprep.subr.mxu0 0.0
      %2796 = vmatpush1.msra.mxu0 0.0
      %2797 = vmatprep.subr.mxu0 0.0
      %2798 = vmatpush1.msra.mxu0 0.0
      %2799 = vmatprep.subr.mxu0 0.0
      %2800 = vmatpush1.msra.mxu0 0.0
      %2801 = vmatprep.subr.mxu0 0.0
      %2802 = vmatpush1.msra.mxu0 0.0
      %2803 = vmatprep.subr.mxu0 0.0
      %2804 = vmatpush1.msra.mxu0 0.0
      %2805 = vmatprep.subr.mxu0 0.0
      %2806 = vmatpush1.msra.mxu0 0.0
      %2807 = vmatprep.subr.mxu0 0.0
      %2808 = vmatpush1.msra.mxu0 0.0
      %2809 = vmatprep.subr.mxu0 0.0
      %2810 = vmatpush1.msra.mxu0 0.0
      %2811 = vmatprep.subr.mxu0 0.0
      %2812 = vmatpush1.msra.mxu0 0.0
      %2813 = vmatprep.subr.mxu0 0.0
      %2814 = vmatpush1.msra.mxu0 0.0
      %2815 = vmatprep.subr.mxu0 0.0
      %2816 = vmatpush1.msra.mxu0 0.0
      %2817 = vmatprep.subr.mxu0 0.0
      %2818 = vmatpush1.msra.mxu0 0.0
      %2819 = vmatprep.subr.mxu0 0.0
      %2820 = vmatpush1.msra.mxu0 0.0
      %2821 = vmatprep.subr.mxu0 0.0
      %2822 = vmatpush1.msra.mxu0 0.0
      %2823 = vmatprep.subr.mxu0 0.0
      %2824 = vmatpush1.msra.mxu0 0.0
      %2825 = vmatprep.subr.mxu0 0.0
      %2826 = vmatpush1.msra.mxu0 0.0
      %2827 = vmatprep.subr.mxu0 0.0
      %2828 = vmatpush1.msra.mxu0 0.0
      %2829 = vmatprep.subr.mxu0 0.0
      %2830 = vmatpush1.msra.mxu0 0.0
      %2831 = vmatprep.subr.mxu0 0.0
      %2832 = vmatpush1.msra.mxu0 0.0
      %2833 = vmatprep.subr.mxu0 0.0
      %2834 = vmatpush1.msra.mxu0 0.0
      %2835 = vmatprep.subr.mxu0 0.0
      %2836 = vmatpush1.msra.mxu0 0.0
      %2837 = vmatprep.mubr.f32.mxu0 0.0
      %2838 = vmatmul.mubr.f32.gmra.mrb[0].mxu0 %v2747
      %v2839 = vpop.f32.mrb[0].mxu0
      %v2840 = vadd.f32 0.0, %v2839
      %v2841 = vpop.f32.mrb[0].mxu0
      %2842 = vmatprep.mubr.f32.mxu0 0.0
      %2843 = vmatmul.mubr.f32.gmra.mrb[0].mxu0 %v2750
      %v2844 = vpop.f32.mrb[0].mxu0
      %v2845 = vadd.f32 0.0, %v2844
      %v2846 = vpop.f32.mrb[0].mxu0
      %2847 = vmatprep.mubr.f32.mxu0 0.0
      %2848 = vmatmul.mubr.f32.gmra.mrb[0].mxu0 %v2753
      %v2849 = vpop.f32.mrb[0].mxu0
      %v2850 = vadd.f32 0.0, %v2849
      %v2851 = vpop.f32.mrb[0].mxu0
      %2852 = vmatprep.mubr.f32.mxu0 0.0
      %2853 = vmatmul.mubr.f32.gmra.mrb[0].mxu0 %v2756
      %v2854 = vpop.f32.mrb[0].mxu0
      %v2855 = vadd.f32 0.0, %v2854
      %v2856 = vpop.f32.mrb[0].mxu0
      %2857 = vmatprep.mubr.f32.mxu0 0.0
      %2858 = vmatmul.mubr.f32.gmra.mrb[0].mxu0 %v2759
      %v2859 = vpop.f32.mrb[0].mxu0
      %v2860 = vadd.f32 0.0, %v2859
      %v2861 = vpop.f32.mrb[0].mxu0
      %2862 = vmatprep.mubr.f32.mxu0 0.0
      %2863 = vmatmul.mubr.f32.gmra.mrb[0].mxu0 %v2762
      %v2864 = vpop.f32.mrb[0].mxu0
      %v2865 = vadd.f32 0.0, %v2864
      %v2866 = vpop.f32.mrb[0].mxu0
      %2867 = vmatprep.mubr.f32.mxu0 0.0
      %2868 = vmatmul.mubr.f32.gmra.mrb[0].mxu0 %v2765
      %v2869 = vpop.f32.mrb[0].mxu0
      %v2870 = vadd.f32 0.0, %v2869
      %v2871 = vpop.f32.mrb[0].mxu0
      %2872 = vmatprep.mubr.f32.mxu0 0.0
      %2873 = vmatmul.mubr.f32.gmra.mrb[0].mxu0 %v2768
      %v2874 = vpop.f32.mrb[0].mxu0
      %v2875 = vadd.f32 0.0, %v2874
      %v2876 = vpop.f32.mrb[0].mxu0
      %2877 = vmatprep.mubr.f32.mxu0 0.0
      %2878 = vmatmul.mubr.f32.gmra.mrb[0].mxu0 %v2771
      %v2879 = vpop.f32.mrb[0].mxu0
      %v2880 = vadd.f32 0.0, %v2879
      %v2881 = vpop.f32.mrb[0].mxu0
      %2882 = vdwg.mxu0
      %v2883 = vadd.f32 %v2720, %v2840
      %v2884 = vadd.f32 %v2721, %v2845
      %v2885 = vadd.f32 %v2722, %v2850
      %v2886 = vadd.f32 %v2723, %v2855
      %v2887 = vadd.f32 %v2724, %v2860
      %v2888 = vadd.f32 %v2725, %v2865
      %v2889 = vadd.f32 %v2726, %v2870
      %v2890 = vadd.f32 %v2727, %v2875
      %v2891 = vadd.f32 %v2728, %v2880
      %v2892 = vld [vmem:[#allocation3 + $0xc] sm:$0xff]
      %v2893 = vld [vmem:[#allocation3 + $0x14] sm:$0xff]
      %v2894 = vld [vmem:[#allocation3 + $0x1c] sm:$0xff]
      %v2895 = vld [vmem:[#allocation3 + $0x24] sm:$0xff]
      %v2896 = vld [vmem:[#allocation3 + $0x2c] sm:$0xff]
      %v2897 = vld [vmem:[#allocation3 + $0x34] sm:$0xff]
      %v2898 = vld [vmem:[#allocation3 + $0x3c] sm:$0xff]
      %v2899 = vld [vmem:[#allocation3 + $0x44] sm:$0xff]
      %v2900 = vld [vmem:[#allocation3 + $0x4c] sm:$0x7]
      %v2901 = vld [vmem:[%s5 + $0x140] sm:$0xff]
      %v2902 = vld [vmem:[%s5 + $0x148] sm:$0xff]
      %v2903 = vld [vmem:[%s5 + $0x150] sm:$0xff]
      %v2904 = vld [vmem:[%s5 + $0x158] sm:$0xff]
      %v2905 = vld [vmem:[%s5 + $0x160] sm:$0xff]
      %v2906 = vld [vmem:[%s5 + $0x168] sm:$0xff]
      %v2907 = vld [vmem:[%s5 + $0x170] sm:$0xff]
      %v2908 = vld [vmem:[%s5 + $0x178] sm:$0xff]
      %v2910 = vsel %vm1374, %v2892, 0
      %v2913 = vsel %vm1374, %v2893, 0
      %v2916 = vsel %vm1374, %v2894, 0
      %v2919 = vsel %vm1374, %v2895, 0
      %v2922 = vsel %vm1374, %v2896, 0
      %v2925 = vsel %vm1374, %v2897, 0
      %v2928 = vsel %vm1374, %v2898, 0
      %v2931 = vsel %vm1374, %v2899, 0
      %v2934 = vsel %vm1374, %v2900, 0
      %2936 = vmatprep.subr.mxu0 0.0
      %2937 = vmatpush1.msra.mxu0 %v2901
      %2938 = vmatprep.subr.mxu0 0.0
      %2939 = vmatpush1.msra.mxu0 %v2902
      %2940 = vmatprep.subr.mxu0 0.0
      %2941 = vmatpush1.msra.mxu0 %v2903
      %2942 = vmatprep.subr.mxu0 0.0
      %2943 = vmatpush1.msra.mxu0 %v2904
      %2944 = vmatprep.subr.mxu0 0.0
      %2945 = vmatpush1.msra.mxu0 %v2905
      %2946 = vmatprep.subr.mxu0 0.0
      %2947 = vmatpush1.msra.mxu0 %v2906
      %2948 = vmatprep.subr.mxu0 0.0
      %2949 = vmatpush1.msra.mxu0 %v2907
      %2950 = vmatprep.subr.mxu0 0.0
      %2951 = vmatpush1.msra.mxu0 %v2908
      %2952 = vmatprep.subr.mxu0 0.0
      %2953 = vmatpush1.msra.mxu0 0.0
      %2954 = vmatprep.subr.mxu0 0.0
      %2955 = vmatpush1.msra.mxu0 0.0
      %2956 = vmatprep.subr.mxu0 0.0
      %2957 = vmatpush1.msra.mxu0 0.0
      %2958 = vmatprep.subr.mxu0 0.0
      %2959 = vmatpush1.msra.mxu0 0.0
      %2960 = vmatprep.subr.mxu0 0.0
      %2961 = vmatpush1.msra.mxu0 0.0
      %2962 = vmatprep.subr.mxu0 0.0
      %2963 = vmatpush1.msra.mxu0 0.0
      %2964 = vmatprep.subr.mxu0 0.0
      %2965 = vmatpush1.msra.mxu0 0.0
      %2966 = vmatprep.subr.mxu0 0.0
      %2967 = vmatpush1.msra.mxu0 0.0
      %2968 = vmatprep.subr.mxu0 0.0
      %2969 = vmatpush1.msra.mxu0 0.0
      %2970 = vmatprep.subr.mxu0 0.0
      %2971 = vmatpush1.msra.mxu0 0.0
      %2972 = vmatprep.subr.mxu0 0.0
      %2973 = vmatpush1.msra.mxu0 0.0
      %2974 = vmatprep.subr.mxu0 0.0
      %2975 = vmatpush1.msra.mxu0 0.0
      %2976 = vmatprep.subr.mxu0 0.0
      %2977 = vmatpush1.msra.mxu0 0.0
      %2978 = vmatprep.subr.mxu0 0.0
      %2979 = vmatpush1.msra.mxu0 0.0
      %2980 = vmatprep.subr.mxu0 0.0
      %2981 = vmatpush1.msra.mxu0 0.0
      %2982 = vmatprep.subr.mxu0 0.0
      %2983 = vmatpush1.msra.mxu0 0.0
      %2984 = vmatprep.subr.mxu0 0.0
      %2985 = vmatpush1.msra.mxu0 0.0
      %2986 = vmatprep.subr.mxu0 0.0
      %2987 = vmatpush1.msra.mxu0 0.0
      %2988 = vmatprep.subr.mxu0 0.0
      %2989 = vmatpush1.msra.mxu0 0.0
      %2990 = vmatprep.subr.mxu0 0.0
      %2991 = vmatpush1.msra.mxu0 0.0
      %2992 = vmatprep.subr.mxu0 0.0
      %2993 = vmatpush1.msra.mxu0 0.0
      %2994 = vmatprep.subr.mxu0 0.0
      %2995 = vmatpush1.msra.mxu0 0.0
      %2996 = vmatprep.subr.mxu0 0.0
      %2997 = vmatpush1.msra.mxu0 0.0
      %2998 = vmatprep.subr.mxu0 0.0
      %2999 = vmatpush1.msra.mxu0 0.0
      %3000 = vmatprep.mubr.f32.mxu0 0.0
      %3001 = vmatmul.mubr.f32.gmra.mrb[0].mxu0 %v2910
      %v3002 = vpop.f32.mrb[0].mxu0
      %v3003 = vadd.f32 0.0, %v3002
      %v3004 = vpop.f32.mrb[0].mxu0
      %3005 = vmatprep.mubr.f32.mxu0 0.0
      %3006 = vmatmul.mubr.f32.gmra.mrb[0].mxu0 %v2913
      %v3007 = vpop.f32.mrb[0].mxu0
      %v3008 = vadd.f32 0.0, %v3007
      %v3009 = vpop.f32.mrb[0].mxu0
      %3010 = vmatprep.mubr.f32.mxu0 0.0
      %3011 = vmatmul.mubr.f32.gmra.mrb[0].mxu0 %v2916
      %v3012 = vpop.f32.mrb[0].mxu0
      %v3013 = vadd.f32 0.0, %v3012
      %v3014 = vpop.f32.mrb[0].mxu0
      %3015 = vmatprep.mubr.f32.mxu0 0.0
      %3016 = vmatmul.mubr.f32.gmra.mrb[0].mxu0 %v2919
      %v3017 = vpop.f32.mrb[0].mxu0
      %v3018 = vadd.f32 0.0, %v3017
      %v3019 = vpop.f32.mrb[0].mxu0
      %3020 = vmatprep.mubr.f32.mxu0 0.0
      %3021 = vmatmul.mubr.f32.gmra.mrb[0].mxu0 %v2922
      %v3022 = vpop.f32.mrb[0].mxu0
      %v3023 = vadd.f32 0.0, %v3022
      %v3024 = vpop.f32.mrb[0].mxu0
      %3025 = vmatprep.mubr.f32.mxu0 0.0
      %3026 = vmatmul.mubr.f32.gmra.mrb[0].mxu0 %v2925
      %v3027 = vpop.f32.mrb[0].mxu0
      %v3028 = vadd.f32 0.0, %v3027
      %v3029 = vpop.f32.mrb[0].mxu0
      %3030 = vmatprep.mubr.f32.mxu0 0.0
      %3031 = vmatmul.mubr.f32.gmra.mrb[0].mxu0 %v2928
      %v3032 = vpop.f32.mrb[0].mxu0
      %v3033 = vadd.f32 0.0, %v3032
      %v3034 = vpop.f32.mrb[0].mxu0
      %3035 = vmatprep.mubr.f32.mxu0 0.0
      %3036 = vmatmul.mubr.f32.gmra.mrb[0].mxu0 %v2931
      %v3037 = vpop.f32.mrb[0].mxu0
      %v3038 = vadd.f32 0.0, %v3037
      %v3039 = vpop.f32.mrb[0].mxu0
      %3040 = vmatprep.mubr.f32.mxu0 0.0
      %3041 = vmatmul.mubr.f32.gmra.mrb[0].mxu0 %v2934
      %v3042 = vpop.f32.mrb[0].mxu0
      %v3043 = vadd.f32 0.0, %v3042
      %v3044 = vpop.f32.mrb[0].mxu0
      %3045 = vdwg.mxu0
      %v3046 = vadd.f32 %v2883, %v3003
      %v3047 = vadd.f32 %v2884, %v3008
      %v3048 = vadd.f32 %v2885, %v3013
      %v3049 = vadd.f32 %v2886, %v3018
      %v3050 = vadd.f32 %v2887, %v3023
      %v3051 = vadd.f32 %v2888, %v3028
      %v3052 = vadd.f32 %v2889, %v3033
      %v3053 = vadd.f32 %v2890, %v3038
      %v3054 = vadd.f32 %v2891, %v3043
      %v3055 = vld [vmem:[#allocation3 + $0x14] sm:$0xff]
      %v3056 = vld [vmem:[#allocation3 + $0x1c] sm:$0xff]
      %v3057 = vld [vmem:[#allocation3 + $0x24] sm:$0xff]
      %v3058 = vld [vmem:[#allocation3 + $0x2c] sm:$0xff]
      %v3059 = vld [vmem:[#allocation3 + $0x34] sm:$0xff]
      %v3060 = vld [vmem:[#allocation3 + $0x3c] sm:$0xff]
      %v3061 = vld [vmem:[#allocation3 + $0x44] sm:$0xff]
      %v3062 = vld [vmem:[#allocation3 + $0x4c] sm:$0xff]
      %v3063 = vld [vmem:[#allocation3 + $0x54] sm:$0x7]
      %v3064 = vld [vmem:[%s5 + $0x180] sm:$0xff]
      %v3065 = vld [vmem:[%s5 + $0x188] sm:$0xff]
      %v3066 = vld [vmem:[%s5 + $0x190] sm:$0xff]
      %v3067 = vld [vmem:[%s5 + $0x198] sm:$0xff]
      %v3068 = vld [vmem:[%s5 + $0x1a0] sm:$0xff]
      %v3069 = vld [vmem:[%s5 + $0x1a8] sm:$0xff]
      %v3070 = vld [vmem:[%s5 + $0x1b0] sm:$0xff]
      %v3071 = vld [vmem:[%s5 + $0x1b8] sm:$0xff]
      %v3073 = vsel %vm1374, %v3055, 0
      %v3076 = vsel %vm1374, %v3056, 0
      %v3079 = vsel %vm1374, %v3057, 0
      %v3082 = vsel %vm1374, %v3058, 0
      %v3085 = vsel %vm1374, %v3059, 0
      %v3088 = vsel %vm1374, %v3060, 0
      %v3091 = vsel %vm1374, %v3061, 0
      %v3094 = vsel %vm1374, %v3062, 0
      %v3097 = vsel %vm1374, %v3063, 0
      %3099 = vmatprep.subr.mxu0 0.0
      %3100 = vmatpush1.msra.mxu0 %v3064
      %3101 = vmatprep.subr.mxu0 0.0
      %3102 = vmatpush1.msra.mxu0 %v3065
      %3103 = vmatprep.subr.mxu0 0.0
      %3104 = vmatpush1.msra.mxu0 %v3066
      %3105 = vmatprep.subr.mxu0 0.0
      %3106 = vmatpush1.msra.mxu0 %v3067
      %3107 = vmatprep.subr.mxu0 0.0
      %3108 = vmatpush1.msra.mxu0 %v3068
      %3109 = vmatprep.subr.mxu0 0.0
      %3110 = vmatpush1.msra.mxu0 %v3069
      %3111 = vmatprep.subr.mxu0 0.0
      %3112 = vmatpush1.msra.mxu0 %v3070
      %3113 = vmatprep.subr.mxu0 0.0
      %3114 = vmatpush1.msra.mxu0 %v3071
      %3115 = vmatprep.subr.mxu0 0.0
      %3116 = vmatpush1.msra.mxu0 0.0
      %3117 = vmatprep.subr.mxu0 0.0
      %3118 = vmatpush1.msra.mxu0 0.0
      %3119 = vmatprep.subr.mxu0 0.0
      %3120 = vmatpush1.msra.mxu0 0.0
      %3121 = vmatprep.subr.mxu0 0.0
      %3122 = vmatpush1.msra.mxu0 0.0
      %3123 = vmatprep.subr.mxu0 0.0
      %3124 = vmatpush1.msra.mxu0 0.0
      %3125 = vmatprep.subr.mxu0 0.0
      %3126 = vmatpush1.msra.mxu0 0.0
      %3127 = vmatprep.subr.mxu0 0.0
      %3128 = vmatpush1.msra.mxu0 0.0
      %3129 = vmatprep.subr.mxu0 0.0
      %3130 = vmatpush1.msra.mxu0 0.0
      %3131 = vmatprep.subr.mxu0 0.0
      %3132 = vmatpush1.msra.mxu0 0.0
      %3133 = vmatprep.subr.mxu0 0.0
      %3134 = vmatpush1.msra.mxu0 0.0
      %3135 = vmatprep.subr.mxu0 0.0
      %3136 = vmatpush1.msra.mxu0 0.0
      %3137 = vmatprep.subr.mxu0 0.0
      %3138 = vmatpush1.msra.mxu0 0.0
      %3139 = vmatprep.subr.mxu0 0.0
      %3140 = vmatpush1.msra.mxu0 0.0
      %3141 = vmatprep.subr.mxu0 0.0
      %3142 = vmatpush1.msra.mxu0 0.0
      %3143 = vmatprep.subr.mxu0 0.0
      %3144 = vmatpush1.msra.mxu0 0.0
      %3145 = vmatprep.subr.mxu0 0.0
      %3146 = vmatpush1.msra.mxu0 0.0
      %3147 = vmatprep.subr.mxu0 0.0
      %3148 = vmatpush1.msra.mxu0 0.0
      %3149 = vmatprep.subr.mxu0 0.0
      %3150 = vmatpush1.msra.mxu0 0.0
      %3151 = vmatprep.subr.mxu0 0.0
      %3152 = vmatpush1.msra.mxu0 0.0
      %3153 = vmatprep.subr.mxu0 0.0
      %3154 = vmatpush1.msra.mxu0 0.0
      %3155 = vmatprep.subr.mxu0 0.0
      %3156 = vmatpush1.msra.mxu0 0.0
      %3157 = vmatprep.subr.mxu0 0.0
      %3158 = vmatpush1.msra.mxu0 0.0
      %3159 = vmatprep.subr.mxu0 0.0
      %3160 = vmatpush1.msra.mxu0 0.0
      %3161 = vmatprep.subr.mxu0 0.0
      %3162 = vmatpush1.msra.mxu0 0.0
      %3163 = vmatprep.mubr.f32.mxu0 0.0
      %3164 = vmatmul.mubr.f32.gmra.mrb[0].mxu0 %v3073
      %v3165 = vpop.f32.mrb[0].mxu0
      %v3166 = vadd.f32 0.0, %v3165
      %v3167 = vpop.f32.mrb[0].mxu0
      %3168 = vmatprep.mubr.f32.mxu0 0.0
      %3169 = vmatmul.mubr.f32.gmra.mrb[0].mxu0 %v3076
      %v3170 = vpop.f32.mrb[0].mxu0
      %v3171 = vadd.f32 0.0, %v3170
      %v3172 = vpop.f32.mrb[0].mxu0
      %3173 = vmatprep.mubr.f32.mxu0 0.0
      %3174 = vmatmul.mubr.f32.gmra.mrb[0].mxu0 %v3079
      %v3175 = vpop.f32.mrb[0].mxu0
      %v3176 = vadd.f32 0.0, %v3175
      %v3177 = vpop.f32.mrb[0].mxu0
      %3178 = vmatprep.mubr.f32.mxu0 0.0
      %3179 = vmatmul.mubr.f32.gmra.mrb[0].mxu0 %v3082
      %v3180 = vpop.f32.mrb[0].mxu0
      %v3181 = vadd.f32 0.0, %v3180
      %v3182 = vpop.f32.mrb[0].mxu0
      %3183 = vmatprep.mubr.f32.mxu0 0.0
      %3184 = vmatmul.mubr.f32.gmra.mrb[0].mxu0 %v3085
      %v3185 = vpop.f32.mrb[0].mxu0
      %v3186 = vadd.f32 0.0, %v3185
      %v3187 = vpop.f32.mrb[0].mxu0
      %3188 = vmatprep.mubr.f32.mxu0 0.0
      %3189 = vmatmul.mubr.f32.gmra.mrb[0].mxu0 %v3088
      %v3190 = vpop.f32.mrb[0].mxu0
      %v3191 = vadd.f32 0.0, %v3190
      %v3192 = vpop.f32.mrb[0].mxu0
      %3193 = vmatprep.mubr.f32.mxu0 0.0
      %3194 = vmatmul.mubr.f32.gmra.mrb[0].mxu0 %v3091
      %v3195 = vpop.f32.mrb[0].mxu0
      %v3196 = vadd.f32 0.0, %v3195
      %v3197 = vpop.f32.mrb[0].mxu0
      %3198 = vmatprep.mubr.f32.mxu0 0.0
      %3199 = vmatmul.mubr.f32.gmra.mrb[0].mxu0 %v3094
      %v3200 = vpop.f32.mrb[0].mxu0
      %v3201 = vadd.f32 0.0, %v3200
      %v3202 = vpop.f32.mrb[0].mxu0
      %3203 = vmatprep.mubr.f32.mxu0 0.0
      %3204 = vmatmul.mubr.f32.gmra.mrb[0].mxu0 %v3097
      %v3205 = vpop.f32.mrb[0].mxu0
      %v3206 = vadd.f32 0.0, %v3205
      %v3207 = vpop.f32.mrb[0].mxu0
      %3208 = vdwg.mxu0
      %v3209 = vadd.f32 %v3046, %v3166
      %v3210 = vadd.f32 %v3047, %v3171
      %v3211 = vadd.f32 %v3048, %v3176
      %v3212 = vadd.f32 %v3049, %v3181
      %v3213 = vadd.f32 %v3050, %v3186
      %v3214 = vadd.f32 %v3051, %v3191
      %v3215 = vadd.f32 %v3052, %v3196
      %v3216 = vadd.f32 %v3053, %v3201
      %v3217 = vadd.f32 %v3054, %v3206
      %v3218 = vld [vmem:[#allocation3 + $0x15] sm:$0xff]
      %v3219 = vld [vmem:[#allocation3 + $0x1d] sm:$0xff]
      %v3220 = vld [vmem:[#allocation3 + $0x25] sm:$0xff]
      %v3221 = vld [vmem:[#allocation3 + $0x2d] sm:$0xff]
      %v3222 = vld [vmem:[#allocation3 + $0x35] sm:$0xff]
      %v3223 = vld [vmem:[#allocation3 + $0x3d] sm:$0xff]
      %v3224 = vld [vmem:[#allocation3 + $0x45] sm:$0xff]
      %v3225 = vld [vmem:[#allocation3 + $0x4d] sm:$0xff]
      %v3226 = vld [vmem:[#allocation3 + $0x55] sm:$0x7]
      %v3227 = vld [vmem:[%s5 + $0x1c0] sm:$0xff]
      %v3228 = vld [vmem:[%s5 + $0x1c8] sm:$0xff]
      %v3229 = vld [vmem:[%s5 + $0x1d0] sm:$0xff]
      %v3230 = vld [vmem:[%s5 + $0x1d8] sm:$0xff]
      %v3231 = vld [vmem:[%s5 + $0x1e0] sm:$0xff]
      %v3232 = vld [vmem:[%s5 + $0x1e8] sm:$0xff]
      %v3233 = vld [vmem:[%s5 + $0x1f0] sm:$0xff]
      %v3234 = vld [vmem:[%s5 + $0x1f8] sm:$0xff]
      %v3236 = vsel %vm1374, %v3218, 0
      %v3239 = vsel %vm1374, %v3219, 0
      %v3242 = vsel %vm1374, %v3220, 0
      %v3245 = vsel %vm1374, %v3221, 0
      %v3248 = vsel %vm1374, %v3222, 0
      %v3251 = vsel %vm1374, %v3223, 0
      %v3254 = vsel %vm1374, %v3224, 0
      %v3257 = vsel %vm1374, %v3225, 0
      %v3260 = vsel %vm1374, %v3226, 0
      %3262 = vmatprep.subr.mxu0 0.0
      %3263 = vmatpush1.msra.mxu0 %v3227
      %3264 = vmatprep.subr.mxu0 0.0
      %3265 = vmatpush1.msra.mxu0 %v3228
      %3266 = vmatprep.subr.mxu0 0.0
      %3267 = vmatpush1.msra.mxu0 %v3229
      %3268 = vmatprep.subr.mxu0 0.0
      %3269 = vmatpush1.msra.mxu0 %v3230
      %3270 = vmatprep.subr.mxu0 0.0
      %3271 = vmatpush1.msra.mxu0 %v3231
      %3272 = vmatprep.subr.mxu0 0.0
      %3273 = vmatpush1.msra.mxu0 %v3232
      %3274 = vmatprep.subr.mxu0 0.0
      %3275 = vmatpush1.msra.mxu0 %v3233
      %3276 = vmatprep.subr.mxu0 0.0
      %3277 = vmatpush1.msra.mxu0 %v3234
      %3278 = vmatprep.subr.mxu0 0.0
      %3279 = vmatpush1.msra.mxu0 0.0
      %3280 = vmatprep.subr.mxu0 0.0
      %3281 = vmatpush1.msra.mxu0 0.0
      %3282 = vmatprep.subr.mxu0 0.0
      %3283 = vmatpush1.msra.mxu0 0.0
      %3284 = vmatprep.subr.mxu0 0.0
      %3285 = vmatpush1.msra.mxu0 0.0
      %3286 = vmatprep.subr.mxu0 0.0
      %3287 = vmatpush1.msra.mxu0 0.0
      %3288 = vmatprep.subr.mxu0 0.0
      %3289 = vmatpush1.msra.mxu0 0.0
      %3290 = vmatprep.subr.mxu0 0.0
      %3291 = vmatpush1.msra.mxu0 0.0
      %3292 = vmatprep.subr.mxu0 0.0
      %3293 = vmatpush1.msra.mxu0 0.0
      %3294 = vmatprep.subr.mxu0 0.0
      %3295 = vmatpush1.msra.mxu0 0.0
      %3296 = vmatprep.subr.mxu0 0.0
      %3297 = vmatpush1.msra.mxu0 0.0
      %3298 = vmatprep.subr.mxu0 0.0
      %3299 = vmatpush1.msra.mxu0 0.0
      %3300 = vmatprep.subr.mxu0 0.0
      %3301 = vmatpush1.msra.mxu0 0.0
      %3302 = vmatprep.subr.mxu0 0.0
      %3303 = vmatpush1.msra.mxu0 0.0
      %3304 = vmatprep.subr.mxu0 0.0
      %3305 = vmatpush1.msra.mxu0 0.0
      %3306 = vmatprep.subr.mxu0 0.0
      %3307 = vmatpush1.msra.mxu0 0.0
      %3308 = vmatprep.subr.mxu0 0.0
      %3309 = vmatpush1.msra.mxu0 0.0
      %3310 = vmatprep.subr.mxu0 0.0
      %3311 = vmatpush1.msra.mxu0 0.0
      %3312 = vmatprep.subr.mxu0 0.0
      %3313 = vmatpush1.msra.mxu0 0.0
      %3314 = vmatprep.subr.mxu0 0.0
      %3315 = vmatpush1.msra.mxu0 0.0
      %3316 = vmatprep.subr.mxu0 0.0
      %3317 = vmatpush1.msra.mxu0 0.0
      %3318 = vmatprep.subr.mxu0 0.0
      %3319 = vmatpush1.msra.mxu0 0.0
      %3320 = vmatprep.subr.mxu0 0.0
      %3321 = vmatpush1.msra.mxu0 0.0
      %3322 = vmatprep.subr.mxu0 0.0
      %3323 = vmatpush1.msra.mxu0 0.0
      %3324 = vmatprep.subr.mxu0 0.0
      %3325 = vmatpush1.msra.mxu0 0.0
      %3326 = vmatprep.mubr.f32.mxu0 0.0
      %3327 = vmatmul.mubr.f32.gmra.mrb[0].mxu0 %v3236
      %v3328 = vpop.f32.mrb[0].mxu0
      %v3329 = vadd.f32 0.0, %v3328
      %v3330 = vpop.f32.mrb[0].mxu0
      %3331 = vmatprep.mubr.f32.mxu0 0.0
      %3332 = vmatmul.mubr.f32.gmra.mrb[0].mxu0 %v3239
      %v3333 = vpop.f32.mrb[0].mxu0
      %v3334 = vadd.f32 0.0, %v3333
      %v3335 = vpop.f32.mrb[0].mxu0
      %3336 = vmatprep.mubr.f32.mxu0 0.0
      %3337 = vmatmul.mubr.f32.gmra.mrb[0].mxu0 %v3242
      %v3338 = vpop.f32.mrb[0].mxu0
      %v3339 = vadd.f32 0.0, %v3338
      %v3340 = vpop.f32.mrb[0].mxu0
      %3341 = vmatprep.mubr.f32.mxu0 0.0
      %3342 = vmatmul.mubr.f32.gmra.mrb[0].mxu0 %v3245
      %v3343 = vpop.f32.mrb[0].mxu0
      %v3344 = vadd.f32 0.0, %v3343
      %v3345 = vpop.f32.mrb[0].mxu0
      %3346 = vmatprep.mubr.f32.mxu0 0.0
      %3347 = vmatmul.mubr.f32.gmra.mrb[0].mxu0 %v3248
      %v3348 = vpop.f32.mrb[0].mxu0
      %v3349 = vadd.f32 0.0, %v3348
      %v3350 = vpop.f32.mrb[0].mxu0
      %3351 = vmatprep.mubr.f32.mxu0 0.0
      %3352 = vmatmul.mubr.f32.gmra.mrb[0].mxu0 %v3251
      %v3353 = vpop.f32.mrb[0].mxu0
      %v3354 = vadd.f32 0.0, %v3353
      %v3355 = vpop.f32.mrb[0].mxu0
      %3356 = vmatprep.mubr.f32.mxu0 0.0
      %3357 = vmatmul.mubr.f32.gmra.mrb[0].mxu0 %v3254
      %v3358 = vpop.f32.mrb[0].mxu0
      %v3359 = vadd.f32 0.0, %v3358
      %v3360 = vpop.f32.mrb[0].mxu0
      %3361 = vmatprep.mubr.f32.mxu0 0.0
      %3362 = vmatmul.mubr.f32.gmra.mrb[0].mxu0 %v3257
      %v3363 = vpop.f32.mrb[0].mxu0
      %v3364 = vadd.f32 0.0, %v3363
      %v3365 = vpop.f32.mrb[0].mxu0
      %3366 = vmatprep.mubr.f32.mxu0 0.0
      %3367 = vmatmul.mubr.f32.gmra.mrb[0].mxu0 %v3260
      %v3368 = vpop.f32.mrb[0].mxu0
      %v3369 = vadd.f32 0.0, %v3368
      %v3370 = vpop.f32.mrb[0].mxu0
      %3371 = vdwg.mxu0
      %v3372 = vadd.f32 %v3209, %v3329
      %v3373 = vadd.f32 %v3210, %v3334
      %v3374 = vadd.f32 %v3211, %v3339
      %v3375 = vadd.f32 %v3212, %v3344
      %v3376 = vadd.f32 %v3213, %v3349
      %v3377 = vadd.f32 %v3214, %v3354
      %v3378 = vadd.f32 %v3215, %v3359
      %v3379 = vadd.f32 %v3216, %v3364
      %v3380 = vadd.f32 %v3217, %v3369
      %v3381 = vld [vmem:[#allocation3 + $0x16] sm:$0xff]
      %v3382 = vld [vmem:[#allocation3 + $0x1e] sm:$0xff]
      %v3383 = vld [vmem:[#allocation3 + $0x26] sm:$0xff]
      %v3384 = vld [vmem:[#allocation3 + $0x2e] sm:$0xff]
      %v3385 = vld [vmem:[#allocation3 + $0x36] sm:$0xff]
      %v3386 = vld [vmem:[#allocation3 + $0x3e] sm:$0xff]
      %v3387 = vld [vmem:[#allocation3 + $0x46] sm:$0xff]
      %v3388 = vld [vmem:[#allocation3 + $0x4e] sm:$0xff]
      %v3389 = vld [vmem:[#allocation3 + $0x56] sm:$0x7]
      %v3390 = vld [vmem:[%s5 + $0x200] sm:$0xff]
      %v3391 = vld [vmem:[%s5 + $0x208] sm:$0xff]
      %v3392 = vld [vmem:[%s5 + $0x210] sm:$0xff]
      %v3393 = vld [vmem:[%s5 + $0x218] sm:$0xff]
      %v3394 = vld [vmem:[%s5 + $0x220] sm:$0xff]
      %v3395 = vld [vmem:[%s5 + $0x228] sm:$0xff]
      %v3396 = vld [vmem:[%s5 + $0x230] sm:$0xff]
      %v3397 = vld [vmem:[%s5 + $0x238] sm:$0xff]
      %v3399 = vsel %vm1374, %v3381, 0
      %v3402 = vsel %vm1374, %v3382, 0
      %v3405 = vsel %vm1374, %v3383, 0
      %v3408 = vsel %vm1374, %v3384, 0
      %v3411 = vsel %vm1374, %v3385, 0
      %v3414 = vsel %vm1374, %v3386, 0
      %v3417 = vsel %vm1374, %v3387, 0
      %v3420 = vsel %vm1374, %v3388, 0
      %v3423 = vsel %vm1374, %v3389, 0
      %3425 = vmatprep.subr.mxu0 0.0
      %3426 = vmatpush1.msra.mxu0 %v3390
      %3427 = vmatprep.subr.mxu0 0.0
      %3428 = vmatpush1.msra.mxu0 %v3391
      %3429 = vmatprep.subr.mxu0 0.0
      %3430 = vmatpush1.msra.mxu0 %v3392
      %3431 = vmatprep.subr.mxu0 0.0
      %3432 = vmatpush1.msra.mxu0 %v3393
      %3433 = vmatprep.subr.mxu0 0.0
      %3434 = vmatpush1.msra.mxu0 %v3394
      %3435 = vmatprep.subr.mxu0 0.0
      %3436 = vmatpush1.msra.mxu0 %v3395
      %3437 = vmatprep.subr.mxu0 0.0
      %3438 = vmatpush1.msra.mxu0 %v3396
      %3439 = vmatprep.subr.mxu0 0.0
      %3440 = vmatpush1.msra.mxu0 %v3397
      %3441 = vmatprep.subr.mxu0 0.0
      %3442 = vmatpush1.msra.mxu0 0.0
      %3443 = vmatprep.subr.mxu0 0.0
      %3444 = vmatpush1.msra.mxu0 0.0
      %3445 = vmatprep.subr.mxu0 0.0
      %3446 = vmatpush1.msra.mxu0 0.0
      %3447 = vmatprep.subr.mxu0 0.0
      %3448 = vmatpush1.msra.mxu0 0.0
      %3449 = vmatprep.subr.mxu0 0.0
      %3450 = vmatpush1.msra.mxu0 0.0
      %3451 = vmatprep.subr.mxu0 0.0
      %3452 = vmatpush1.msra.mxu0 0.0
      %3453 = vmatprep.subr.mxu0 0.0
      %3454 = vmatpush1.msra.mxu0 0.0
      %3455 = vmatprep.subr.mxu0 0.0
      %3456 = vmatpush1.msra.mxu0 0.0
      %3457 = vmatprep.subr.mxu0 0.0
      %3458 = vmatpush1.msra.mxu0 0.0
      %3459 = vmatprep.subr.mxu0 0.0
      %3460 = vmatpush1.msra.mxu0 0.0
      %3461 = vmatprep.subr.mxu0 0.0
      %3462 = vmatpush1.msra.mxu0 0.0
      %3463 = vmatprep.subr.mxu0 0.0
      %3464 = vmatpush1.msra.mxu0 0.0
      %3465 = vmatprep.subr.mxu0 0.0
      %3466 = vmatpush1.msra.mxu0 0.0
      %3467 = vmatprep.subr.mxu0 0.0
      %3468 = vmatpush1.msra.mxu0 0.0
      %3469 = vmatprep.subr.mxu0 0.0
      %3470 = vmatpush1.msra.mxu0 0.0
      %3471 = vmatprep.subr.mxu0 0.0
      %3472 = vmatpush1.msra.mxu0 0.0
      %3473 = vmatprep.subr.mxu0 0.0
      %3474 = vmatpush1.msra.mxu0 0.0
      %3475 = vmatprep.subr.mxu0 0.0
      %3476 = vmatpush1.msra.mxu0 0.0
      %3477 = vmatprep.subr.mxu0 0.0
      %3478 = vmatpush1.msra.mxu0 0.0
      %3479 = vmatprep.subr.mxu0 0.0
      %3480 = vmatpush1.msra.mxu0 0.0
      %3481 = vmatprep.subr.mxu0 0.0
      %3482 = vmatpush1.msra.mxu0 0.0
      %3483 = vmatprep.subr.mxu0 0.0
      %3484 = vmatpush1.msra.mxu0 0.0
      %3485 = vmatprep.subr.mxu0 0.0
      %3486 = vmatpush1.msra.mxu0 0.0
      %3487 = vmatprep.subr.mxu0 0.0
      %3488 = vmatpush1.msra.mxu0 0.0
      %3489 = vmatprep.mubr.f32.mxu0 0.0
      %3490 = vmatmul.mubr.f32.gmra.mrb[0].mxu0 %v3399
      %v3491 = vpop.f32.mrb[0].mxu0
      %v3492 = vadd.f32 0.0, %v3491
      %v3493 = vpop.f32.mrb[0].mxu0
      %3494 = vmatprep.mubr.f32.mxu0 0.0
      %3495 = vmatmul.mubr.f32.gmra.mrb[0].mxu0 %v3402
      %v3496 = vpop.f32.mrb[0].mxu0
      %v3497 = vadd.f32 0.0, %v3496
      %v3498 = vpop.f32.mrb[0].mxu0
      %3499 = vmatprep.mubr.f32.mxu0 0.0
      %3500 = vmatmul.mubr.f32.gmra.mrb[0].mxu0 %v3405
      %v3501 = vpop.f32.mrb[0].mxu0
      %v3502 = vadd.f32 0.0, %v3501
      %v3503 = vpop.f32.mrb[0].mxu0
      %3504 = vmatprep.mubr.f32.mxu0 0.0
      %3505 = vmatmul.mubr.f32.gmra.mrb[0].mxu0 %v3408
      %v3506 = vpop.f32.mrb[0].mxu0
      %v3507 = vadd.f32 0.0, %v3506
      %v3508 = vpop.f32.mrb[0].mxu0
      %3509 = vmatprep.mubr.f32.mxu0 0.0
      %3510 = vmatmul.mubr.f32.gmra.mrb[0].mxu0 %v3411
      %v3511 = vpop.f32.mrb[0].mxu0
      %v3512 = vadd.f32 0.0, %v3511
      %v3513 = vpop.f32.mrb[0].mxu0
      %3514 = vmatprep.mubr.f32.mxu0 0.0
      %3515 = vmatmul.mubr.f32.gmra.mrb[0].mxu0 %v3414
      %v3516 = vpop.f32.mrb[0].mxu0
      %v3517 = vadd.f32 0.0, %v3516
      %v3518 = vpop.f32.mrb[0].mxu0
      %3519 = vmatprep.mubr.f32.mxu0 0.0
      %3520 = vmatmul.mubr.f32.gmra.mrb[0].mxu0 %v3417
      %v3521 = vpop.f32.mrb[0].mxu0
      %v3522 = vadd.f32 0.0, %v3521
      %v3523 = vpop.f32.mrb[0].mxu0
      %3524 = vmatprep.mubr.f32.mxu0 0.0
      %3525 = vmatmul.mubr.f32.gmra.mrb[0].mxu0 %v3420
      %v3526 = vpop.f32.mrb[0].mxu0
      %v3527 = vadd.f32 0.0, %v3526
      %v3528 = vpop.f32.mrb[0].mxu0
      %3529 = vmatprep.mubr.f32.mxu0 0.0
      %3530 = vmatmul.mubr.f32.gmra.mrb[0].mxu0 %v3423
      %v3531 = vpop.f32.mrb[0].mxu0
      %v3532 = vadd.f32 0.0, %v3531
      %v3533 = vpop.f32.mrb[0].mxu0
      %3534 = vdwg.mxu0
      %v3535 = vadd.f32 %v3372, %v3492
      %v3536 = vadd.f32 %v3373, %v3497
      %v3537 = vadd.f32 %v3374, %v3502
      %v3538 = vadd.f32 %v3375, %v3507
      %v3539 = vadd.f32 %v3376, %v3512
      %v3540 = vadd.f32 %v3377, %v3517
      %v3541 = vadd.f32 %v3378, %v3522
      %v3542 = vadd.f32 %v3379, %v3527
      %v3543 = vadd.f32 %v3380, %v3532
      %v3544 = vld [vmem:[%s6] sm:$0x1]
      %v3546 = vlaneseq
      %v3547 = vshrl.u32 %v3546, 7
      %v3548 = vsub.s32 0, %v3547
      %v3549 = vrot.slane %v3544, %v3548
      %v3551 = vadd.f32 %v3535, %v3549
      %v3552 = vadd.f32 %v3536, %v3549
      %v3553 = vadd.f32 %v3537, %v3549
      %v3554 = vadd.f32 %v3538, %v3549
      %v3555 = vadd.f32 %v3539, %v3549
      %v3556 = vadd.f32 %v3540, %v3549
      %v3557 = vadd.f32 %v3541, %v3549
      %v3558 = vadd.f32 %v3542, %v3549
      %v3559 = vadd.f32 %v3543, %v3549
      %v3560 = vmax.f32 %v3551, 0.0
      %v3561 = vmax.f32 %v3552, 0.0
      %v3562 = vmax.f32 %v3553, 0.0
      %v3563 = vmax.f32 %v3554, 0.0
      %v3564 = vmax.f32 %v3555, 0.0
      %v3565 = vmax.f32 %v3556, 0.0
      %v3566 = vmax.f32 %v3557, 0.0
      %v3567 = vmax.f32 %v3558, 0.0
      %v3568 = vmax.f32 %v3559, 0.0
      %3569 = vst.msk [vmem:[%s283] sm:$0xff] %vm1360, %v3560
      %3570 = vst.msk [vmem:[%s283 + $0x8] sm:$0xff] %vm1360, %v3561
      %3571 = vst.msk [vmem:[%s283 + $0x10] sm:$0xff] %vm1360, %v3562
      %3572 = vst.msk [vmem:[%s283 + $0x18] sm:$0xff] %vm1360, %v3563
      %3573 = vst.msk [vmem:[%s283 + $0x20] sm:$0xff] %vm1360, %v3564
      %3574 = vst.msk [vmem:[%s283 + $0x28] sm:$0xff] %vm1360, %v3565
      %3575 = vst.msk [vmem:[%s283 + $0x30] sm:$0xff] %vm1360, %v3566
      %3576 = vst.msk [vmem:[%s283 + $0x38] sm:$0xff] %vm1360, %v3567
      %vm3577 = vcmask 256000
      %3578 = vst.msk [vmem:[%s283 + $0x40] sm:$0x7] %vm3577, %v3568
      %p3579 = scmp.lt.s32.totalorder %s18, 1
      %s3580 = scalar_select %p3579, %s18, 1
      %s3581 = smul.addr %s3580, 9
      %s3582 = smul.addr %s3581, 8
      %s3583 = scalar_lea.vmem %s7, %s3582
      // Predicated region
      $region49: #{deepmind_forward.1} parent=47 // pred_check
        %p3584 = pneg %p188
      $region50: #{deepmind_forward.1} parent=47 // pred_check_branch
        %3586 = sbr.rel (%p3584) target = $region52
      $region51: #{deepmind_forward.1} parent=47 // pred_region
        _
      $region52: #{deepmind_forward.1} parent=47 // pred_fallthru
        _
    $region48: #{deepmind_forward.1} parent=5 // pred_fallthru
      _
    %p3587 = scmp.le.s32.totalorder 2, %s13
    // Predicated region
    $region53: #{deepmind_forward.1} parent=5 // pred_check
      %p3588 = pneg %p3587
    $region54: #{deepmind_forward.1} parent=5 // pred_check_branch
      %3590 = sbr.rel (%p3588) target = $region56
    $region55: #{deepmind_forward.1} parent=5 // pred_region
      %s3591 = ssub.s32 %s13, 2
      // Predicated region
      $region57: #{deepmind_forward.1} parent=55 // pred_check
        %p3592 = pneg %p194
      $region58: #{deepmind_forward.1} parent=55 // pred_check_branch
        %3594 = sbr.rel (%p3592) target = $region60
      $region59: #{deepmind_forward.1} parent=55 // pred_region
        %p3595 = scmp.lt.s32.totalorder %s19, 1
        %s3596 = scalar_select %p3595, %s19, 1
        %s3597 = smul.addr %s3596, 9
        %s3598 = smul.addr %s3597, 8
        %s3599 = scalar_lea.vmem %s7, %s3598
      $region60: #{deepmind_forward.1} parent=55 // pred_fallthru
        _
    $region56: #{deepmind_forward.1} parent=5 // pred_fallthru
      _
  $region6: #{deepmind_forward.1} parent=0 // loop_footer
    %s17 = sadd.s32 1, %s13
  $region7: #{deepmind_forward.1} parent=0 // loop_footer_branch
    %12 = sbr.rel target = $region3
  $region8: #{deepmind_forward.1} parent=0 // loop_exit
    _

</llo_original>
